<compile_context>
chip_gen: v7x
topology: tpu7x:2x2x1
jax: 0.10.0
libtpu: 0.0.40
codegen_flags: <defaults>
</compile_context>

<pallas_src>
import functools

import jax
import jax.numpy as jnp
from jax.experimental import pallas as pl
from jax.experimental.pallas import tpu as pltpu

_LANES = 128      # batch lanes per grid block (one block per 128 batch rows)
_CHUNK = 64       # time steps per grid chunk (bounds VMEM on v5e/v7x)
_PREC = jax.lax.Precision.HIGHEST


def _kalman_kernel(n_valid,
                   maa_ref, mhp_ref, ms_ref, ap_ref, bp_ref, cp_ref,
                   qx_ref, qy_ref,
                   yu_ref, mu0_ref, p0_ref,
                   out_ref, ll_ref,
                   mu_s, v_s):
    """One (batch-block, time-chunk) grid step of the Kalman filter.

    Layout: batch on lanes (last dim, 128 wide); the small state structure
    lives on sublanes (mu padded to 8 rows, V flattened to 16 rows).
    """
    L = yu_ref.shape[0]
    TB = yu_ref.shape[2]
    t = pl.program_id(1)
    f32 = jnp.float32

    # Loop-invariant constants, loaded once per grid step.
    maa = maa_ref[...]     # (16,16) kron(A, A):      V_flat -> (A V A^T)_flat
    mhp = mhp_ref[...]     # (8,16)  kron(C, I4):     P_flat -> (C P)_flat
    ms = ms_ref[...]       # (8,8)   kron(I2, C) pad: (C P)_flat -> S_flat
    ap = ap_ref[...]       # (8,8)   A zero-padded
    bp = bp_ref[...]       # (8,8)   B zero-padded
    cp = cp_ref[...]       # (8,8)   C zero-padded
    qx = qx_ref[...]       # (16,TB) Qx flattened, lane-broadcast
    qy = qy_ref[...]       # (8,TB)  Qy flattened (rows 0-3), lane-broadcast

    zeros4 = jnp.zeros((4, TB), f32)

    def dot(a, b):
        return jnp.dot(a, b, preferred_element_type=f32, precision=_PREC)

    def measurement_update(p_flat, mu_pred, y_p):
        """p_flat (16,TB); mu_pred (8,TB) rows 0-3 valid; y_p (8,TB) rows 0-1."""
        hp = dot(mhp, p_flat)                       # (8,TB): row a*4+j = (C P)[a,j]
        s = dot(ms, hp) + qy                        # rows 0..3 = S00,S01,S10,S11
        s00, s01, s10, s11 = s[0:1], s[1:2], s[2:3], s[3:4]
        det = s00 * s11 - s01 * s10                 # no clamp: S = C P C^T + Qy > 0
        inv_det = 1.0 / det
        hp0 = hp[0:4]                               # (4,TB) = (C P)[0, :]
        hp1 = hp[4:8]                               # (4,TB) = (C P)[1, :]
        # Kalman gain K = P C^T S^-1  (P symmetric => P C^T = (C P)^T),
        # 2x2 adjugate inverse.
        k0 = (hp0 * s11 - hp1 * s10) * inv_det      # K[:, 0]
        k1 = (hp1 * s00 - hp0 * s01) * inv_det      # K[:, 1]
        ypred = dot(cp, mu_pred)                    # (8,TB), rows 0-1 valid
        delta = y_p - ypred                         # rows 2-7 are 0 - 0 = 0
        d0, d1 = delta[0:1], delta[1:2]
        mu_new = mu_pred[0:4] + k0 * d0 + k1 * d1   # (4,TB)
        # V = (I - K C) P = P - K (C P): build the 4 row-blocks of the 4x4.
        v_rows = [p_flat[4 * i:4 * i + 4] - k0[i:i + 1] * hp0 - k1[i:i + 1] * hp1
                  for i in range(4)]
        v_new = jnp.concatenate(v_rows, axis=0)     # (16,TB)
        # Per-lane log-likelihood pieces (reduced over lanes in the wrapper).
        maha = (s11 * d0 * d0 - (s01 + s10) * d0 * d1 + s00 * d1 * d1) * inv_det
        logdet = jnp.log(det)
        return mu_new, v_new, ypred, s, maha, logdet

    def write_outputs(j, mu_new, v_new, ypred, s):
        # Merged output slab: rows 0-3 mu, 4-5 ypred, 8-23 V (two full tiles,
        # unmasked stores), 24-27 S, rest padding.
        out_ref[j, 0:4, :] = mu_new
        out_ref[j, 4:6, :] = ypred[0:2]
        out_ref[j, 8:24, :] = v_new
        out_ref[j, 24:28, :] = s[0:4]

    # ---- global step 0 (chunk 0 only): measurement update with the prior ---
    @pl.when(t == 0)
    def _():
        mu_new, v_new, ypred, s, maha0, logdet0 = measurement_update(
            p0_ref[...], mu0_ref[...], yu_ref[0, 0:8, :])
        write_outputs(0, mu_new, v_new, ypred, s)
        mu_s[...] = jnp.concatenate([mu_new, zeros4], axis=0)
        v_s[...] = v_new
        ll_ref[0:1, :] = maha0
        ll_ref[1:2, :] = logdet0

    # ---- remaining steps of this chunk: predict + update --------------------
    def step(j, carry):
        mu_p, v_flat, maha_acc, logdet_acc = carry
        yu_j = yu_ref[j]                            # (16,TB): rows 0-1 y, 8.. u
        y_p = yu_j[0:8]
        u_p = yu_j[8:16]
        p_flat = dot(maa, v_flat) + qx              # P = A V A^T + Qx
        mu_pred = dot(ap, mu_p) + dot(bp, u_p)      # A mu + B u   (rows 0-3)
        mu_new, v_new, ypred, s, maha_j, logdet_j = measurement_update(
            p_flat, mu_pred, y_p)
        write_outputs(j, mu_new, v_new, ypred, s)
        gi = t * L + j                              # global time index
        valid = gi < n_valid                        # padded tail steps masked
        maha_acc = maha_acc + jnp.where(valid, maha_j, 0.0)
        logdet_acc = logdet_acc + jnp.where(valid, logdet_j, 0.0)
        return (jnp.concatenate([mu_new, zeros4], axis=0), v_new,
                maha_acc, logdet_acc)

    start = jnp.where(t == 0, 1, 0)
    carry = jax.lax.fori_loop(
        start, L, step,
        (mu_s[...], v_s[...], ll_ref[0:1, :], ll_ref[1:2, :]))
    mu_s[...] = carry[0]
    v_s[...] = carry[1]
    ll_ref[0:1, :] = carry[2]
    ll_ref[1:2, :] = carry[3]


def kalman_filter_pallas(y, u, mu0, P0, A, Bm, C, Qx, Qy,
                         *, chunk=_CHUNK, lanes=_LANES):
    """Batched Kalman filter for a constant linear-Gaussian system.

    y: (B, n, 2), u: (B, n, u_dim<=8), mu0: (B, 4), P0: (B, 4, 4).
    Returns (mu_seq, v_seq, logp, y_seq, vy_seq) in the PyTorch layout.
    """
    Bsz, n, y_dim = y.shape
    u_dim = u.shape[-1]
    x_dim = mu0.shape[-1]
    if x_dim != 4 or y_dim != 2 or u_dim > 8:
        raise NotImplementedError("kernel is specialized to x_dim=4, y_dim=2, "
                                  "u_dim<=8")
    f32 = jnp.float32
    TB = lanes

    nb = pl.cdiv(Bsz, TB)
    B_pad = nb * TB
    pb = B_pad - Bsz
    L = min(chunk, n)
    nt = pl.cdiv(n, L)
    n_pad = nt * L
    pt = n_pad - n

    # Batch-on-lanes layout; y and u merged into one (n, 16, B) stream.
    y_t = jnp.pad(jnp.transpose(y.astype(f32), (1, 2, 0)),
                  ((0, pt), (0, 8 - y_dim), (0, pb)))
    u_t = jnp.pad(jnp.transpose(u.astype(f32), (1, 2, 0)),
                  ((0, pt), (0, 8 - u_dim), (0, pb)))
    yu = jnp.concatenate([y_t, u_t], axis=1)                     # (n_pad,16,B_pad)
    mu0_t = jnp.pad(jnp.transpose(mu0.astype(f32), (1, 0)),
                    ((0, 8 - x_dim), (0, pb)))                   # (8, B_pad)
    p0_t = jnp.pad(jnp.transpose(P0.astype(f32).reshape(Bsz, 16), (1, 0)),
                   ((0, 0), (0, pb)))                            # (16, B_pad)

    # Kronecker-lifted constant operators (flattened-covariance algebra).
    A = A.astype(f32); Bm = Bm.astype(f32); C = C.astype(f32)
    eye2 = jnp.eye(2, dtype=f32)
    eye4 = jnp.eye(4, dtype=f32)
    maa = jnp.kron(A, A)                                         # (16,16)
    mhp = jnp.kron(C, eye4)                                      # (8,16)
    ms = jnp.pad(jnp.kron(eye2, C), ((0, 4), (0, 0)))            # (8,8)
    ap = jnp.pad(A, ((0, 4), (0, 4)))                            # (8,8)
    bp = jnp.pad(Bm, ((0, 4), (0, 8 - u_dim)))                   # (8,8)
    cp = jnp.pad(C, ((0, 6), (0, 4)))                            # (8,8)
    qx_b = jnp.broadcast_to(Qx.astype(f32).reshape(16, 1), (16, TB))
    qy_b = jnp.broadcast_to(jnp.pad(Qy.astype(f32).reshape(4), (0, 4))
                            .reshape(8, 1), (8, TB))

    kernel = functools.partial(_kalman_kernel, n)

    def const_spec(shape):
        return pl.BlockSpec(shape, lambda b, t: (0,) * len(shape))

    in_specs = [
        const_spec((16, 16)), const_spec((8, 16)), const_spec((8, 8)),
        const_spec((8, 8)), const_spec((8, 8)), const_spec((8, 8)),
        const_spec((16, TB)), const_spec((8, TB)),
        pl.BlockSpec((L, 16, TB), lambda b, t: (t, 0, b)),       # y|u stream
        pl.BlockSpec((8, TB), lambda b, t: (0, b)),              # mu0
        pl.BlockSpec((16, TB), lambda b, t: (0, b)),             # P0
    ]
    out_specs = (
        pl.BlockSpec((L, 32, TB), lambda b, t: (t, 0, b)),       # merged seq out
        pl.BlockSpec((8, TB), lambda b, t: (0, b)),              # maha/logdet
    )
    out_shapes = (
        jax.ShapeDtypeStruct((n_pad, 32, B_pad), f32),
        jax.ShapeDtypeStruct((8, B_pad), f32),
    )

    out_seq, ll = pl.pallas_call(
        kernel,
        out_shape=out_shapes,
        grid=(nb, nt),
        in_specs=in_specs,
        out_specs=out_specs,
        scratch_shapes=[pltpu.VMEM((8, TB), f32),     # mu carry across chunks
                        pltpu.VMEM((16, TB), f32)],   # V carry across chunks
        compiler_params=pltpu.CompilerParams(
            dimension_semantics=("parallel", "arbitrary")),
    )(maa, mhp, ms, ap, bp, cp, qx_b, qy_b, yu, mu0_t, p0_t)

    # Back to the PyTorch (B, n, ...) layout; drop padded lanes / steps.
    out_seq = out_seq[:n, :, :Bsz]
    mu_seq = jnp.transpose(out_seq[:, 0:4, :], (2, 0, 1))
    y_seq = jnp.transpose(out_seq[:, 4:6, :], (2, 0, 1))
    v_seq = jnp.transpose(out_seq[:, 8:24, :], (2, 0, 1)).reshape(Bsz, n, 4, 4)
    vy_seq = jnp.transpose(out_seq[:, 24:28, :], (2, 0, 1)).reshape(Bsz, n, 2, 2)

    # Gaussian log-likelihood: one reduction over the valid lanes only.
    maha_sum = jnp.sum(ll[0, :Bsz])
    logdet_sum = jnp.sum(ll[1, :Bsz])
    count = Bsz * n
    logp = -0.5 * (y_dim * jnp.log(2.0 * jnp.pi)
                   + (logdet_sum + maha_sum) / count)
    return mu_seq, v_seq, logp, y_seq, vy_seq


def ref_filter(y, u, mu0, P0, A, Bm, C, Qx, Qy):
    """Pure-JAX reference mirroring Kalman.filter semantics."""
    Bsz, n, y_dim = y.shape
    x_dim = mu0.shape[-1]
    eye_x = jnp.eye(x_dim, dtype=jnp.float32)

    def update(P, mu_pred, yi):
        ph = jnp.einsum('bij,kj->bik', P, C)
        S = jnp.einsum('ij,bjk->bik', C, ph) + Qy
        Sinv = jnp.linalg.inv(S)
        K = jnp.einsum('bij,bjk->bik', ph, Sinv)
        ypred = mu_pred @ C.T
        delta = yi - ypred
        mu_new = mu_pred + jnp.einsum('bij,bj->bi', K, delta)
        V_new = jnp.einsum('bij,bjk->bik',
                           eye_x - jnp.einsum('bij,jk->bik', K, C), P)
        return mu_new, V_new, ypred, S

    mu_l, v_l, yp_l, vy_l = [], [], [], []
    mu, V, ypred, S = update(P0, mu0, y[:, 0, :])
    mu_l.append(mu); v_l.append(V); yp_l.append(ypred); vy_l.append(S)
    for i in range(1, n):
        P = jnp.einsum('ij,bjk,lk->bil', A, V, A) + Qx
        mu_pred = mu @ A.T + u[:, i, :] @ Bm.T
        mu, V, ypred, S = update(P, mu_pred, y[:, i, :])
        mu_l.append(mu); v_l.append(V); yp_l.append(ypred); vy_l.append(S)

    mu_seq = jnp.stack(mu_l, axis=1)
    v_seq = jnp.stack(v_l, axis=1)
    y_seq = jnp.stack(yp_l, axis=1)
    vy_seq = jnp.stack(vy_l, axis=1)

    delta_all = (y - y_seq).reshape(-1, y_dim)
    S_all = vy_seq.reshape(-1, y_dim, y_dim)
    Sinv_all = jnp.linalg.inv(S_all)
    maha = jnp.einsum('bi,bij,bj->b', delta_all, Sinv_all, delta_all)
    logdet = jnp.linalg.slogdet(S_all)[1]
    logp = jnp.mean(-0.5 * (y_dim * jnp.log(2.0 * jnp.pi) + logdet + maha))
    return mu_seq, v_seq, logp, y_seq, vy_seq


if __name__ == "__main__":
    key = jax.random.PRNGKey(0)
    Bsz, n, x_dim, y_dim, u_dim = 2, 6, 4, 2, 3
    ks = jax.random.split(key, 8)

    # Deterministic synthetic linear-Gaussian system.
    A = (0.9 * jnp.eye(x_dim)
         + 0.05 * jax.random.normal(ks[0], (x_dim, x_dim))).astype(jnp.float32)
    Bm = (0.1 * jax.random.normal(ks[1], (x_dim, u_dim))).astype(jnp.float32)
    C = (0.5 * jax.random.normal(ks[2], (y_dim, x_dim))).astype(jnp.float32)
    Qx = (0.05 * jnp.eye(x_dim)).astype(jnp.float32)     # sigmax
    Qy = (0.10 * jnp.eye(y_dim)).astype(jnp.float32)     # sigmay

    # Inputs.
    y = jax.random.normal(ks[3], (Bsz, n, y_dim), dtype=jnp.float32)
    u = jax.random.normal(ks[4], (Bsz, n, u_dim), dtype=jnp.float32)
    mu0 = jax.random.normal(ks[5], (Bsz, x_dim), dtype=jnp.float32)
    P0 = jnp.broadcast_to(0.5 * jnp.eye(x_dim),
                          (Bsz, x_dim, x_dim)).astype(jnp.float32)

    out = kalman_filter_pallas(y, u, mu0, P0, A, Bm, C, Qx, Qy)
    out = jax.block_until_ready(out)
    mu_seq, v_seq, logp, y_seq, vy_seq = out

    mu_r, v_r, logp_r, y_r, vy_r = ref_filter(y, u, mu0, P0, A, Bm, C, Qx, Qy)

    assert jnp.allclose(mu_seq, mu_r, atol=1e-2, rtol=1e-2), "mu mismatch"
    assert jnp.allclose(v_seq, v_r, atol=1e-2, rtol=1e-2), "V mismatch"
    assert jnp.allclose(y_seq, y_r, atol=1e-2, rtol=1e-2), "ypred mismatch"
    assert jnp.allclose(vy_seq, vy_r, atol=1e-2, rtol=1e-2), "Vy mismatch"
    assert jnp.abs(logp - logp_r) < 1e-2, "logp mismatch"

    print("KERNEL_OK")
</pallas_src>

<mosaic_0001>
module attributes {stable_mosaic.version = 11 : i64} {
  func.func @_kalman_kernel(%arg0: i32, %arg1: i32, %arg2: memref<16x16xf32, #tpu.memory_space<vmem>>, %arg3: memref<8x16xf32, #tpu.memory_space<vmem>>, %arg4: memref<8x8xf32, #tpu.memory_space<vmem>>, %arg5: memref<8x8xf32, #tpu.memory_space<vmem>>, %arg6: memref<8x8xf32, #tpu.memory_space<vmem>>, %arg7: memref<8x8xf32, #tpu.memory_space<vmem>>, %arg8: memref<16x128xf32, #tpu.memory_space<vmem>>, %arg9: memref<8x128xf32, #tpu.memory_space<vmem>>, %arg10: memref<6x16x128xf32, #tpu.memory_space<vmem>>, %arg11: memref<8x128xf32, #tpu.memory_space<vmem>>, %arg12: memref<16x128xf32, #tpu.memory_space<vmem>>, %arg13: memref<6x32x128xf32, #tpu.memory_space<vmem>>, %arg14: memref<8x128xf32, #tpu.memory_space<vmem>>, %arg15: memref<8x128xf32, #tpu.memory_space<vmem>>, %arg16: memref<16x128xf32, #tpu.memory_space<vmem>>) attributes {dimension_semantics = [#tpu.dimension_semantics<parallel>, #tpu.dimension_semantics<arbitrary>], iteration_bounds = array<i64: 1, 1>, scalar_prefetch = 0 : i64, scratch_operands = 2 : i64, tpu.core_type = #tpu.core_type<tc>, window_params = [{pipeline_mode = #tpu.pipeline_mode<synchronous>, transform_indices = @transform_0, window_bounds = array<i64: 16, 16>}, {pipeline_mode = #tpu.pipeline_mode<synchronous>, transform_indices = @transform_1, window_bounds = array<i64: 8, 16>}, {pipeline_mode = #tpu.pipeline_mode<synchronous>, transform_indices = @transform_2, window_bounds = array<i64: 8, 8>}, {pipeline_mode = #tpu.pipeline_mode<synchronous>, transform_indices = @transform_3, window_bounds = array<i64: 8, 8>}, {pipeline_mode = #tpu.pipeline_mode<synchronous>, transform_indices = @transform_4, window_bounds = array<i64: 8, 8>}, {pipeline_mode = #tpu.pipeline_mode<synchronous>, transform_indices = @transform_5, window_bounds = array<i64: 8, 8>}, {pipeline_mode = #tpu.pipeline_mode<synchronous>, transform_indices = @transform_6, window_bounds = array<i64: 16, 128>}, {pipeline_mode = #tpu.pipeline_mode<synchronous>, transform_indices = @transform_7, window_bounds = array<i64: 8, 128>}, {transform_indices = @transform_8, window_bounds = array<i64: 6, 16, 128>}, {transform_indices = @transform_9, window_bounds = array<i64: 8, 128>}, {transform_indices = @transform_10, window_bounds = array<i64: 16, 128>}, {transform_indices = @transform_11, window_bounds = array<i64: 6, 32, 128>}, {transform_indices = @transform_12, window_bounds = array<i64: 8, 128>}]} {
    %c0 = arith.constant 0 : index
    %c0_0 = arith.constant 0 : index
    %0 = vector.load %arg2[%c0, %c0_0] : memref<16x16xf32, #tpu.memory_space<vmem>>, vector<16x16xf32>
    %c0_1 = arith.constant 0 : index
    %c0_2 = arith.constant 0 : index
    %1 = vector.load %arg3[%c0_1, %c0_2] : memref<8x16xf32, #tpu.memory_space<vmem>>, vector<8x16xf32>
    %c0_3 = arith.constant 0 : index
    %c0_4 = arith.constant 0 : index
    %2 = vector.load %arg4[%c0_3, %c0_4] : memref<8x8xf32, #tpu.memory_space<vmem>>, vector<8x8xf32>
    %c0_5 = arith.constant 0 : index
    %c0_6 = arith.constant 0 : index
    %3 = vector.load %arg5[%c0_5, %c0_6] : memref<8x8xf32, #tpu.memory_space<vmem>>, vector<8x8xf32>
    %c0_7 = arith.constant 0 : index
    %c0_8 = arith.constant 0 : index
    %4 = vector.load %arg6[%c0_7, %c0_8] : memref<8x8xf32, #tpu.memory_space<vmem>>, vector<8x8xf32>
    %c0_9 = arith.constant 0 : index
    %c0_10 = arith.constant 0 : index
    %5 = vector.load %arg7[%c0_9, %c0_10] : memref<8x8xf32, #tpu.memory_space<vmem>>, vector<8x8xf32>
    %c0_11 = arith.constant 0 : index
    %c0_12 = arith.constant 0 : index
    %6 = vector.load %arg8[%c0_11, %c0_12] : memref<16x128xf32, #tpu.memory_space<vmem>>, vector<16x128xf32>
    %c0_13 = arith.constant 0 : index
    %c0_14 = arith.constant 0 : index
    %7 = vector.load %arg9[%c0_13, %c0_14] : memref<8x128xf32, #tpu.memory_space<vmem>>, vector<8x128xf32>
    %cst = arith.constant 0.000000e+00 : f32
    %8 = vector.broadcast %cst : f32 to vector<4x128xf32>
    %c0_i32 = arith.constant 0 : i32
    %9 = arith.cmpi eq, %arg1, %c0_i32 : i32
    %10 = arith.extui %9 : i1 to i32
    %c0_i32_15 = arith.constant 0 : i32
    %11 = arith.cmpi ne, %10, %c0_i32_15 : i32
    scf.if %11 {
      %c0_34 = arith.constant 0 : index
      %c0_35 = arith.constant 0 : index
      %25 = vector.load %arg12[%c0_34, %c0_35] : memref<16x128xf32, #tpu.memory_space<vmem>>, vector<16x128xf32>
      %c0_36 = arith.constant 0 : index
      %c0_37 = arith.constant 0 : index
      %26 = vector.load %arg11[%c0_36, %c0_37] : memref<8x128xf32, #tpu.memory_space<vmem>>, vector<8x128xf32>
      %c0_38 = arith.constant 0 : index
      %c0_39 = arith.constant 0 : index
      %c0_40 = arith.constant 0 : index
      %27 = vector.load %arg10[%c0_38, %c0_39, %c0_40] : memref<6x16x128xf32, #tpu.memory_space<vmem>>, vector<1x8x128xf32>
      %28 = vector.shape_cast %27 : vector<1x8x128xf32> to vector<8x128xf32>
      %cst_41 = arith.constant dense<0.000000e+00> : vector<8x128xf32>
      %29 = tpu.matmul %1, %25, %cst_41 {dimension_numbers = #tpu.dot_dimension_numbers<[1], [0], [0], [1], [0, 0, 1, 1], [], []>, precision = #tpu.contract_precision<fp32>} : vector<8x16xf32>, vector<16x128xf32>, vector<8x128xf32> -> vector<8x128xf32>
      %cst_42 = arith.constant dense<0.000000e+00> : vector<8x128xf32>
      %30 = tpu.matmul %2, %29, %cst_42 {dimension_numbers = #tpu.dot_dimension_numbers<[1], [0], [0], [1], [0, 0, 1, 1], [], []>, precision = #tpu.contract_precision<fp32>} : vector<8x8xf32>, vector<8x128xf32>, vector<8x128xf32> -> vector<8x128xf32>
      %31 = arith.addf %30, %7 : vector<8x128xf32>
      %32 = vector.extract_strided_slice %31 {offsets = [0, 0], sizes = [1, 128], strides = [1, 1]} : vector<8x128xf32> to vector<1x128xf32>
      %33 = vector.extract_strided_slice %31 {offsets = [1, 0], sizes = [1, 128], strides = [1, 1]} : vector<8x128xf32> to vector<1x128xf32>
      %34 = vector.extract_strided_slice %31 {offsets = [2, 0], sizes = [1, 128], strides = [1, 1]} : vector<8x128xf32> to vector<1x128xf32>
      %35 = vector.extract_strided_slice %31 {offsets = [3, 0], sizes = [1, 128], strides = [1, 1]} : vector<8x128xf32> to vector<1x128xf32>
      %36 = arith.mulf %32, %35 : vector<1x128xf32>
      %37 = arith.mulf %33, %34 : vector<1x128xf32>
      %38 = arith.subf %36, %37 : vector<1x128xf32>
      %cst_43 = arith.constant 1.000000e+00 : f32
      %39 = vector.broadcast %cst_43 : f32 to vector<1x128xf32>
      %40 = arith.divf %39, %38 : vector<1x128xf32>
      %41 = vector.extract_strided_slice %29 {offsets = [0, 0], sizes = [4, 128], strides = [1, 1]} : vector<8x128xf32> to vector<4x128xf32>
      %42 = vector.extract_strided_slice %29 {offsets = [4, 0], sizes = [4, 128], strides = [1, 1]} : vector<8x128xf32> to vector<4x128xf32>
      %43 = vector.broadcast %35 : vector<1x128xf32> to vector<4x128xf32>
      %44 = arith.mulf %41, %43 : vector<4x128xf32>
      %45 = vector.broadcast %34 : vector<1x128xf32> to vector<4x128xf32>
      %46 = arith.mulf %42, %45 : vector<4x128xf32>
      %47 = arith.subf %44, %46 : vector<4x128xf32>
      %48 = vector.broadcast %40 : vector<1x128xf32> to vector<4x128xf32>
      %49 = arith.mulf %47, %48 : vector<4x128xf32>
      %50 = vector.broadcast %32 : vector<1x128xf32> to vector<4x128xf32>
      %51 = arith.mulf %42, %50 : vector<4x128xf32>
      %52 = vector.broadcast %33 : vector<1x128xf32> to vector<4x128xf32>
      %53 = arith.mulf %41, %52 : vector<4x128xf32>
      %54 = arith.subf %51, %53 : vector<4x128xf32>
      %55 = vector.broadcast %40 : vector<1x128xf32> to vector<4x128xf32>
      %56 = arith.mulf %54, %55 : vector<4x128xf32>
      %cst_44 = arith.constant dense<0.000000e+00> : vector<8x128xf32>
      %57 = tpu.matmul %5, %26, %cst_44 {dimension_numbers = #tpu.dot_dimension_numbers<[1], [0], [0], [1], [0, 0, 1, 1], [], []>, precision = #tpu.contract_precision<fp32>} : vector<8x8xf32>, vector<8x128xf32>, vector<8x128xf32> -> vector<8x128xf32>
      %58 = arith.subf %28, %57 : vector<8x128xf32>
      %59 = vector.extract_strided_slice %58 {offsets = [0, 0], sizes = [1, 128], strides = [1, 1]} : vector<8x128xf32> to vector<1x128xf32>
      %60 = vector.extract_strided_slice %58 {offsets = [1, 0], sizes = [1, 128], strides = [1, 1]} : vector<8x128xf32> to vector<1x128xf32>
      %61 = vector.extract_strided_slice %26 {offsets = [0, 0], sizes = [4, 128], strides = [1, 1]} : vector<8x128xf32> to vector<4x128xf32>
      %62 = vector.broadcast %59 : vector<1x128xf32> to vector<4x128xf32>
      %63 = arith.mulf %49, %62 : vector<4x128xf32>
      %64 = arith.addf %61, %63 : vector<4x128xf32>
      %65 = vector.broadcast %60 : vector<1x128xf32> to vector<4x128xf32>
      %66 = arith.mulf %56, %65 : vector<4x128xf32>
      %67 = arith.addf %64, %66 : vector<4x128xf32>
      %68 = vector.extract_strided_slice %25 {offsets = [0, 0], sizes = [4, 128], strides = [1, 1]} : vector<16x128xf32> to vector<4x128xf32>
      %69 = vector.extract_strided_slice %49 {offsets = [0, 0], sizes = [1, 128], strides = [1, 1]} : vector<4x128xf32> to vector<1x128xf32>
      %70 = vector.broadcast %69 : vector<1x128xf32> to vector<4x128xf32>
      %71 = arith.mulf %70, %41 : vector<4x128xf32>
      %72 = arith.subf %68, %71 : vector<4x128xf32>
      %73 = vector.extract_strided_slice %56 {offsets = [0, 0], sizes = [1, 128], strides = [1, 1]} : vector<4x128xf32> to vector<1x128xf32>
      %74 = vector.broadcast %73 : vector<1x128xf32> to vector<4x128xf32>
      %75 = arith.mulf %74, %42 : vector<4x128xf32>
      %76 = arith.subf %72, %75 : vector<4x128xf32>
      %77 = vector.extract_strided_slice %25 {offsets = [4, 0], sizes = [4, 128], strides = [1, 1]} : vector<16x128xf32> to vector<4x128xf32>
      %78 = vector.extract_strided_slice %49 {offsets = [1, 0], sizes = [1, 128], strides = [1, 1]} : vector<4x128xf32> to vector<1x128xf32>
      %79 = vector.broadcast %78 : vector<1x128xf32> to vector<4x128xf32>
      %80 = arith.mulf %79, %41 : vector<4x128xf32>
      %81 = arith.subf %77, %80 : vector<4x128xf32>
      %82 = vector.extract_strided_slice %56 {offsets = [1, 0], sizes = [1, 128], strides = [1, 1]} : vector<4x128xf32> to vector<1x128xf32>
      %83 = vector.broadcast %82 : vector<1x128xf32> to vector<4x128xf32>
      %84 = arith.mulf %83, %42 : vector<4x128xf32>
      %85 = arith.subf %81, %84 : vector<4x128xf32>
      %86 = vector.extract_strided_slice %25 {offsets = [8, 0], sizes = [4, 128], strides = [1, 1]} : vector<16x128xf32> to vector<4x128xf32>
      %87 = vector.extract_strided_slice %49 {offsets = [2, 0], sizes = [1, 128], strides = [1, 1]} : vector<4x128xf32> to vector<1x128xf32>
      %88 = vector.broadcast %87 : vector<1x128xf32> to vector<4x128xf32>
      %89 = arith.mulf %88, %41 : vector<4x128xf32>
      %90 = arith.subf %86, %89 : vector<4x128xf32>
      %91 = vector.extract_strided_slice %56 {offsets = [2, 0], sizes = [1, 128], strides = [1, 1]} : vector<4x128xf32> to vector<1x128xf32>
      %92 = vector.broadcast %91 : vector<1x128xf32> to vector<4x128xf32>
      %93 = arith.mulf %92, %42 : vector<4x128xf32>
      %94 = arith.subf %90, %93 : vector<4x128xf32>
      %95 = vector.extract_strided_slice %25 {offsets = [12, 0], sizes = [4, 128], strides = [1, 1]} : vector<16x128xf32> to vector<4x128xf32>
      %96 = vector.extract_strided_slice %49 {offsets = [3, 0], sizes = [1, 128], strides = [1, 1]} : vector<4x128xf32> to vector<1x128xf32>
      %97 = vector.broadcast %96 : vector<1x128xf32> to vector<4x128xf32>
      %98 = arith.mulf %97, %41 : vector<4x128xf32>
      %99 = arith.subf %95, %98 : vector<4x128xf32>
      %100 = vector.extract_strided_slice %56 {offsets = [3, 0], sizes = [1, 128], strides = [1, 1]} : vector<4x128xf32> to vector<1x128xf32>
      %101 = vector.broadcast %100 : vector<1x128xf32> to vector<4x128xf32>
      %102 = arith.mulf %101, %42 : vector<4x128xf32>
      %103 = arith.subf %99, %102 : vector<4x128xf32>
      %104 = tpu.concatenate %76, %85, %94, %103 in 0 : vector<4x128xf32>, vector<4x128xf32>, vector<4x128xf32>, vector<4x128xf32> -> vector<16x128xf32>
      %105 = arith.mulf %35, %59 : vector<1x128xf32>
      %106 = arith.mulf %105, %59 : vector<1x128xf32>
      %107 = arith.addf %33, %34 : vector<1x128xf32>
      %108 = arith.mulf %107, %59 : vector<1x128xf32>
      %109 = arith.mulf %108, %60 : vector<1x128xf32>
      %110 = arith.subf %106, %109 : vector<1x128xf32>
      %111 = arith.mulf %32, %60 : vector<1x128xf32>
      %112 = arith.mulf %111, %60 : vector<1x128xf32>
      %113 = arith.addf %110, %112 : vector<1x128xf32>
      %114 = arith.mulf %113, %40 : vector<1x128xf32>
      %115 = math.log %38 : vector<1x128xf32>
      %c0_45 = arith.constant 0 : index
      %c0_46 = arith.constant 0 : index
      %c0_47 = arith.constant 0 : index
      %116 = vector.load %arg13[%c0_45, %c0_46, %c0_47] : memref<6x32x128xf32, #tpu.memory_space<vmem>>, vector<1x4x128xf32>
      %117 = vector.shape_cast %116 : vector<1x4x128xf32> to vector<4x128xf32>
      %118 = vector.shape_cast %67 : vector<4x128xf32> to vector<1x4x128xf32>
      tpu.vector_store %arg13[%c0_45, %c0_46, %c0_47], %118 {strides = array<i32>} : memref<6x32x128xf32, #tpu.memory_space<vmem>>, vector<1x4x128xf32>,
      %119 = vector.extract_strided_slice %57 {offsets = [0, 0], sizes = [2, 128], strides = [1, 1]} : vector<8x128xf32> to vector<2x128xf32>
      %c0_48 = arith.constant 0 : index
      %c4 = arith.constant 4 : index
      %c0_49 = arith.constant 0 : index
      %120 = vector.load %arg13[%c0_48, %c4, %c0_49] : memref<6x32x128xf32, #tpu.memory_space<vmem>>, vector<1x2x128xf32>
      %121 = vector.shape_cast %120 : vector<1x2x128xf32> to vector<2x128xf32>
      %122 = vector.shape_cast %119 : vector<2x128xf32> to vector<1x2x128xf32>
      tpu.vector_store %arg13[%c0_48, %c4, %c0_49], %122 {strides = array<i32>} : memref<6x32x128xf32, #tpu.memory_space<vmem>>, vector<1x2x128xf32>,
      %c0_50 = arith.constant 0 : index
      %c8 = arith.constant 8 : index
      %c0_51 = arith.constant 0 : index
      %123 = vector.load %arg13[%c0_50, %c8, %c0_51] : memref<6x32x128xf32, #tpu.memory_space<vmem>>, vector<1x16x128xf32>
      %124 = vector.shape_cast %123 : vector<1x16x128xf32> to vector<16x128xf32>
      %125 = vector.shape_cast %104 : vector<16x128xf32> to vector<1x16x128xf32>
      tpu.vector_store %arg13[%c0_50, %c8, %c0_51], %125 {strides = array<i32>} : memref<6x32x128xf32, #tpu.memory_space<vmem>>, vector<1x16x128xf32>,
      %126 = vector.extract_strided_slice %31 {offsets = [0, 0], sizes = [4, 128], strides = [1, 1]} : vector<8x128xf32> to vector<4x128xf32>
      %c0_52 = arith.constant 0 : index
      %c24 = arith.constant 24 : index
      %c0_53 = arith.constant 0 : index
      %127 = vector.load %arg13[%c0_52, %c24, %c0_53] : memref<6x32x128xf32, #tpu.memory_space<vmem>>, vector<1x4x128xf32>
      %128 = vector.shape_cast %127 : vector<1x4x128xf32> to vector<4x128xf32>
      %129 = vector.shape_cast %126 : vector<4x128xf32> to vector<1x4x128xf32>
      tpu.vector_store %arg13[%c0_52, %c24, %c0_53], %129 {strides = array<i32>} : memref<6x32x128xf32, #tpu.memory_space<vmem>>, vector<1x4x128xf32>,
      %130 = tpu.concatenate %67, %8 in 0 : vector<4x128xf32>, vector<4x128xf32> -> vector<8x128xf32>
      %c0_54 = arith.constant 0 : index
      %c0_55 = arith.constant 0 : index
      %131 = vector.load %arg15[%c0_54, %c0_55] : memref<8x128xf32, #tpu.memory_space<vmem>>, vector<8x128xf32>
      tpu.vector_store %arg15[%c0_54, %c0_55], %130 {strides = array<i32>} : memref<8x128xf32, #tpu.memory_space<vmem>>, vector<8x128xf32>,
      %c0_56 = arith.constant 0 : index
      %c0_57 = arith.constant 0 : index
      %132 = vector.load %arg16[%c0_56, %c0_57] : memref<16x128xf32, #tpu.memory_space<vmem>>, vector<16x128xf32>
      tpu.vector_store %arg16[%c0_56, %c0_57], %104 {strides = array<i32>} : memref<16x128xf32, #tpu.memory_space<vmem>>, vector<16x128xf32>,
      %c0_58 = arith.constant 0 : index
      %c0_59 = arith.constant 0 : index
      %133 = vector.load %arg14[%c0_58, %c0_59] : memref<8x128xf32, #tpu.memory_space<vmem>>, vector<1x128xf32>
      tpu.vector_store %arg14[%c0_58, %c0_59], %114 {strides = array<i32>} : memref<8x128xf32, #tpu.memory_space<vmem>>, vector<1x128xf32>,
      %c1_60 = arith.constant 1 : index
      %c0_61 = arith.constant 0 : index
      %134 = vector.load %arg14[%c1_60, %c0_61] : memref<8x128xf32, #tpu.memory_space<vmem>>, vector<1x128xf32>
      tpu.vector_store %arg14[%c1_60, %c0_61], %115 {strides = array<i32>} : memref<8x128xf32, #tpu.memory_space<vmem>>, vector<1x128xf32>,
    } else {
    }
    %c0_i32_16 = arith.constant 0 : i32
    %12 = arith.cmpi eq, %arg1, %c0_i32_16 : i32
    %c1_i32 = arith.constant 1 : i32
    %c0_i32_17 = arith.constant 0 : i32
    %13 = arith.select %12, %c1_i32, %c0_i32_17 : i32
    %c0_18 = arith.constant 0 : index
    %c0_19 = arith.constant 0 : index
    %14 = vector.load %arg15[%c0_18, %c0_19] : memref<8x128xf32, #tpu.memory_space<vmem>>, vector<8x128xf32>
    %c0_20 = arith.constant 0 : index
    %c0_21 = arith.constant 0 : index
    %15 = vector.load %arg16[%c0_20, %c0_21] : memref<16x128xf32, #tpu.memory_space<vmem>>, vector<16x128xf32>
    %c0_22 = arith.constant 0 : index
    %c0_23 = arith.constant 0 : index
    %16 = vector.load %arg14[%c0_22, %c0_23] : memref<8x128xf32, #tpu.memory_space<vmem>>, vector<1x128xf32>
    %c1 = arith.constant 1 : index
    %c0_24 = arith.constant 0 : index
    %17 = vector.load %arg14[%c1, %c0_24] : memref<8x128xf32, #tpu.memory_space<vmem>>, vector<1x128xf32>
    %c6_i32 = arith.constant 6 : i32
    %18 = arith.subi %c6_i32, %13 : i32
    %19 = arith.addi %13, %18 : i32
    %c1_i32_25 = arith.constant 1 : i32
    %20:4 = scf.for %arg17 = %13 to %19 step %c1_i32_25 iter_args(%arg18 = %14, %arg19 = %15, %arg20 = %16, %arg21 = %17) -> (vector<8x128xf32>, vector<16x128xf32>, vector<1x128xf32>, vector<1x128xf32>)  : i32 {
      %25 = arith.index_cast %arg17 : i32 to index
      %c0_34 = arith.constant 0 : index
      %c0_35 = arith.constant 0 : index
      %26 = vector.load %arg10[%25, %c0_34, %c0_35] : memref<6x16x128xf32, #tpu.memory_space<vmem>>, vector<1x16x128xf32>
      %27 = vector.shape_cast %26 : vector<1x16x128xf32> to vector<16x128xf32>
      %28 = vector.extract_strided_slice %27 {offsets = [0, 0], sizes = [8, 128], strides = [1, 1]} : vector<16x128xf32> to vector<8x128xf32>
      %29 = vector.extract_strided_slice %27 {offsets = [8, 0], sizes = [8, 128], strides = [1, 1]} : vector<16x128xf32> to vector<8x128xf32>
      %cst_36 = arith.constant dense<0.000000e+00> : vector<16x128xf32>
      %30 = tpu.matmul %0, %arg19, %cst_36 {dimension_numbers = #tpu.dot_dimension_numbers<[1], [0], [0], [1], [0, 0, 1, 1], [], []>, precision = #tpu.contract_precision<fp32>} : vector<16x16xf32>, vector<16x128xf32>, vector<16x128xf32> -> vector<16x128xf32>
      %31 = arith.addf %30, %6 : vector<16x128xf32>
      %cst_37 = arith.constant dense<0.000000e+00> : vector<8x128xf32>
      %32 = tpu.matmul %3, %arg18, %cst_37 {dimension_numbers = #tpu.dot_dimension_numbers<[1], [0], [0], [1], [0, 0, 1, 1], [], []>, precision = #tpu.contract_precision<fp32>} : vector<8x8xf32>, vector<8x128xf32>, vector<8x128xf32> -> vector<8x128xf32>
      %cst_38 = arith.constant dense<0.000000e+00> : vector<8x128xf32>
      %33 = tpu.matmul %4, %29, %cst_38 {dimension_numbers = #tpu.dot_dimension_numbers<[1], [0], [0], [1], [0, 0, 1, 1], [], []>, precision = #tpu.contract_precision<fp32>} : vector<8x8xf32>, vector<8x128xf32>, vector<8x128xf32> -> vector<8x128xf32>
      %34 = arith.addf %32, %33 : vector<8x128xf32>
      %cst_39 = arith.constant dense<0.000000e+00> : vector<8x128xf32>
      %35 = tpu.matmul %1, %31, %cst_39 {dimension_numbers = #tpu.dot_dimension_numbers<[1], [0], [0], [1], [0, 0, 1, 1], [], []>, precision = #tpu.contract_precision<fp32>} : vector<8x16xf32>, vector<16x128xf32>, vector<8x128xf32> -> vector<8x128xf32>
      %cst_40 = arith.constant dense<0.000000e+00> : vector<8x128xf32>
      %36 = tpu.matmul %2, %35, %cst_40 {dimension_numbers = #tpu.dot_dimension_numbers<[1], [0], [0], [1], [0, 0, 1, 1], [], []>, precision = #tpu.contract_precision<fp32>} : vector<8x8xf32>, vector<8x128xf32>, vector<8x128xf32> -> vector<8x128xf32>
      %37 = arith.addf %36, %7 : vector<8x128xf32>
      %38 = vector.extract_strided_slice %37 {offsets = [0, 0], sizes = [1, 128], strides = [1, 1]} : vector<8x128xf32> to vector<1x128xf32>
      %39 = vector.extract_strided_slice %37 {offsets = [1, 0], sizes = [1, 128], strides = [1, 1]} : vector<8x128xf32> to vector<1x128xf32>
      %40 = vector.extract_strided_slice %37 {offsets = [2, 0], sizes = [1, 128], strides = [1, 1]} : vector<8x128xf32> to vector<1x128xf32>
      %41 = vector.extract_strided_slice %37 {offsets = [3, 0], sizes = [1, 128], strides = [1, 1]} : vector<8x128xf32> to vector<1x128xf32>
      %42 = arith.mulf %38, %41 : vector<1x128xf32>
      %43 = arith.mulf %39, %40 : vector<1x128xf32>
      %44 = arith.subf %42, %43 : vector<1x128xf32>
      %cst_41 = arith.constant 1.000000e+00 : f32
      %45 = vector.broadcast %cst_41 : f32 to vector<1x128xf32>
      %46 = arith.divf %45, %44 : vector<1x128xf32>
      %47 = vector.extract_strided_slice %35 {offsets = [0, 0], sizes = [4, 128], strides = [1, 1]} : vector<8x128xf32> to vector<4x128xf32>
      %48 = vector.extract_strided_slice %35 {offsets = [4, 0], sizes = [4, 128], strides = [1, 1]} : vector<8x128xf32> to vector<4x128xf32>
      %49 = vector.broadcast %41 : vector<1x128xf32> to vector<4x128xf32>
      %50 = arith.mulf %47, %49 : vector<4x128xf32>
      %51 = vector.broadcast %40 : vector<1x128xf32> to vector<4x128xf32>
      %52 = arith.mulf %48, %51 : vector<4x128xf32>
      %53 = arith.subf %50, %52 : vector<4x128xf32>
      %54 = vector.broadcast %46 : vector<1x128xf32> to vector<4x128xf32>
      %55 = arith.mulf %53, %54 : vector<4x128xf32>
      %56 = vector.broadcast %38 : vector<1x128xf32> to vector<4x128xf32>
      %57 = arith.mulf %48, %56 : vector<4x128xf32>
      %58 = vector.broadcast %39 : vector<1x128xf32> to vector<4x128xf32>
      %59 = arith.mulf %47, %58 : vector<4x128xf32>
      %60 = arith.subf %57, %59 : vector<4x128xf32>
      %61 = vector.broadcast %46 : vector<1x128xf32> to vector<4x128xf32>
      %62 = arith.mulf %60, %61 : vector<4x128xf32>
      %cst_42 = arith.constant dense<0.000000e+00> : vector<8x128xf32>
      %63 = tpu.matmul %5, %34, %cst_42 {dimension_numbers = #tpu.dot_dimension_numbers<[1], [0], [0], [1], [0, 0, 1, 1], [], []>, precision = #tpu.contract_precision<fp32>} : vector<8x8xf32>, vector<8x128xf32>, vector<8x128xf32> -> vector<8x128xf32>
      %64 = arith.subf %28, %63 : vector<8x128xf32>
      %65 = vector.extract_strided_slice %64 {offsets = [0, 0], sizes = [1, 128], strides = [1, 1]} : vector<8x128xf32> to vector<1x128xf32>
      %66 = vector.extract_strided_slice %64 {offsets = [1, 0], sizes = [1, 128], strides = [1, 1]} : vector<8x128xf32> to vector<1x128xf32>
      %67 = vector.extract_strided_slice %34 {offsets = [0, 0], sizes = [4, 128], strides = [1, 1]} : vector<8x128xf32> to vector<4x128xf32>
      %68 = vector.broadcast %65 : vector<1x128xf32> to vector<4x128xf32>
      %69 = arith.mulf %55, %68 : vector<4x128xf32>
      %70 = arith.addf %67, %69 : vector<4x128xf32>
      %71 = vector.broadcast %66 : vector<1x128xf32> to vector<4x128xf32>
      %72 = arith.mulf %62, %71 : vector<4x128xf32>
      %73 = arith.addf %70, %72 : vector<4x128xf32>
      %74 = vector.extract_strided_slice %31 {offsets = [0, 0], sizes = [4, 128], strides = [1, 1]} : vector<16x128xf32> to vector<4x128xf32>
      %75 = vector.extract_strided_slice %55 {offsets = [0, 0], sizes = [1, 128], strides = [1, 1]} : vector<4x128xf32> to vector<1x128xf32>
      %76 = vector.broadcast %75 : vector<1x128xf32> to vector<4x128xf32>
      %77 = arith.mulf %76, %47 : vector<4x128xf32>
      %78 = arith.subf %74, %77 : vector<4x128xf32>
      %79 = vector.extract_strided_slice %62 {offsets = [0, 0], sizes = [1, 128], strides = [1, 1]} : vector<4x128xf32> to vector<1x128xf32>
      %80 = vector.broadcast %79 : vector<1x128xf32> to vector<4x128xf32>
      %81 = arith.mulf %80, %48 : vector<4x128xf32>
      %82 = arith.subf %78, %81 : vector<4x128xf32>
      %83 = vector.extract_strided_slice %31 {offsets = [4, 0], sizes = [4, 128], strides = [1, 1]} : vector<16x128xf32> to vector<4x128xf32>
      %84 = vector.extract_strided_slice %55 {offsets = [1, 0], sizes = [1, 128], strides = [1, 1]} : vector<4x128xf32> to vector<1x128xf32>
      %85 = vector.broadcast %84 : vector<1x128xf32> to vector<4x128xf32>
      %86 = arith.mulf %85, %47 : vector<4x128xf32>
      %87 = arith.subf %83, %86 : vector<4x128xf32>
      %88 = vector.extract_strided_slice %62 {offsets = [1, 0], sizes = [1, 128], strides = [1, 1]} : vector<4x128xf32> to vector<1x128xf32>
      %89 = vector.broadcast %88 : vector<1x128xf32> to vector<4x128xf32>
      %90 = arith.mulf %89, %48 : vector<4x128xf32>
      %91 = arith.subf %87, %90 : vector<4x128xf32>
      %92 = vector.extract_strided_slice %31 {offsets = [8, 0], sizes = [4, 128], strides = [1, 1]} : vector<16x128xf32> to vector<4x128xf32>
      %93 = vector.extract_strided_slice %55 {offsets = [2, 0], sizes = [1, 128], strides = [1, 1]} : vector<4x128xf32> to vector<1x128xf32>
      %94 = vector.broadcast %93 : vector<1x128xf32> to vector<4x128xf32>
      %95 = arith.mulf %94, %47 : vector<4x128xf32>
      %96 = arith.subf %92, %95 : vector<4x128xf32>
      %97 = vector.extract_strided_slice %62 {offsets = [2, 0], sizes = [1, 128], strides = [1, 1]} : vector<4x128xf32> to vector<1x128xf32>
      %98 = vector.broadcast %97 : vector<1x128xf32> to vector<4x128xf32>
      %99 = arith.mulf %98, %48 : vector<4x128xf32>
      %100 = arith.subf %96, %99 : vector<4x128xf32>
      %101 = vector.extract_strided_slice %31 {offsets = [12, 0], sizes = [4, 128], strides = [1, 1]} : vector<16x128xf32> to vector<4x128xf32>
      %102 = vector.extract_strided_slice %55 {offsets = [3, 0], sizes = [1, 128], strides = [1, 1]} : vector<4x128xf32> to vector<1x128xf32>
      %103 = vector.broadcast %102 : vector<1x128xf32> to vector<4x128xf32>
      %104 = arith.mulf %103, %47 : vector<4x128xf32>
      %105 = arith.subf %101, %104 : vector<4x128xf32>
      %106 = vector.extract_strided_slice %62 {offsets = [3, 0], sizes = [1, 128], strides = [1, 1]} : vector<4x128xf32> to vector<1x128xf32>
      %107 = vector.broadcast %106 : vector<1x128xf32> to vector<4x128xf32>
      %108 = arith.mulf %107, %48 : vector<4x128xf32>
      %109 = arith.subf %105, %108 : vector<4x128xf32>
      %110 = tpu.concatenate %82, %91, %100, %109 in 0 : vector<4x128xf32>, vector<4x128xf32>, vector<4x128xf32>, vector<4x128xf32> -> vector<16x128xf32>
      %111 = arith.mulf %41, %65 : vector<1x128xf32>
      %112 = arith.mulf %111, %65 : vector<1x128xf32>
      %113 = arith.addf %39, %40 : vector<1x128xf32>
      %114 = arith.mulf %113, %65 : vector<1x128xf32>
      %115 = arith.mulf %114, %66 : vector<1x128xf32>
      %116 = arith.subf %112, %115 : vector<1x128xf32>
      %117 = arith.mulf %38, %66 : vector<1x128xf32>
      %118 = arith.mulf %117, %66 : vector<1x128xf32>
      %119 = arith.addf %116, %118 : vector<1x128xf32>
      %120 = arith.mulf %119, %46 : vector<1x128xf32>
      %121 = math.log %44 : vector<1x128xf32>
      %122 = arith.index_cast %arg17 : i32 to index
      %c0_43 = arith.constant 0 : index
      %c0_44 = arith.constant 0 : index
      %123 = vector.load %arg13[%122, %c0_43, %c0_44] : memref<6x32x128xf32, #tpu.memory_space<vmem>>, vector<1x4x128xf32>
      %124 = vector.shape_cast %123 : vector<1x4x128xf32> to vector<4x128xf32>
      %125 = vector.shape_cast %73 : vector<4x128xf32> to vector<1x4x128xf32>
      tpu.vector_store %arg13[%122, %c0_43, %c0_44], %125 {strides = array<i32>} : memref<6x32x128xf32, #tpu.memory_space<vmem>>, vector<1x4x128xf32>,
      %126 = vector.extract_strided_slice %63 {offsets = [0, 0], sizes = [2, 128], strides = [1, 1]} : vector<8x128xf32> to vector<2x128xf32>
      %127 = arith.index_cast %arg17 : i32 to index
      %c4 = arith.constant 4 : index
      %c0_45 = arith.constant 0 : index
      %128 = vector.load %arg13[%127, %c4, %c0_45] : memref<6x32x128xf32, #tpu.memory_space<vmem>>, vector<1x2x128xf32>
      %129 = vector.shape_cast %128 : vector<1x2x128xf32> to vector<2x128xf32>
      %130 = vector.shape_cast %126 : vector<2x128xf32> to vector<1x2x128xf32>
      tpu.vector_store %arg13[%127, %c4, %c0_45], %130 {strides = array<i32>} : memref<6x32x128xf32, #tpu.memory_space<vmem>>, vector<1x2x128xf32>,
      %131 = arith.index_cast %arg17 : i32 to index
      %c8 = arith.constant 8 : index
      %c0_46 = arith.constant 0 : index
      %132 = vector.load %arg13[%131, %c8, %c0_46] : memref<6x32x128xf32, #tpu.memory_space<vmem>>, vector<1x16x128xf32>
      %133 = vector.shape_cast %132 : vector<1x16x128xf32> to vector<16x128xf32>
      %134 = vector.shape_cast %110 : vector<16x128xf32> to vector<1x16x128xf32>
      tpu.vector_store %arg13[%131, %c8, %c0_46], %134 {strides = array<i32>} : memref<6x32x128xf32, #tpu.memory_space<vmem>>, vector<1x16x128xf32>,
      %135 = vector.extract_strided_slice %37 {offsets = [0, 0], sizes = [4, 128], strides = [1, 1]} : vector<8x128xf32> to vector<4x128xf32>
      %136 = arith.index_cast %arg17 : i32 to index
      %c24 = arith.constant 24 : index
      %c0_47 = arith.constant 0 : index
      %137 = vector.load %arg13[%136, %c24, %c0_47] : memref<6x32x128xf32, #tpu.memory_space<vmem>>, vector<1x4x128xf32>
      %138 = vector.shape_cast %137 : vector<1x4x128xf32> to vector<4x128xf32>
      %139 = vector.shape_cast %135 : vector<4x128xf32> to vector<1x4x128xf32>
      tpu.vector_store %arg13[%136, %c24, %c0_47], %139 {strides = array<i32>} : memref<6x32x128xf32, #tpu.memory_space<vmem>>, vector<1x4x128xf32>,
      %c6_i32_48 = arith.constant 6 : i32
      %140 = arith.muli %arg1, %c6_i32_48 : i32
      %141 = arith.addi %140, %arg17 : i32
      %c6_i32_49 = arith.constant 6 : i32
      %142 = arith.cmpi slt, %141, %c6_i32_49 : i32
      %cst_50 = arith.constant 0.000000e+00 : f32
      %143 = vector.broadcast %cst_50 : f32 to vector<1x128xf32>
      %144 = arith.select %142, %120, %143 : vector<1x128xf32>
      %145 = arith.addf %arg20, %144 : vector<1x128xf32>
      %cst_51 = arith.constant 0.000000e+00 : f32
      %146 = vector.broadcast %cst_51 : f32 to vector<1x128xf32>
      %147 = arith.select %142, %121, %146 : vector<1x128xf32>
      %148 = arith.addf %arg21, %147 : vector<1x128xf32>
      %149 = tpu.concatenate %73, %8 in 0 : vector<4x128xf32>, vector<4x128xf32> -> vector<8x128xf32>
      scf.yield %149, %110, %145, %148 : vector<8x128xf32>, vector<16x128xf32>, vector<1x128xf32>, vector<1x128xf32>
    }
    %c0_26 = arith.constant 0 : index
    %c0_27 = arith.constant 0 : index
    %21 = vector.load %arg15[%c0_26, %c0_27] : memref<8x128xf32, #tpu.memory_space<vmem>>, vector<8x128xf32>
    tpu.vector_store %arg15[%c0_26, %c0_27], %20#0 {strides = array<i32>} : memref<8x128xf32, #tpu.memory_space<vmem>>, vector<8x128xf32>,
    %c0_28 = arith.constant 0 : index
    %c0_29 = arith.constant 0 : index
    %22 = vector.load %arg16[%c0_28, %c0_29] : memref<16x128xf32, #tpu.memory_space<vmem>>, vector<16x128xf32>
    tpu.vector_store %arg16[%c0_28, %c0_29], %20#1 {strides = array<i32>} : memref<16x128xf32, #tpu.memory_space<vmem>>, vector<16x128xf32>,
    %c0_30 = arith.constant 0 : index
    %c0_31 = arith.constant 0 : index
    %23 = vector.load %arg14[%c0_30, %c0_31] : memref<8x128xf32, #tpu.memory_space<vmem>>, vector<1x128xf32>
    tpu.vector_store %arg14[%c0_30, %c0_31], %20#2 {strides = array<i32>} : memref<8x128xf32, #tpu.memory_space<vmem>>, vector<1x128xf32>,
    %c1_32 = arith.constant 1 : index
    %c0_33 = arith.constant 0 : index
    %24 = vector.load %arg14[%c1_32, %c0_33] : memref<8x128xf32, #tpu.memory_space<vmem>>, vector<1x128xf32>
    tpu.vector_store %arg14[%c1_32, %c0_33], %20#3 {strides = array<i32>} : memref<8x128xf32, #tpu.memory_space<vmem>>, vector<1x128xf32>,
    return
  }
  func.func @transform_0(%arg0: i32, %arg1: i32) -> (i32, i32) {
    %c0_i32 = arith.constant 0 : i32
    %c0_i32_0 = arith.constant 0 : i32
    %c0_i32_1 = arith.constant 0 : i32
    return %c0_i32, %c0_i32_0 : i32, i32
  }
  func.func @transform_1(%arg0: i32, %arg1: i32) -> (i32, i32) {
    %c0_i32 = arith.constant 0 : i32
    %c0_i32_0 = arith.constant 0 : i32
    %c0_i32_1 = arith.constant 0 : i32
    return %c0_i32, %c0_i32_0 : i32, i32
  }
  func.func @transform_2(%arg0: i32, %arg1: i32) -> (i32, i32) {
    %c0_i32 = arith.constant 0 : i32
    %c0_i32_0 = arith.constant 0 : i32
    %c0_i32_1 = arith.constant 0 : i32
    return %c0_i32, %c0_i32_0 : i32, i32
  }
  func.func @transform_3(%arg0: i32, %arg1: i32) -> (i32, i32) {
    %c0_i32 = arith.constant 0 : i32
    %c0_i32_0 = arith.constant 0 : i32
    %c0_i32_1 = arith.constant 0 : i32
    return %c0_i32, %c0_i32_0 : i32, i32
  }
  func.func @transform_4(%arg0: i32, %arg1: i32) -> (i32, i32) {
    %c0_i32 = arith.constant 0 : i32
    %c0_i32_0 = arith.constant 0 : i32
    %c0_i32_1 = arith.constant 0 : i32
    return %c0_i32, %c0_i32_0 : i32, i32
  }
  func.func @transform_5(%arg0: i32, %arg1: i32) -> (i32, i32) {
    %c0_i32 = arith.constant 0 : i32
    %c0_i32_0 = arith.constant 0 : i32
    %c0_i32_1 = arith.constant 0 : i32
    return %c0_i32, %c0_i32_0 : i32, i32
  }
  func.func @transform_6(%arg0: i32, %arg1: i32) -> (i32, i32) {
    %c0_i32 = arith.constant 0 : i32
    %c0_i32_0 = arith.constant 0 : i32
    %c0_i32_1 = arith.constant 0 : i32
    return %c0_i32, %c0_i32_0 : i32, i32
  }
  func.func @transform_7(%arg0: i32, %arg1: i32) -> (i32, i32) {
    %c0_i32 = arith.constant 0 : i32
    %c0_i32_0 = arith.constant 0 : i32
    %c0_i32_1 = arith.constant 0 : i32
    return %c0_i32, %c0_i32_0 : i32, i32
  }
  func.func @transform_8(%arg0: i32, %arg1: i32) -> (i32, i32, i32) {
    %c0_i32 = arith.constant 0 : i32
    %c0_i32_0 = arith.constant 0 : i32
    return %arg1, %c0_i32, %arg0 : i32, i32, i32
  }
  func.func @transform_9(%arg0: i32, %arg1: i32) -> (i32, i32) {
    %c0_i32 = arith.constant 0 : i32
    %c0_i32_0 = arith.constant 0 : i32
    return %c0_i32, %arg0 : i32, i32
  }
  func.func @transform_10(%arg0: i32, %arg1: i32) -> (i32, i32) {
    %c0_i32 = arith.constant 0 : i32
    %c0_i32_0 = arith.constant 0 : i32
    return %c0_i32, %arg0 : i32, i32
  }
  func.func @transform_11(%arg0: i32, %arg1: i32) -> (i32, i32, i32) {
    %c0_i32 = arith.constant 0 : i32
    %c0_i32_0 = arith.constant 0 : i32
    return %arg1, %c0_i32, %arg0 : i32, i32, i32
  }
  func.func @transform_12(%arg0: i32, %arg1: i32) -> (i32, i32) {
    %c0_i32 = arith.constant 0 : i32
    %c0_i32_0 = arith.constant 0 : i32
    return %c0_i32, %arg0 : i32, i32
  }
}

</mosaic_0001>

<llo_original>
// kernel: tpu_custom_call.1
$region0: #{tpu_custom_call.1}
  #allocation0 [shape = 'u32[]', space=smem, size = 0x4, offset = 0x4, fixed_abs, tag = 'smem constant byte address 0x4 - core index']
  #allocation1 [shape = 'u32[144,128]{1,0:T(1,128)}', space=vmem, size = 0x12000, scoped, tag = 'internal scratch']
  #allocation2 [shape = 'f32[8,128]{1,0:T(8,128)}', space=vmem, size = 0x1000, scoped, tag = 'scratch operand']
  #allocation3 [shape = 'f32[16,128]{1,0:T(8,128)}', space=vmem, size = 0x2000, scoped, tag = 'scratch operand']
  %s0 = inlined_call_operand.hbm [shape: f32[16,16], index: 0, kind: input, shape index: {}]
  %s1 = inlined_call_operand.hbm [shape: f32[8,16], index: 1, kind: input, shape index: {}]
  %s2 = inlined_call_operand.hbm [shape: f32[8,8], index: 2, kind: input, shape index: {}]
  %s3 = inlined_call_operand.hbm [shape: f32[8,8], index: 3, kind: input, shape index: {}]
  %s4 = inlined_call_operand.hbm [shape: f32[8,8], index: 4, kind: input, shape index: {}]
  %s5 = inlined_call_operand.hbm [shape: f32[8,8], index: 5, kind: input, shape index: {}]
  %s6 = inlined_call_operand.vmem [shape: f32[16,128], index: 6, kind: input, shape index: {}]
  %s7 = inlined_call_operand.hbm [shape: f32[8,128], index: 7, kind: input, shape index: {}]
  %s8 = inlined_call_operand.hbm [shape: f32[6,16,128], index: 8, kind: input, shape index: {}]
  %s9 = inlined_call_operand.hbm [shape: f32[8,128], index: 9, kind: input, shape index: {}]
  %s10 = inlined_call_operand.vmem [shape: f32[16,128], index: 10, kind: input, shape index: {}]
  %s11 = inlined_call_operand.hbm [shape: f32[6,32,128], index: 11, kind: output, shape index: {0}]
  %s12 = inlined_call_operand.hbm [shape: f32[8,128], index: 12, kind: output, shape index: {1}]
  %13 = xla_tuple %s11, %s12
  %s14 = sld [smem:[#allocation0]]
  $region109: #{tpu_custom_call.1} parent=0
    _
  %s16 = ssub.s32 1, %s14
  %s17 = scalar_select 0, %s16, %s14
  $region1: #{tpu_custom_call.1} parent=0
    #allocation4 [shape = 'u8[8192]{0}', space=vmem, size = 0x2000, scoped, tag = 'input window, operand 0, single buffered']
    #allocation5 [shape = 's32[1]{0}', space=sflag, size = 0x4, scoped, tag = 'scoped memory for tpu_custom_call.1']
    #allocation6 [shape = 's32[1]{0}', space=sflag, size = 0x4, scoped, tag = 'scoped memory for tpu_custom_call.1']
    #allocation7 [shape = 'u8[4096]{0}', space=vmem, size = 0x1000, scoped, tag = 'input window, operand 1, single buffered']
    #allocation8 [shape = 's32[1]{0}', space=sflag, size = 0x4, scoped, tag = 'scoped memory for tpu_custom_call.1']
    #allocation9 [shape = 'u8[4096]{0}', space=vmem, size = 0x1000, scoped, tag = 'input window, operand 2, single buffered']
    #allocation10 [shape = 'u8[4096]{0}', space=vmem, size = 0x1000, scoped, tag = 'input window, operand 3, single buffered']
    #allocation11 [shape = 's32[1]{0}', space=sflag, size = 0x4, scoped, tag = 'scoped memory for tpu_custom_call.1']
    #allocation12 [shape = 'u8[4096]{0}', space=vmem, size = 0x1000, scoped, tag = 'input window, operand 4, single buffered']
    #allocation13 [shape = 'u8[4096]{0}', space=vmem, size = 0x1000, scoped, tag = 'input window, operand 5, single buffered']
    #allocation14 [shape = 's32[1]{0}', space=sflag, size = 0x4, scoped, tag = 'scoped memory for tpu_custom_call.1']
    #allocation15 [shape = 'u8[4096]{0}', space=vmem, size = 0x1000, scoped, tag = 'input window, operand 7, single buffered']
    #allocation16 [shape = 'u8[49152]{0}', space=vmem, size = 0xc000, scoped, tag = 'input window, operand 8, single buffered']
    #allocation17 [shape = 's32[1]{0}', space=sflag, size = 0x4, scoped, tag = 'scoped memory for tpu_custom_call.1']
    #allocation18 [shape = 'u8[4096]{0}', space=vmem, size = 0x1000, scoped, tag = 'input window, operand 9, single buffered']
    #allocation19 [shape = 'u8[98304]{0}', space=vmem, size = 0x18000, scoped, tag = 'output window, operand 0, single buffered']
    #allocation20 [shape = 'u8[4096]{0}', space=vmem, size = 0x1000, scoped, tag = 'output window, operand 1, single buffered']
    #allocation21 [shape = 's32[1]{0}', space=sflag, size = 0x4, scoped, tag = 'scoped memory for tpu_custom_call.1']
    %18 = vsyncpa [#allocation5], 0
    %19 = vsyncpa [#allocation8], 0
    %20 = vsyncpa [#allocation11], 0
    %21 = vsyncpa [#allocation14], 0
    %22 = vsyncpa [#allocation17], 0
    %23 = vsyncpa [#allocation6], 0
    %24 = vsyncpa [#allocation21], 0
    // Predicated region
    $region2: #{tpu_custom_call.1} parent=1 // pred_check
      _
    $region3: #{tpu_custom_call.1} parent=1 // pred_check_branch
      %26 = sbr.rel (0) target = $region5
    $region4: #{tpu_custom_call.1} parent=1 // pred_region
      %s28 = ssub.s32 256, 256
      %29 = vsyncadd [#allocation5], %s28
      %s30 = sshll.u32 [#allocation4], 4
      %s31 = int_to_ptr.vmem [resolvable:$true] %s30
      %36 = dma.hbm_to_vmem [thread:$0]  %s0, 256, %s31, [#allocation5], 128, 128, 8
    $region5: #{tpu_custom_call.1} parent=1 // pred_fallthru
      _
    // Predicated region
    $region6: #{tpu_custom_call.1} parent=1 // pred_check
      _
    $region7: #{tpu_custom_call.1} parent=1 // pred_check_branch
      %38 = sbr.rel (0) target = $region9
    $region8: #{tpu_custom_call.1} parent=1 // pred_region
      %s40 = ssub.s32 128, 128
      %41 = vsyncadd [#allocation8], %s40
      %s43 = sshll.u32 [#allocation7], 4
      %s44 = int_to_ptr.vmem [resolvable:$true] %s43
      %46 = dma.hbm_to_vmem [thread:$0]  %s1, 128, %s44, [#allocation8]
    $region9: #{tpu_custom_call.1} parent=1 // pred_fallthru
      _
    // Predicated region
    $region10: #{tpu_custom_call.1} parent=1 // pred_check
      _
    $region11: #{tpu_custom_call.1} parent=1 // pred_check_branch
      %48 = sbr.rel (0) target = $region13
    $region12: #{tpu_custom_call.1} parent=1 // pred_region
      %s50 = ssub.s32 128, 128
      %51 = vsyncadd [#allocation8], %s50
      %s53 = sshll.u32 [#allocation9], 4
      %s54 = int_to_ptr.vmem [resolvable:$true] %s53
      %56 = dma.hbm_to_vmem [thread:$0]  %s2, 128, %s54, [#allocation8]
    $region13: #{tpu_custom_call.1} parent=1 // pred_fallthru
      _
    // Predicated region
    $region14: #{tpu_custom_call.1} parent=1 // pred_check
      _
    $region15: #{tpu_custom_call.1} parent=1 // pred_check_branch
      %58 = sbr.rel (0) target = $region17
    $region16: #{tpu_custom_call.1} parent=1 // pred_region
      %s60 = ssub.s32 128, 128
      %61 = vsyncadd [#allocation11], %s60
      %s63 = sshll.u32 [#allocation10], 4
      %s64 = int_to_ptr.vmem [resolvable:$true] %s63
      %66 = dma.hbm_to_vmem [thread:$0]  %s3, 128, %s64, [#allocation11]
    $region17: #{tpu_custom_call.1} parent=1 // pred_fallthru
      _
    // Predicated region
    $region18: #{tpu_custom_call.1} parent=1 // pred_check
      _
    $region19: #{tpu_custom_call.1} parent=1 // pred_check_branch
      %68 = sbr.rel (0) target = $region21
    $region20: #{tpu_custom_call.1} parent=1 // pred_region
      %s70 = ssub.s32 128, 128
      %71 = vsyncadd [#allocation11], %s70
      %s73 = sshll.u32 [#allocation12], 4
      %s74 = int_to_ptr.vmem [resolvable:$true] %s73
      %76 = dma.hbm_to_vmem [thread:$0]  %s4, 128, %s74, [#allocation11]
    $region21: #{tpu_custom_call.1} parent=1 // pred_fallthru
      _
    // Predicated region
    $region22: #{tpu_custom_call.1} parent=1 // pred_check
      _
    $region23: #{tpu_custom_call.1} parent=1 // pred_check_branch
      %78 = sbr.rel (0) target = $region25
    $region24: #{tpu_custom_call.1} parent=1 // pred_region
      %s80 = ssub.s32 128, 128
      %81 = vsyncadd [#allocation14], %s80
      %s83 = sshll.u32 [#allocation13], 4
      %s84 = int_to_ptr.vmem [resolvable:$true] %s83
      %86 = dma.hbm_to_vmem [thread:$0]  %s5, 128, %s84, [#allocation14]
    $region25: #{tpu_custom_call.1} parent=1 // pred_fallthru
      _
    // Predicated region
    $region26: #{tpu_custom_call.1} parent=1 // pred_check
      _
    $region27: #{tpu_custom_call.1} parent=1 // pred_check_branch
      %88 = sbr.rel (0) target = $region29
    $region28: #{tpu_custom_call.1} parent=1 // pred_region
      _
    $region29: #{tpu_custom_call.1} parent=1 // pred_fallthru
      _
    // Predicated region
    $region30: #{tpu_custom_call.1} parent=1 // pred_check
      _
    $region31: #{tpu_custom_call.1} parent=1 // pred_check_branch
      %90 = sbr.rel (0) target = $region33
    $region32: #{tpu_custom_call.1} parent=1 // pred_region
      %s92 = ssub.s32 128, 128
      %93 = vsyncadd [#allocation14], %s92
      %s95 = sshll.u32 [#allocation15], 4
      %s96 = int_to_ptr.vmem [resolvable:$true] %s95
      %98 = dma.hbm_to_vmem [thread:$0]  %s7, 128, %s96, [#allocation14]
    $region33: #{tpu_custom_call.1} parent=1 // pred_fallthru
      _
    // Predicated region
    $region34: #{tpu_custom_call.1} parent=1 // pred_check
      _
    $region35: #{tpu_custom_call.1} parent=1 // pred_check_branch
      %100 = sbr.rel (0) target = $region37
    $region36: #{tpu_custom_call.1} parent=1 // pred_region
      %s102 = ssub.s32 1536, 1536
      %103 = vsyncadd [#allocation17], %s102
      %s104 = sshll.u32 [#allocation16], 4
      %s105 = int_to_ptr.vmem [resolvable:$true] %s104
      %110 = dma.hbm_to_vmem [thread:$0]  %s8, 1536, %s105, [#allocation17], 128, 128, 8
    $region37: #{tpu_custom_call.1} parent=1 // pred_fallthru
      _
    // Predicated region
    $region38: #{tpu_custom_call.1} parent=1 // pred_check
      _
    $region39: #{tpu_custom_call.1} parent=1 // pred_check_branch
      %112 = sbr.rel (0) target = $region41
    $region40: #{tpu_custom_call.1} parent=1 // pred_region
      %s114 = ssub.s32 128, 128
      %115 = vsyncadd [#allocation17], %s114
      %s117 = sshll.u32 [#allocation18], 4
      %s118 = int_to_ptr.vmem [resolvable:$true] %s117
      %120 = dma.hbm_to_vmem [thread:$0]  %s9, 128, %s118, [#allocation17]
    $region41: #{tpu_custom_call.1} parent=1 // pred_fallthru
      _
    // Predicated region
    $region42: #{tpu_custom_call.1} parent=1 // pred_check
      _
    $region43: #{tpu_custom_call.1} parent=1 // pred_check_branch
      %122 = sbr.rel (0) target = $region45
    $region44: #{tpu_custom_call.1} parent=1 // pred_region
      _
    $region45: #{tpu_custom_call.1} parent=1 // pred_fallthru
      _
    // Predicated region
    $region46: #{tpu_custom_call.1} parent=1 // pred_check
      _
    $region47: #{tpu_custom_call.1} parent=1 // pred_check_branch
      %124 = sbr.rel (0) target = $region49
    $region48: #{tpu_custom_call.1} parent=1 // pred_region
      %125 = dma.done [#allocation5], 256
    $region49: #{tpu_custom_call.1} parent=1 // pred_fallthru
      _
    // Predicated region
    $region50: #{tpu_custom_call.1} parent=1 // pred_check
      _
    $region51: #{tpu_custom_call.1} parent=1 // pred_check_branch
      %127 = sbr.rel (0) target = $region53
    $region52: #{tpu_custom_call.1} parent=1 // pred_region
      %128 = dma.done [#allocation8], 128
    $region53: #{tpu_custom_call.1} parent=1 // pred_fallthru
      _
    // Predicated region
    $region54: #{tpu_custom_call.1} parent=1 // pred_check
      _
    $region55: #{tpu_custom_call.1} parent=1 // pred_check_branch
      %130 = sbr.rel (0) target = $region57
    $region56: #{tpu_custom_call.1} parent=1 // pred_region
      %131 = dma.done [#allocation8], 128
    $region57: #{tpu_custom_call.1} parent=1 // pred_fallthru
      _
    // Predicated region
    $region58: #{tpu_custom_call.1} parent=1 // pred_check
      _
    $region59: #{tpu_custom_call.1} parent=1 // pred_check_branch
      %133 = sbr.rel (0) target = $region61
    $region60: #{tpu_custom_call.1} parent=1 // pred_region
      %134 = dma.done [#allocation11], 128
    $region61: #{tpu_custom_call.1} parent=1 // pred_fallthru
      _
    // Predicated region
    $region62: #{tpu_custom_call.1} parent=1 // pred_check
      _
    $region63: #{tpu_custom_call.1} parent=1 // pred_check_branch
      %136 = sbr.rel (0) target = $region65
    $region64: #{tpu_custom_call.1} parent=1 // pred_region
      %137 = dma.done [#allocation11], 128
    $region65: #{tpu_custom_call.1} parent=1 // pred_fallthru
      _
    // Predicated region
    $region66: #{tpu_custom_call.1} parent=1 // pred_check
      _
    $region67: #{tpu_custom_call.1} parent=1 // pred_check_branch
      %139 = sbr.rel (0) target = $region69
    $region68: #{tpu_custom_call.1} parent=1 // pred_region
      %140 = dma.done [#allocation14], 128
    $region69: #{tpu_custom_call.1} parent=1 // pred_fallthru
      _
    // Predicated region
    $region70: #{tpu_custom_call.1} parent=1 // pred_check
      _
    $region71: #{tpu_custom_call.1} parent=1 // pred_check_branch
      %142 = sbr.rel (0) target = $region73
    $region72: #{tpu_custom_call.1} parent=1 // pred_region
      %143 = dma.done [#allocation14], 128
    $region73: #{tpu_custom_call.1} parent=1 // pred_fallthru
      _
    // Predicated region
    $region74: #{tpu_custom_call.1} parent=1 // pred_check
      _
    $region75: #{tpu_custom_call.1} parent=1 // pred_check_branch
      %145 = sbr.rel (0) target = $region77
    $region76: #{tpu_custom_call.1} parent=1 // pred_region
      %146 = dma.done [#allocation17], 1536
    $region77: #{tpu_custom_call.1} parent=1 // pred_fallthru
      _
    // Predicated region
    $region78: #{tpu_custom_call.1} parent=1 // pred_check
      _
    $region79: #{tpu_custom_call.1} parent=1 // pred_check_branch
      %148 = sbr.rel (0) target = $region81
    $region80: #{tpu_custom_call.1} parent=1 // pred_region
      %149 = dma.done [#allocation17], 128
    $region81: #{tpu_custom_call.1} parent=1 // pred_fallthru
      _
    %v150 = vld [vmem:[#allocation4] sm:$0xff]
    %v151 = vld [vmem:[#allocation4 + $0x8] sm:$0xff]
    %v152 = vld [vmem:[#allocation7] sm:$0xff]
    %v153 = vld [vmem:[#allocation9] sm:$0xff]
    %v154 = vld [vmem:[#allocation10] sm:$0xff]
    %v155 = vld [vmem:[#allocation12] sm:$0xff]
    %v156 = vld [vmem:[#allocation13] sm:$0xff]
    %v157 = vld [vmem:[%s6] sm:$0xff]
    %v158 = vld [vmem:[%s6 + $0x8] sm:$0xff]
    %v159 = vld [vmem:[#allocation15] sm:$0xff]
    %p160 = scmp.eq.s32.totalorder 0, 0
    // Predicated region
    $region82: #{tpu_custom_call.1} parent=1 // pred_check
      %p161 = pneg %p160
    $region83: #{tpu_custom_call.1} parent=1 // pred_check_branch
      %163 = sbr.rel (%p161) target = $region85
    $region84: #{tpu_custom_call.1} parent=1 // pred_region
      %v164 = vld [vmem:[%s10] sm:$0xff]
      %v165 = vld [vmem:[%s10 + $0x8] sm:$0xff]
      %v166 = vld [vmem:[#allocation18] sm:$0xff]
      %v167 = vld [vmem:[#allocation16] sm:$0xff]
      %vm168 = vcmask 130048
      %v170 = vsel %vm168, %v152, 0
      %172 = vmatprep.subr.mxu0 0.0
      %v173 = vand.u32 %v164, 4294901760
      %174 = vmatpush1.msra.mxu0 %v173
      %175 = vmatprep.subr.mxu0 0.0
      %v176 = vand.u32 %v165, 4294901760
      %177 = vmatpush1.msra.mxu0 %v176
      %178 = vmatprep.subr.mxu0 0.0
      %179 = vmatpush1.msra.mxu0 0.0
      %180 = vmatprep.subr.mxu0 0.0
      %181 = vmatpush1.msra.mxu0 0.0
      %182 = vmatprep.subr.mxu0 0.0
      %183 = vmatpush1.msra.mxu0 0.0
      %184 = vmatprep.subr.mxu0 0.0
      %185 = vmatpush1.msra.mxu0 0.0
      %186 = vmatprep.subr.mxu0 0.0
      %187 = vmatpush1.msra.mxu0 0.0
      %188 = vmatprep.subr.mxu0 0.0
      %189 = vmatpush1.msra.mxu0 0.0
      %190 = vmatprep.subr.mxu0 0.0
      %191 = vmatpush1.msra.mxu0 0.0
      %192 = vmatprep.subr.mxu0 0.0
      %193 = vmatpush1.msra.mxu0 0.0
      %194 = vmatprep.subr.mxu0 0.0
      %195 = vmatpush1.msra.mxu0 0.0
      %196 = vmatprep.subr.mxu0 0.0
      %197 = vmatpush1.msra.mxu0 0.0
      %198 = vmatprep.subr.mxu0 0.0
      %199 = vmatpush1.msra.mxu0 0.0
      %200 = vmatprep.subr.mxu0 0.0
      %201 = vmatpush1.msra.mxu0 0.0
      %202 = vmatprep.subr.mxu0 0.0
      %203 = vmatpush1.msra.mxu0 0.0
      %204 = vmatprep.subr.mxu0 0.0
      %205 = vmatpush1.msra.mxu0 0.0
      %206 = vmatprep.subr.mxu0 0.0
      %207 = vmatpush1.msra.mxu0 0.0
      %208 = vmatprep.subr.mxu0 0.0
      %209 = vmatpush1.msra.mxu0 0.0
      %210 = vmatprep.subr.mxu0 0.0
      %211 = vmatpush1.msra.mxu0 0.0
      %212 = vmatprep.subr.mxu0 0.0
      %213 = vmatpush1.msra.mxu0 0.0
      %214 = vmatprep.subr.mxu0 0.0
      %215 = vmatpush1.msra.mxu0 0.0
      %216 = vmatprep.subr.mxu0 0.0
      %217 = vmatpush1.msra.mxu0 0.0
      %218 = vmatprep.subr.mxu0 0.0
      %219 = vmatpush1.msra.mxu0 0.0
      %220 = vmatprep.subr.mxu0 0.0
      %221 = vmatpush1.msra.mxu0 0.0
      %222 = vmatprep.subr.mxu0 0.0
      %223 = vmatpush1.msra.mxu0 0.0
      %224 = vmatprep.subr.mxu0 0.0
      %225 = vmatpush1.msra.mxu0 0.0
      %226 = vmatprep.subr.mxu0 0.0
      %227 = vmatpush1.msra.mxu0 0.0
      %228 = vmatprep.subr.mxu0 0.0
      %229 = vmatpush1.msra.mxu0 0.0
      %230 = vmatprep.subr.mxu0 0.0
      %231 = vmatpush1.msra.mxu0 0.0
      %232 = vmatprep.subr.mxu0 0.0
      %233 = vmatpush1.msra.mxu0 0.0
      %234 = vmatprep.subr.mxu0 0.0
      %235 = vmatpush1.msra.mxu0 0.0
      %236 = vmatprep.subr.mxu0 0.0
      %237 = vmatpush1.msra.mxu0 0.0
      %238 = vmatprep.mubr.f32.mxu0 0.0
      %v239 = vand.u32 %v170, 4294901760
      %v240 = vsub.f32 %v170, %v239
      %v241 = vand.u32 %v240, 4294901760
      %v242 = vsub.f32 %v240, %v241
      %v243 = vand.u32 %v242, 4294901760
      %244 = vmatmul.mubr.f32.gmra.mrb[0].mxu0 %v243
      %v245 = vpop.f32.mrb[0].mxu0
      %v246 = vadd.f32 0.0, %v245
      %v247 = vpop.f32.mrb[0].mxu0
      %248 = vdwg.mxu0
      %249 = vmatprep.subr.mxu0 0.0
      %v250 = vand.u32 %v164, 4294901760
      %v251 = vsub.f32 %v164, %v250
      %v252 = vand.u32 %v251, 4294901760
      %v253 = vsub.f32 %v251, %v252
      %v254 = vand.u32 %v253, 4294901760
      %255 = vmatpush1.msra.mxu0 %v254
      %256 = vmatprep.subr.mxu0 0.0
      %v257 = vand.u32 %v165, 4294901760
      %v258 = vsub.f32 %v165, %v257
      %v259 = vand.u32 %v258, 4294901760
      %v260 = vsub.f32 %v258, %v259
      %v261 = vand.u32 %v260, 4294901760
      %262 = vmatpush1.msra.mxu0 %v261
      %263 = vmatprep.subr.mxu0 0.0
      %264 = vmatpush1.msra.mxu0 0.0
      %265 = vmatprep.subr.mxu0 0.0
      %266 = vmatpush1.msra.mxu0 0.0
      %267 = vmatprep.subr.mxu0 0.0
      %268 = vmatpush1.msra.mxu0 0.0
      %269 = vmatprep.subr.mxu0 0.0
      %270 = vmatpush1.msra.mxu0 0.0
      %271 = vmatprep.subr.mxu0 0.0
      %272 = vmatpush1.msra.mxu0 0.0
      %273 = vmatprep.subr.mxu0 0.0
      %274 = vmatpush1.msra.mxu0 0.0
      %275 = vmatprep.subr.mxu0 0.0
      %276 = vmatpush1.msra.mxu0 0.0
      %277 = vmatprep.subr.mxu0 0.0
      %278 = vmatpush1.msra.mxu0 0.0
      %279 = vmatprep.subr.mxu0 0.0
      %280 = vmatpush1.msra.mxu0 0.0
      %281 = vmatprep.subr.mxu0 0.0
      %282 = vmatpush1.msra.mxu0 0.0
      %283 = vmatprep.subr.mxu0 0.0
      %284 = vmatpush1.msra.mxu0 0.0
      %285 = vmatprep.subr.mxu0 0.0
      %286 = vmatpush1.msra.mxu0 0.0
      %287 = vmatprep.subr.mxu0 0.0
      %288 = vmatpush1.msra.mxu0 0.0
      %289 = vmatprep.subr.mxu0 0.0
      %290 = vmatpush1.msra.mxu0 0.0
      %291 = vmatprep.subr.mxu0 0.0
      %292 = vmatpush1.msra.mxu0 0.0
      %293 = vmatprep.subr.mxu0 0.0
      %294 = vmatpush1.msra.mxu0 0.0
      %295 = vmatprep.subr.mxu0 0.0
      %296 = vmatpush1.msra.mxu0 0.0
      %297 = vmatprep.subr.mxu0 0.0
      %298 = vmatpush1.msra.mxu0 0.0
      %299 = vmatprep.subr.mxu0 0.0
      %300 = vmatpush1.msra.mxu0 0.0
      %301 = vmatprep.subr.mxu0 0.0
      %302 = vmatpush1.msra.mxu0 0.0
      %303 = vmatprep.subr.mxu0 0.0
      %304 = vmatpush1.msra.mxu0 0.0
      %305 = vmatprep.subr.mxu0 0.0
      %306 = vmatpush1.msra.mxu0 0.0
      %307 = vmatprep.subr.mxu0 0.0
      %308 = vmatpush1.msra.mxu0 0.0
      %309 = vmatprep.subr.mxu0 0.0
      %310 = vmatpush1.msra.mxu0 0.0
      %311 = vmatprep.subr.mxu0 0.0
      %312 = vmatpush1.msra.mxu0 0.0
      %313 = vmatprep.subr.mxu0 0.0
      %314 = vmatpush1.msra.mxu0 0.0
      %315 = vmatprep.subr.mxu0 0.0
      %316 = vmatpush1.msra.mxu0 0.0
      %317 = vmatprep.subr.mxu0 0.0
      %318 = vmatpush1.msra.mxu0 0.0
      %319 = vmatprep.subr.mxu0 0.0
      %320 = vmatpush1.msra.mxu0 0.0
      %321 = vmatprep.subr.mxu0 0.0
      %322 = vmatpush1.msra.mxu0 0.0
      %323 = vmatprep.mubr.f32.mxu0 0.0
      %v324 = vand.u32 %v170, 4294901760
      %325 = vmatmul.mubr.f32.gmra.mrb[0].mxu0 %v324
      %v326 = vpop.f32.mrb[0].mxu0
      %v327 = vadd.f32 %v246, %v326
      %v328 = vpop.f32.mrb[0].mxu0
      %329 = vdwg.mxu0
      %330 = vmatprep.subr.mxu0 0.0
      %v331 = vand.u32 %v164, 4294901760
      %v332 = vsub.f32 %v164, %v331
      %333 = vmatpush1.msra.mxu0 %v332
      %334 = vmatprep.subr.mxu0 0.0
      %v335 = vand.u32 %v165, 4294901760
      %v336 = vsub.f32 %v165, %v335
      %337 = vmatpush1.msra.mxu0 %v336
      %338 = vmatprep.subr.mxu0 0.0
      %339 = vmatpush1.msra.mxu0 0.0
      %340 = vmatprep.subr.mxu0 0.0
      %341 = vmatpush1.msra.mxu0 0.0
      %342 = vmatprep.subr.mxu0 0.0
      %343 = vmatpush1.msra.mxu0 0.0
      %344 = vmatprep.subr.mxu0 0.0
      %345 = vmatpush1.msra.mxu0 0.0
      %346 = vmatprep.subr.mxu0 0.0
      %347 = vmatpush1.msra.mxu0 0.0
      %348 = vmatprep.subr.mxu0 0.0
      %349 = vmatpush1.msra.mxu0 0.0
      %350 = vmatprep.subr.mxu0 0.0
      %351 = vmatpush1.msra.mxu0 0.0
      %352 = vmatprep.subr.mxu0 0.0
      %353 = vmatpush1.msra.mxu0 0.0
      %354 = vmatprep.subr.mxu0 0.0
      %355 = vmatpush1.msra.mxu0 0.0
      %356 = vmatprep.subr.mxu0 0.0
      %357 = vmatpush1.msra.mxu0 0.0
      %358 = vmatprep.subr.mxu0 0.0
      %359 = vmatpush1.msra.mxu0 0.0
      %360 = vmatprep.subr.mxu0 0.0
      %361 = vmatpush1.msra.mxu0 0.0
      %362 = vmatprep.subr.mxu0 0.0
      %363 = vmatpush1.msra.mxu0 0.0
      %364 = vmatprep.subr.mxu0 0.0
      %365 = vmatpush1.msra.mxu0 0.0
      %366 = vmatprep.subr.mxu0 0.0
      %367 = vmatpush1.msra.mxu0 0.0
      %368 = vmatprep.subr.mxu0 0.0
      %369 = vmatpush1.msra.mxu0 0.0
      %370 = vmatprep.subr.mxu0 0.0
      %371 = vmatpush1.msra.mxu0 0.0
      %372 = vmatprep.subr.mxu0 0.0
      %373 = vmatpush1.msra.mxu0 0.0
      %374 = vmatprep.subr.mxu0 0.0
      %375 = vmatpush1.msra.mxu0 0.0
      %376 = vmatprep.subr.mxu0 0.0
      %377 = vmatpush1.msra.mxu0 0.0
      %378 = vmatprep.subr.mxu0 0.0
      %379 = vmatpush1.msra.mxu0 0.0
      %380 = vmatprep.subr.mxu0 0.0
      %381 = vmatpush1.msra.mxu0 0.0
      %382 = vmatprep.subr.mxu0 0.0
      %383 = vmatpush1.msra.mxu0 0.0
      %384 = vmatprep.subr.mxu0 0.0
      %385 = vmatpush1.msra.mxu0 0.0
      %386 = vmatprep.subr.mxu0 0.0
      %387 = vmatpush1.msra.mxu0 0.0
      %388 = vmatprep.subr.mxu0 0.0
      %389 = vmatpush1.msra.mxu0 0.0
      %390 = vmatprep.subr.mxu0 0.0
      %391 = vmatpush1.msra.mxu0 0.0
      %392 = vmatprep.subr.mxu0 0.0
      %393 = vmatpush1.msra.mxu0 0.0
      %394 = vmatprep.subr.mxu0 0.0
      %395 = vmatpush1.msra.mxu0 0.0
      %396 = vmatprep.subr.mxu0 0.0
      %397 = vmatpush1.msra.mxu0 0.0
      %398 = vmatprep.mubr.f32.mxu0 0.0
      %v399 = vand.u32 %v170, 4294901760
      %v400 = vsub.f32 %v170, %v399
      %401 = vmatmul.mubr.f32.gmra.mrb[0].mxu0 %v400
      %v402 = vpop.f32.mrb[0].mxu0
      %v403 = vadd.f32 %v327, %v402
      %v404 = vpop.f32.mrb[0].mxu0
      %405 = vdwg.mxu0
      %406 = vmatprep.subr.mxu0 0.0
      %v407 = vand.u32 %v164, 4294901760
      %408 = vmatpush1.msra.mxu0 %v407
      %409 = vmatprep.subr.mxu0 0.0
      %v410 = vand.u32 %v165, 4294901760
      %411 = vmatpush1.msra.mxu0 %v410
      %412 = vmatprep.subr.mxu0 0.0
      %413 = vmatpush1.msra.mxu0 0.0
      %414 = vmatprep.subr.mxu0 0.0
      %415 = vmatpush1.msra.mxu0 0.0
      %416 = vmatprep.subr.mxu0 0.0
      %417 = vmatpush1.msra.mxu0 0.0
      %418 = vmatprep.subr.mxu0 0.0
      %419 = vmatpush1.msra.mxu0 0.0
      %420 = vmatprep.subr.mxu0 0.0
      %421 = vmatpush1.msra.mxu0 0.0
      %422 = vmatprep.subr.mxu0 0.0
      %423 = vmatpush1.msra.mxu0 0.0
      %424 = vmatprep.subr.mxu0 0.0
      %425 = vmatpush1.msra.mxu0 0.0
      %426 = vmatprep.subr.mxu0 0.0
      %427 = vmatpush1.msra.mxu0 0.0
      %428 = vmatprep.subr.mxu0 0.0
      %429 = vmatpush1.msra.mxu0 0.0
      %430 = vmatprep.subr.mxu0 0.0
      %431 = vmatpush1.msra.mxu0 0.0
      %432 = vmatprep.subr.mxu0 0.0
      %433 = vmatpush1.msra.mxu0 0.0
      %434 = vmatprep.subr.mxu0 0.0
      %435 = vmatpush1.msra.mxu0 0.0
      %436 = vmatprep.subr.mxu0 0.0
      %437 = vmatpush1.msra.mxu0 0.0
      %438 = vmatprep.subr.mxu0 0.0
      %439 = vmatpush1.msra.mxu0 0.0
      %440 = vmatprep.subr.mxu0 0.0
      %441 = vmatpush1.msra.mxu0 0.0
      %442 = vmatprep.subr.mxu0 0.0
      %443 = vmatpush1.msra.mxu0 0.0
      %444 = vmatprep.subr.mxu0 0.0
      %445 = vmatpush1.msra.mxu0 0.0
      %446 = vmatprep.subr.mxu0 0.0
      %447 = vmatpush1.msra.mxu0 0.0
      %448 = vmatprep.subr.mxu0 0.0
      %449 = vmatpush1.msra.mxu0 0.0
      %450 = vmatprep.subr.mxu0 0.0
      %451 = vmatpush1.msra.mxu0 0.0
      %452 = vmatprep.subr.mxu0 0.0
      %453 = vmatpush1.msra.mxu0 0.0
      %454 = vmatprep.subr.mxu0 0.0
      %455 = vmatpush1.msra.mxu0 0.0
      %456 = vmatprep.subr.mxu0 0.0
      %457 = vmatpush1.msra.mxu0 0.0
      %458 = vmatprep.subr.mxu0 0.0
      %459 = vmatpush1.msra.mxu0 0.0
      %460 = vmatprep.subr.mxu0 0.0
      %461 = vmatpush1.msra.mxu0 0.0
      %462 = vmatprep.subr.mxu0 0.0
      %463 = vmatpush1.msra.mxu0 0.0
      %464 = vmatprep.subr.mxu0 0.0
      %465 = vmatpush1.msra.mxu0 0.0
      %466 = vmatprep.subr.mxu0 0.0
      %467 = vmatpush1.msra.mxu0 0.0
      %468 = vmatprep.subr.mxu0 0.0
      %469 = vmatpush1.msra.mxu0 0.0
      %470 = vmatprep.subr.mxu0 0.0
      %471 = vmatpush1.msra.mxu0 0.0
      %472 = vmatprep.mubr.f32.mxu0 0.0
      %v473 = vand.u32 %v170, 4294901760
      %v474 = vsub.f32 %v170, %v473
      %v475 = vand.u32 %v474, 4294901760
      %476 = vmatmul.mubr.f32.gmra.mrb[0].mxu0 %v475
      %v477 = vpop.f32.mrb[0].mxu0
      %v478 = vadd.f32 %v403, %v477
      %v479 = vpop.f32.mrb[0].mxu0
      %480 = vdwg.mxu0
      %481 = vmatprep.subr.mxu0 0.0
      %v482 = vand.u32 %v164, 4294901760
      %v483 = vsub.f32 %v164, %v482
      %v484 = vand.u32 %v483, 4294901760
      %485 = vmatpush1.msra.mxu0 %v484
      %486 = vmatprep.subr.mxu0 0.0
      %v487 = vand.u32 %v165, 4294901760
      %v488 = vsub.f32 %v165, %v487
      %v489 = vand.u32 %v488, 4294901760
      %490 = vmatpush1.msra.mxu0 %v489
      %491 = vmatprep.subr.mxu0 0.0
      %492 = vmatpush1.msra.mxu0 0.0
      %493 = vmatprep.subr.mxu0 0.0
      %494 = vmatpush1.msra.mxu0 0.0
      %495 = vmatprep.subr.mxu0 0.0
      %496 = vmatpush1.msra.mxu0 0.0
      %497 = vmatprep.subr.mxu0 0.0
      %498 = vmatpush1.msra.mxu0 0.0
      %499 = vmatprep.subr.mxu0 0.0
      %500 = vmatpush1.msra.mxu0 0.0
      %501 = vmatprep.subr.mxu0 0.0
      %502 = vmatpush1.msra.mxu0 0.0
      %503 = vmatprep.subr.mxu0 0.0
      %504 = vmatpush1.msra.mxu0 0.0
      %505 = vmatprep.subr.mxu0 0.0
      %506 = vmatpush1.msra.mxu0 0.0
      %507 = vmatprep.subr.mxu0 0.0
      %508 = vmatpush1.msra.mxu0 0.0
      %509 = vmatprep.subr.mxu0 0.0
      %510 = vmatpush1.msra.mxu0 0.0
      %511 = vmatprep.subr.mxu0 0.0
      %512 = vmatpush1.msra.mxu0 0.0
      %513 = vmatprep.subr.mxu0 0.0
      %514 = vmatpush1.msra.mxu0 0.0
      %515 = vmatprep.subr.mxu0 0.0
      %516 = vmatpush1.msra.mxu0 0.0
      %517 = vmatprep.subr.mxu0 0.0
      %518 = vmatpush1.msra.mxu0 0.0
      %519 = vmatprep.subr.mxu0 0.0
      %520 = vmatpush1.msra.mxu0 0.0
      %521 = vmatprep.subr.mxu0 0.0
      %522 = vmatpush1.msra.mxu0 0.0
      %523 = vmatprep.subr.mxu0 0.0
      %524 = vmatpush1.msra.mxu0 0.0
      %525 = vmatprep.subr.mxu0 0.0
      %526 = vmatpush1.msra.mxu0 0.0
      %527 = vmatprep.subr.mxu0 0.0
      %528 = vmatpush1.msra.mxu0 0.0
      %529 = vmatprep.subr.mxu0 0.0
      %530 = vmatpush1.msra.mxu0 0.0
      %531 = vmatprep.subr.mxu0 0.0
      %532 = vmatpush1.msra.mxu0 0.0
      %533 = vmatprep.subr.mxu0 0.0
      %534 = vmatpush1.msra.mxu0 0.0
      %535 = vmatprep.subr.mxu0 0.0
      %536 = vmatpush1.msra.mxu0 0.0
      %537 = vmatprep.subr.mxu0 0.0
      %538 = vmatpush1.msra.mxu0 0.0
      %539 = vmatprep.subr.mxu0 0.0
      %540 = vmatpush1.msra.mxu0 0.0
      %541 = vmatprep.subr.mxu0 0.0
      %542 = vmatpush1.msra.mxu0 0.0
      %543 = vmatprep.subr.mxu0 0.0
      %544 = vmatpush1.msra.mxu0 0.0
      %545 = vmatprep.subr.mxu0 0.0
      %546 = vmatpush1.msra.mxu0 0.0
      %547 = vmatprep.subr.mxu0 0.0
      %548 = vmatpush1.msra.mxu0 0.0
      %549 = vmatprep.subr.mxu0 0.0
      %550 = vmatpush1.msra.mxu0 0.0
      %551 = vmatprep.mubr.f32.mxu0 0.0
      %v552 = vand.u32 %v170, 4294901760
      %553 = vmatmul.mubr.f32.gmra.mrb[0].mxu0 %v552
      %v554 = vpop.f32.mrb[0].mxu0
      %v555 = vadd.f32 %v478, %v554
      %v556 = vpop.f32.mrb[0].mxu0
      %557 = vdwg.mxu0
      %558 = vmatprep.subr.mxu0 0.0
      %v559 = vand.u32 %v164, 4294901760
      %560 = vmatpush1.msra.mxu0 %v559
      %561 = vmatprep.subr.mxu0 0.0
      %v562 = vand.u32 %v165, 4294901760
      %563 = vmatpush1.msra.mxu0 %v562
      %564 = vmatprep.subr.mxu0 0.0
      %565 = vmatpush1.msra.mxu0 0.0
      %566 = vmatprep.subr.mxu0 0.0
      %567 = vmatpush1.msra.mxu0 0.0
      %568 = vmatprep.subr.mxu0 0.0
      %569 = vmatpush1.msra.mxu0 0.0
      %570 = vmatprep.subr.mxu0 0.0
      %571 = vmatpush1.msra.mxu0 0.0
      %572 = vmatprep.subr.mxu0 0.0
      %573 = vmatpush1.msra.mxu0 0.0
      %574 = vmatprep.subr.mxu0 0.0
      %575 = vmatpush1.msra.mxu0 0.0
      %576 = vmatprep.subr.mxu0 0.0
      %577 = vmatpush1.msra.mxu0 0.0
      %578 = vmatprep.subr.mxu0 0.0
      %579 = vmatpush1.msra.mxu0 0.0
      %580 = vmatprep.subr.mxu0 0.0
      %581 = vmatpush1.msra.mxu0 0.0
      %582 = vmatprep.subr.mxu0 0.0
      %583 = vmatpush1.msra.mxu0 0.0
      %584 = vmatprep.subr.mxu0 0.0
      %585 = vmatpush1.msra.mxu0 0.0
      %586 = vmatprep.subr.mxu0 0.0
      %587 = vmatpush1.msra.mxu0 0.0
      %588 = vmatprep.subr.mxu0 0.0
      %589 = vmatpush1.msra.mxu0 0.0
      %590 = vmatprep.subr.mxu0 0.0
      %591 = vmatpush1.msra.mxu0 0.0
      %592 = vmatprep.subr.mxu0 0.0
      %593 = vmatpush1.msra.mxu0 0.0
      %594 = vmatprep.subr.mxu0 0.0
      %595 = vmatpush1.msra.mxu0 0.0
      %596 = vmatprep.subr.mxu0 0.0
      %597 = vmatpush1.msra.mxu0 0.0
      %598 = vmatprep.subr.mxu0 0.0
      %599 = vmatpush1.msra.mxu0 0.0
      %600 = vmatprep.subr.mxu0 0.0
      %601 = vmatpush1.msra.mxu0 0.0
      %602 = vmatprep.subr.mxu0 0.0
      %603 = vmatpush1.msra.mxu0 0.0
      %604 = vmatprep.subr.mxu0 0.0
      %605 = vmatpush1.msra.mxu0 0.0
      %606 = vmatprep.subr.mxu0 0.0
      %607 = vmatpush1.msra.mxu0 0.0
      %608 = vmatprep.subr.mxu0 0.0
      %609 = vmatpush1.msra.mxu0 0.0
      %610 = vmatprep.subr.mxu0 0.0
      %611 = vmatpush1.msra.mxu0 0.0
      %612 = vmatprep.subr.mxu0 0.0
      %613 = vmatpush1.msra.mxu0 0.0
      %614 = vmatprep.subr.mxu0 0.0
      %615 = vmatpush1.msra.mxu0 0.0
      %616 = vmatprep.subr.mxu0 0.0
      %617 = vmatpush1.msra.mxu0 0.0
      %618 = vmatprep.subr.mxu0 0.0
      %619 = vmatpush1.msra.mxu0 0.0
      %620 = vmatprep.subr.mxu0 0.0
      %621 = vmatpush1.msra.mxu0 0.0
      %622 = vmatprep.subr.mxu0 0.0
      %623 = vmatpush1.msra.mxu0 0.0
      %624 = vmatprep.mubr.f32.mxu0 0.0
      %v625 = vand.u32 %v170, 4294901760
      %626 = vmatmul.mubr.f32.gmra.mrb[0].mxu0 %v625
      %v627 = vpop.f32.mrb[0].mxu0
      %v628 = vadd.f32 %v555, %v627
      %v629 = vpop.f32.mrb[0].mxu0
      %630 = vdwg.mxu0
      %vm631 = vcmask 64512
      %v633 = vsel %vm631, %v153, 0
      %635 = vmatprep.subr.mxu0 0.0
      %v636 = vand.u32 %v628, 4294901760
      %637 = vmatpush1.msra.mxu0 %v636
      %638 = vmatprep.subr.mxu0 0.0
      %639 = vmatpush1.msra.mxu0 0.0
      %640 = vmatprep.subr.mxu0 0.0
      %641 = vmatpush1.msra.mxu0 0.0
      %642 = vmatprep.subr.mxu0 0.0
      %643 = vmatpush1.msra.mxu0 0.0
      %644 = vmatprep.subr.mxu0 0.0
      %645 = vmatpush1.msra.mxu0 0.0
      %646 = vmatprep.subr.mxu0 0.0
      %647 = vmatpush1.msra.mxu0 0.0
      %648 = vmatprep.subr.mxu0 0.0
      %649 = vmatpush1.msra.mxu0 0.0
      %650 = vmatprep.subr.mxu0 0.0
      %651 = vmatpush1.msra.mxu0 0.0
      %652 = vmatprep.subr.mxu0 0.0
      %653 = vmatpush1.msra.mxu0 0.0
      %654 = vmatprep.subr.mxu0 0.0
      %655 = vmatpush1.msra.mxu0 0.0
      %656 = vmatprep.subr.mxu0 0.0
      %657 = vmatpush1.msra.mxu0 0.0
      %658 = vmatprep.subr.mxu0 0.0
      %659 = vmatpush1.msra.mxu0 0.0
      %660 = vmatprep.subr.mxu0 0.0
      %661 = vmatpush1.msra.mxu0 0.0
      %662 = vmatprep.subr.mxu0 0.0
      %663 = vmatpush1.msra.mxu0 0.0
      %664 = vmatprep.subr.mxu0 0.0
      %665 = vmatpush1.msra.mxu0 0.0
      %666 = vmatprep.subr.mxu0 0.0
      %667 = vmatpush1.msra.mxu0 0.0
      %668 = vmatprep.subr.mxu0 0.0
      %669 = vmatpush1.msra.mxu0 0.0
      %670 = vmatprep.subr.mxu0 0.0
      %671 = vmatpush1.msra.mxu0 0.0
      %672 = vmatprep.subr.mxu0 0.0
      %673 = vmatpush1.msra.mxu0 0.0
      %674 = vmatprep.subr.mxu0 0.0
      %675 = vmatpush1.msra.mxu0 0.0
      %676 = vmatprep.subr.mxu0 0.0
      %677 = vmatpush1.msra.mxu0 0.0
      %678 = vmatprep.subr.mxu0 0.0
      %679 = vmatpush1.msra.mxu0 0.0
      %680 = vmatprep.subr.mxu0 0.0
      %681 = vmatpush1.msra.mxu0 0.0
      %682 = vmatprep.subr.mxu0 0.0
      %683 = vmatpush1.msra.mxu0 0.0
      %684 = vmatprep.subr.mxu0 0.0
      %685 = vmatpush1.msra.mxu0 0.0
      %686 = vmatprep.subr.mxu0 0.0
      %687 = vmatpush1.msra.mxu0 0.0
      %688 = vmatprep.subr.mxu0 0.0
      %689 = vmatpush1.msra.mxu0 0.0
      %690 = vmatprep.subr.mxu0 0.0
      %691 = vmatpush1.msra.mxu0 0.0
      %692 = vmatprep.subr.mxu0 0.0
      %693 = vmatpush1.msra.mxu0 0.0
      %694 = vmatprep.subr.mxu0 0.0
      %695 = vmatpush1.msra.mxu0 0.0
      %696 = vmatprep.subr.mxu0 0.0
      %697 = vmatpush1.msra.mxu0 0.0
      %698 = vmatprep.subr.mxu0 0.0
      %699 = vmatpush1.msra.mxu0 0.0
      %700 = vmatprep.mubr.f32.mxu0 0.0
      %v701 = vand.u32 %v633, 4294901760
      %v702 = vsub.f32 %v633, %v701
      %v703 = vand.u32 %v702, 4294901760
      %v704 = vsub.f32 %v702, %v703
      %v705 = vand.u32 %v704, 4294901760
      %706 = vmatmul.mubr.f32.gmra.mrb[0].mxu0 %v705
      %v707 = vpop.f32.mrb[0].mxu0
      %v708 = vadd.f32 %v159, %v707
      %v709 = vpop.f32.mrb[0].mxu0
      %710 = vdwg.mxu0
      %711 = vmatprep.subr.mxu0 0.0
      %v712 = vand.u32 %v628, 4294901760
      %v713 = vsub.f32 %v628, %v712
      %v714 = vand.u32 %v713, 4294901760
      %v715 = vsub.f32 %v713, %v714
      %v716 = vand.u32 %v715, 4294901760
      %717 = vmatpush1.msra.mxu0 %v716
      %718 = vmatprep.subr.mxu0 0.0
      %719 = vmatpush1.msra.mxu0 0.0
      %720 = vmatprep.subr.mxu0 0.0
      %721 = vmatpush1.msra.mxu0 0.0
      %722 = vmatprep.subr.mxu0 0.0
      %723 = vmatpush1.msra.mxu0 0.0
      %724 = vmatprep.subr.mxu0 0.0
      %725 = vmatpush1.msra.mxu0 0.0
      %726 = vmatprep.subr.mxu0 0.0
      %727 = vmatpush1.msra.mxu0 0.0
      %728 = vmatprep.subr.mxu0 0.0
      %729 = vmatpush1.msra.mxu0 0.0
      %730 = vmatprep.subr.mxu0 0.0
      %731 = vmatpush1.msra.mxu0 0.0
      %732 = vmatprep.subr.mxu0 0.0
      %733 = vmatpush1.msra.mxu0 0.0
      %734 = vmatprep.subr.mxu0 0.0
      %735 = vmatpush1.msra.mxu0 0.0
      %736 = vmatprep.subr.mxu0 0.0
      %737 = vmatpush1.msra.mxu0 0.0
      %738 = vmatprep.subr.mxu0 0.0
      %739 = vmatpush1.msra.mxu0 0.0
      %740 = vmatprep.subr.mxu0 0.0
      %741 = vmatpush1.msra.mxu0 0.0
      %742 = vmatprep.subr.mxu0 0.0
      %743 = vmatpush1.msra.mxu0 0.0
      %744 = vmatprep.subr.mxu0 0.0
      %745 = vmatpush1.msra.mxu0 0.0
      %746 = vmatprep.subr.mxu0 0.0
      %747 = vmatpush1.msra.mxu0 0.0
      %748 = vmatprep.subr.mxu0 0.0
      %749 = vmatpush1.msra.mxu0 0.0
      %750 = vmatprep.subr.mxu0 0.0
      %751 = vmatpush1.msra.mxu0 0.0
      %752 = vmatprep.subr.mxu0 0.0
      %753 = vmatpush1.msra.mxu0 0.0
      %754 = vmatprep.subr.mxu0 0.0
      %755 = vmatpush1.msra.mxu0 0.0
      %756 = vmatprep.subr.mxu0 0.0
      %757 = vmatpush1.msra.mxu0 0.0
      %758 = vmatprep.subr.mxu0 0.0
      %759 = vmatpush1.msra.mxu0 0.0
      %760 = vmatprep.subr.mxu0 0.0
      %761 = vmatpush1.msra.mxu0 0.0
      %762 = vmatprep.subr.mxu0 0.0
      %763 = vmatpush1.msra.mxu0 0.0
      %764 = vmatprep.subr.mxu0 0.0
      %765 = vmatpush1.msra.mxu0 0.0
      %766 = vmatprep.subr.mxu0 0.0
      %767 = vmatpush1.msra.mxu0 0.0
      %768 = vmatprep.subr.mxu0 0.0
      %769 = vmatpush1.msra.mxu0 0.0
      %770 = vmatprep.subr.mxu0 0.0
      %771 = vmatpush1.msra.mxu0 0.0
      %772 = vmatprep.subr.mxu0 0.0
      %773 = vmatpush1.msra.mxu0 0.0
      %774 = vmatprep.subr.mxu0 0.0
      %775 = vmatpush1.msra.mxu0 0.0
      %776 = vmatprep.subr.mxu0 0.0
      %777 = vmatpush1.msra.mxu0 0.0
      %778 = vmatprep.subr.mxu0 0.0
      %779 = vmatpush1.msra.mxu0 0.0
      %780 = vmatprep.mubr.f32.mxu0 0.0
      %v781 = vand.u32 %v633, 4294901760
      %782 = vmatmul.mubr.f32.gmra.mrb[0].mxu0 %v781
      %v783 = vpop.f32.mrb[0].mxu0
      %v784 = vadd.f32 %v708, %v783
      %v785 = vpop.f32.mrb[0].mxu0
      %786 = vdwg.mxu0
      %787 = vmatprep.subr.mxu0 0.0
      %v788 = vand.u32 %v628, 4294901760
      %v789 = vsub.f32 %v628, %v788
      %790 = vmatpush1.msra.mxu0 %v789
      %791 = vmatprep.subr.mxu0 0.0
      %792 = vmatpush1.msra.mxu0 0.0
      %793 = vmatprep.subr.mxu0 0.0
      %794 = vmatpush1.msra.mxu0 0.0
      %795 = vmatprep.subr.mxu0 0.0
      %796 = vmatpush1.msra.mxu0 0.0
      %797 = vmatprep.subr.mxu0 0.0
      %798 = vmatpush1.msra.mxu0 0.0
      %799 = vmatprep.subr.mxu0 0.0
      %800 = vmatpush1.msra.mxu0 0.0
      %801 = vmatprep.subr.mxu0 0.0
      %802 = vmatpush1.msra.mxu0 0.0
      %803 = vmatprep.subr.mxu0 0.0
      %804 = vmatpush1.msra.mxu0 0.0
      %805 = vmatprep.subr.mxu0 0.0
      %806 = vmatpush1.msra.mxu0 0.0
      %807 = vmatprep.subr.mxu0 0.0
      %808 = vmatpush1.msra.mxu0 0.0
      %809 = vmatprep.subr.mxu0 0.0
      %810 = vmatpush1.msra.mxu0 0.0
      %811 = vmatprep.subr.mxu0 0.0
      %812 = vmatpush1.msra.mxu0 0.0
      %813 = vmatprep.subr.mxu0 0.0
      %814 = vmatpush1.msra.mxu0 0.0
      %815 = vmatprep.subr.mxu0 0.0
      %816 = vmatpush1.msra.mxu0 0.0
      %817 = vmatprep.subr.mxu0 0.0
      %818 = vmatpush1.msra.mxu0 0.0
      %819 = vmatprep.subr.mxu0 0.0
      %820 = vmatpush1.msra.mxu0 0.0
      %821 = vmatprep.subr.mxu0 0.0
      %822 = vmatpush1.msra.mxu0 0.0
      %823 = vmatprep.subr.mxu0 0.0
      %824 = vmatpush1.msra.mxu0 0.0
      %825 = vmatprep.subr.mxu0 0.0
      %826 = vmatpush1.msra.mxu0 0.0
      %827 = vmatprep.subr.mxu0 0.0
      %828 = vmatpush1.msra.mxu0 0.0
      %829 = vmatprep.subr.mxu0 0.0
      %830 = vmatpush1.msra.mxu0 0.0
      %831 = vmatprep.subr.mxu0 0.0
      %832 = vmatpush1.msra.mxu0 0.0
      %833 = vmatprep.subr.mxu0 0.0
      %834 = vmatpush1.msra.mxu0 0.0
      %835 = vmatprep.subr.mxu0 0.0
      %836 = vmatpush1.msra.mxu0 0.0
      %837 = vmatprep.subr.mxu0 0.0
      %838 = vmatpush1.msra.mxu0 0.0
      %839 = vmatprep.subr.mxu0 0.0
      %840 = vmatpush1.msra.mxu0 0.0
      %841 = vmatprep.subr.mxu0 0.0
      %842 = vmatpush1.msra.mxu0 0.0
      %843 = vmatprep.subr.mxu0 0.0
      %844 = vmatpush1.msra.mxu0 0.0
      %845 = vmatprep.subr.mxu0 0.0
      %846 = vmatpush1.msra.mxu0 0.0
      %847 = vmatprep.subr.mxu0 0.0
      %848 = vmatpush1.msra.mxu0 0.0
      %849 = vmatprep.subr.mxu0 0.0
      %850 = vmatpush1.msra.mxu0 0.0
      %851 = vmatprep.subr.mxu0 0.0
      %852 = vmatpush1.msra.mxu0 0.0
      %853 = vmatprep.mubr.f32.mxu0 0.0
      %v854 = vand.u32 %v633, 4294901760
      %v855 = vsub.f32 %v633, %v854
      %856 = vmatmul.mubr.f32.gmra.mrb[0].mxu0 %v855
      %v857 = vpop.f32.mrb[0].mxu0
      %v858 = vadd.f32 %v784, %v857
      %v859 = vpop.f32.mrb[0].mxu0
      %860 = vdwg.mxu0
      %861 = vmatprep.subr.mxu0 0.0
      %v862 = vand.u32 %v628, 4294901760
      %863 = vmatpush1.msra.mxu0 %v862
      %864 = vmatprep.subr.mxu0 0.0
      %865 = vmatpush1.msra.mxu0 0.0
      %866 = vmatprep.subr.mxu0 0.0
      %867 = vmatpush1.msra.mxu0 0.0
      %868 = vmatprep.subr.mxu0 0.0
      %869 = vmatpush1.msra.mxu0 0.0
      %870 = vmatprep.subr.mxu0 0.0
      %871 = vmatpush1.msra.mxu0 0.0
      %872 = vmatprep.subr.mxu0 0.0
      %873 = vmatpush1.msra.mxu0 0.0
      %874 = vmatprep.subr.mxu0 0.0
      %875 = vmatpush1.msra.mxu0 0.0
      %876 = vmatprep.subr.mxu0 0.0
      %877 = vmatpush1.msra.mxu0 0.0
      %878 = vmatprep.subr.mxu0 0.0
      %879 = vmatpush1.msra.mxu0 0.0
      %880 = vmatprep.subr.mxu0 0.0
      %881 = vmatpush1.msra.mxu0 0.0
      %882 = vmatprep.subr.mxu0 0.0
      %883 = vmatpush1.msra.mxu0 0.0
      %884 = vmatprep.subr.mxu0 0.0
      %885 = vmatpush1.msra.mxu0 0.0
      %886 = vmatprep.subr.mxu0 0.0
      %887 = vmatpush1.msra.mxu0 0.0
      %888 = vmatprep.subr.mxu0 0.0
      %889 = vmatpush1.msra.mxu0 0.0
      %890 = vmatprep.subr.mxu0 0.0
      %891 = vmatpush1.msra.mxu0 0.0
      %892 = vmatprep.subr.mxu0 0.0
      %893 = vmatpush1.msra.mxu0 0.0
      %894 = vmatprep.subr.mxu0 0.0
      %895 = vmatpush1.msra.mxu0 0.0
      %896 = vmatprep.subr.mxu0 0.0
      %897 = vmatpush1.msra.mxu0 0.0
      %898 = vmatprep.subr.mxu0 0.0
      %899 = vmatpush1.msra.mxu0 0.0
      %900 = vmatprep.subr.mxu0 0.0
      %901 = vmatpush1.msra.mxu0 0.0
      %902 = vmatprep.subr.mxu0 0.0
      %903 = vmatpush1.msra.mxu0 0.0
      %904 = vmatprep.subr.mxu0 0.0
      %905 = vmatpush1.msra.mxu0 0.0
      %906 = vmatprep.subr.mxu0 0.0
      %907 = vmatpush1.msra.mxu0 0.0
      %908 = vmatprep.subr.mxu0 0.0
      %909 = vmatpush1.msra.mxu0 0.0
      %910 = vmatprep.subr.mxu0 0.0
      %911 = vmatpush1.msra.mxu0 0.0
      %912 = vmatprep.subr.mxu0 0.0
      %913 = vmatpush1.msra.mxu0 0.0
      %914 = vmatprep.subr.mxu0 0.0
      %915 = vmatpush1.msra.mxu0 0.0
      %916 = vmatprep.subr.mxu0 0.0
      %917 = vmatpush1.msra.mxu0 0.0
      %918 = vmatprep.subr.mxu0 0.0
      %919 = vmatpush1.msra.mxu0 0.0
      %920 = vmatprep.subr.mxu0 0.0
      %921 = vmatpush1.msra.mxu0 0.0
      %922 = vmatprep.subr.mxu0 0.0
      %923 = vmatpush1.msra.mxu0 0.0
      %924 = vmatprep.subr.mxu0 0.0
      %925 = vmatpush1.msra.mxu0 0.0
      %926 = vmatprep.mubr.f32.mxu0 0.0
      %v927 = vand.u32 %v633, 4294901760
      %v928 = vsub.f32 %v633, %v927
      %v929 = vand.u32 %v928, 4294901760
      %930 = vmatmul.mubr.f32.gmra.mrb[0].mxu0 %v929
      %v931 = vpop.f32.mrb[0].mxu0
      %v932 = vadd.f32 %v858, %v931
      %v933 = vpop.f32.mrb[0].mxu0
      %934 = vdwg.mxu0
      %935 = vmatprep.subr.mxu0 0.0
      %v936 = vand.u32 %v628, 4294901760
      %v937 = vsub.f32 %v628, %v936
      %v938 = vand.u32 %v937, 4294901760
      %939 = vmatpush1.msra.mxu0 %v938
      %940 = vmatprep.subr.mxu0 0.0
      %941 = vmatpush1.msra.mxu0 0.0
      %942 = vmatprep.subr.mxu0 0.0
      %943 = vmatpush1.msra.mxu0 0.0
      %944 = vmatprep.subr.mxu0 0.0
      %945 = vmatpush1.msra.mxu0 0.0
      %946 = vmatprep.subr.mxu0 0.0
      %947 = vmatpush1.msra.mxu0 0.0
      %948 = vmatprep.subr.mxu0 0.0
      %949 = vmatpush1.msra.mxu0 0.0
      %950 = vmatprep.subr.mxu0 0.0
      %951 = vmatpush1.msra.mxu0 0.0
      %952 = vmatprep.subr.mxu0 0.0
      %953 = vmatpush1.msra.mxu0 0.0
      %954 = vmatprep.subr.mxu0 0.0
      %955 = vmatpush1.msra.mxu0 0.0
      %956 = vmatprep.subr.mxu0 0.0
      %957 = vmatpush1.msra.mxu0 0.0
      %958 = vmatprep.subr.mxu0 0.0
      %959 = vmatpush1.msra.mxu0 0.0
      %960 = vmatprep.subr.mxu0 0.0
      %961 = vmatpush1.msra.mxu0 0.0
      %962 = vmatprep.subr.mxu0 0.0
      %963 = vmatpush1.msra.mxu0 0.0
      %964 = vmatprep.subr.mxu0 0.0
      %965 = vmatpush1.msra.mxu0 0.0
      %966 = vmatprep.subr.mxu0 0.0
      %967 = vmatpush1.msra.mxu0 0.0
      %968 = vmatprep.subr.mxu0 0.0
      %969 = vmatpush1.msra.mxu0 0.0
      %970 = vmatprep.subr.mxu0 0.0
      %971 = vmatpush1.msra.mxu0 0.0
      %972 = vmatprep.subr.mxu0 0.0
      %973 = vmatpush1.msra.mxu0 0.0
      %974 = vmatprep.subr.mxu0 0.0
      %975 = vmatpush1.msra.mxu0 0.0
      %976 = vmatprep.subr.mxu0 0.0
      %977 = vmatpush1.msra.mxu0 0.0
      %978 = vmatprep.subr.mxu0 0.0
      %979 = vmatpush1.msra.mxu0 0.0
      %980 = vmatprep.subr.mxu0 0.0
      %981 = vmatpush1.msra.mxu0 0.0
      %982 = vmatprep.subr.mxu0 0.0
      %983 = vmatpush1.msra.mxu0 0.0
      %984 = vmatprep.subr.mxu0 0.0
      %985 = vmatpush1.msra.mxu0 0.0
      %986 = vmatprep.subr.mxu0 0.0
      %987 = vmatpush1.msra.mxu0 0.0
      %988 = vmatprep.subr.mxu0 0.0
      %989 = vmatpush1.msra.mxu0 0.0
      %990 = vmatprep.subr.mxu0 0.0
      %991 = vmatpush1.msra.mxu0 0.0
      %992 = vmatprep.subr.mxu0 0.0
      %993 = vmatpush1.msra.mxu0 0.0
      %994 = vmatprep.subr.mxu0 0.0
      %995 = vmatpush1.msra.mxu0 0.0
      %996 = vmatprep.subr.mxu0 0.0
      %997 = vmatpush1.msra.mxu0 0.0
      %998 = vmatprep.subr.mxu0 0.0
      %999 = vmatpush1.msra.mxu0 0.0
      %1000 = vmatprep.subr.mxu0 0.0
      %1001 = vmatpush1.msra.mxu0 0.0
      %1002 = vmatprep.mubr.f32.mxu0 0.0
      %v1003 = vand.u32 %v633, 4294901760
      %1004 = vmatmul.mubr.f32.gmra.mrb[0].mxu0 %v1003
      %v1005 = vpop.f32.mrb[0].mxu0
      %v1006 = vadd.f32 %v932, %v1005
      %v1007 = vpop.f32.mrb[0].mxu0
      %1008 = vdwg.mxu0
      %1009 = vmatprep.subr.mxu0 0.0
      %v1010 = vand.u32 %v628, 4294901760
      %1011 = vmatpush1.msra.mxu0 %v1010
      %1012 = vmatprep.subr.mxu0 0.0
      %1013 = vmatpush1.msra.mxu0 0.0
      %1014 = vmatprep.subr.mxu0 0.0
      %1015 = vmatpush1.msra.mxu0 0.0
      %1016 = vmatprep.subr.mxu0 0.0
      %1017 = vmatpush1.msra.mxu0 0.0
      %1018 = vmatprep.subr.mxu0 0.0
      %1019 = vmatpush1.msra.mxu0 0.0
      %1020 = vmatprep.subr.mxu0 0.0
      %1021 = vmatpush1.msra.mxu0 0.0
      %1022 = vmatprep.subr.mxu0 0.0
      %1023 = vmatpush1.msra.mxu0 0.0
      %1024 = vmatprep.subr.mxu0 0.0
      %1025 = vmatpush1.msra.mxu0 0.0
      %1026 = vmatprep.subr.mxu0 0.0
      %1027 = vmatpush1.msra.mxu0 0.0
      %1028 = vmatprep.subr.mxu0 0.0
      %1029 = vmatpush1.msra.mxu0 0.0
      %1030 = vmatprep.subr.mxu0 0.0
      %1031 = vmatpush1.msra.mxu0 0.0
      %1032 = vmatprep.subr.mxu0 0.0
      %1033 = vmatpush1.msra.mxu0 0.0
      %1034 = vmatprep.subr.mxu0 0.0
      %1035 = vmatpush1.msra.mxu0 0.0
      %1036 = vmatprep.subr.mxu0 0.0
      %1037 = vmatpush1.msra.mxu0 0.0
      %1038 = vmatprep.subr.mxu0 0.0
      %1039 = vmatpush1.msra.mxu0 0.0
      %1040 = vmatprep.subr.mxu0 0.0
      %1041 = vmatpush1.msra.mxu0 0.0
      %1042 = vmatprep.subr.mxu0 0.0
      %1043 = vmatpush1.msra.mxu0 0.0
      %1044 = vmatprep.subr.mxu0 0.0
      %1045 = vmatpush1.msra.mxu0 0.0
      %1046 = vmatprep.subr.mxu0 0.0
      %1047 = vmatpush1.msra.mxu0 0.0
      %1048 = vmatprep.subr.mxu0 0.0
      %1049 = vmatpush1.msra.mxu0 0.0
      %1050 = vmatprep.subr.mxu0 0.0
      %1051 = vmatpush1.msra.mxu0 0.0
      %1052 = vmatprep.subr.mxu0 0.0
      %1053 = vmatpush1.msra.mxu0 0.0
      %1054 = vmatprep.subr.mxu0 0.0
      %1055 = vmatpush1.msra.mxu0 0.0
      %1056 = vmatprep.subr.mxu0 0.0
      %1057 = vmatpush1.msra.mxu0 0.0
      %1058 = vmatprep.subr.mxu0 0.0
      %1059 = vmatpush1.msra.mxu0 0.0
      %1060 = vmatprep.subr.mxu0 0.0
      %1061 = vmatpush1.msra.mxu0 0.0
      %1062 = vmatprep.subr.mxu0 0.0
      %1063 = vmatpush1.msra.mxu0 0.0
      %1064 = vmatprep.subr.mxu0 0.0
      %1065 = vmatpush1.msra.mxu0 0.0
      %1066 = vmatprep.subr.mxu0 0.0
      %1067 = vmatpush1.msra.mxu0 0.0
      %1068 = vmatprep.subr.mxu0 0.0
      %1069 = vmatpush1.msra.mxu0 0.0
      %1070 = vmatprep.subr.mxu0 0.0
      %1071 = vmatpush1.msra.mxu0 0.0
      %1072 = vmatprep.subr.mxu0 0.0
      %1073 = vmatpush1.msra.mxu0 0.0
      %1074 = vmatprep.mubr.f32.mxu0 0.0
      %v1075 = vand.u32 %v633, 4294901760
      %1076 = vmatmul.mubr.f32.gmra.mrb[0].mxu0 %v1075
      %v1077 = vpop.f32.mrb[0].mxu0
      %v1078 = vadd.f32 %v1006, %v1077
      %v1079 = vpop.f32.mrb[0].mxu0
      %1080 = vdwg.mxu0
      %v1082 = vrot.slane %v1078, 3
      %v1084 = vmul.f32 %v1078, %v1082
      %v1085 = vrot.slane %v1078, 1
      %v1087 = vmul.f32 %v1078, %v1085
      %v1089 = vrot.slane %v1087, 1
      %v1091 = vsub.f32 %v1084, %v1089
      %v1092 = vrcp.pop %v1091
      %v1093 = vmul.f32 1.0, %v1092
      %v1094 = vlaneseq
      %v1095 = vshrl.u32 %v1094, 7
      %v1096 = vsub.s32 3, %v1095
      %v1097 = vrot.slane %v1078, %v1096
      %v1098 = vmul.f32 %v628, %v1097
      %v1099 = vlaneseq
      %v1100 = vshrl.u32 %v1099, 7
      %v1101 = vsub.s32 2, %v1100
      %v1102 = vrot.slane %v1078, %v1101
      %v1103 = vmul.f32 %v628, %v1102
      %v1105 = vrot.slane %v1103, 4
      %v1107 = vsub.f32 %v1098, %v1105
      %v1108 = vlaneseq
      %v1109 = vshrl.u32 %v1108, 7
      %v1110 = vsub.s32 0, %v1109
      %v1111 = vrot.slane %v1093, %v1110
      %v1112 = vmul.f32 %v1107, %v1111
      %v1113 = vlaneseq
      %v1114 = vshrl.u32 %v1113, 7
      %v1115 = vsub.s32 0, %v1114
      %v1116 = vrot.slane %v1078, %v1115
      %v1117 = vmul.f32 %v628, %v1116
      %v1118 = vlaneseq
      %v1119 = vshrl.u32 %v1118, 7
      %v1120 = vsub.s32 1, %v1119
      %v1121 = vrot.slane %v1078, %v1120
      %v1122 = vmul.f32 %v628, %v1121
      %v1124 = vrot.slane %v1122, 4
      %v1126 = vsub.f32 %v1117, %v1124
      %v1127 = vmul.f32 %v1126, %v1111
      %v1129 = vsel %vm631, %v156, 0
      %1131 = vmatprep.subr.mxu0 0.0
      %v1132 = vand.u32 %v166, 4294901760
      %1133 = vmatpush1.msra.mxu0 %v1132
      %1134 = vmatprep.subr.mxu0 0.0
      %1135 = vmatpush1.msra.mxu0 0.0
      %1136 = vmatprep.subr.mxu0 0.0
      %1137 = vmatpush1.msra.mxu0 0.0
      %1138 = vmatprep.subr.mxu0 0.0
      %1139 = vmatpush1.msra.mxu0 0.0
      %1140 = vmatprep.subr.mxu0 0.0
      %1141 = vmatpush1.msra.mxu0 0.0
      %1142 = vmatprep.subr.mxu0 0.0
      %1143 = vmatpush1.msra.mxu0 0.0
      %1144 = vmatprep.subr.mxu0 0.0
      %1145 = vmatpush1.msra.mxu0 0.0
      %1146 = vmatprep.subr.mxu0 0.0
      %1147 = vmatpush1.msra.mxu0 0.0
      %1148 = vmatprep.subr.mxu0 0.0
      %1149 = vmatpush1.msra.mxu0 0.0
      %1150 = vmatprep.subr.mxu0 0.0
      %1151 = vmatpush1.msra.mxu0 0.0
      %1152 = vmatprep.subr.mxu0 0.0
      %1153 = vmatpush1.msra.mxu0 0.0
      %1154 = vmatprep.subr.mxu0 0.0
      %1155 = vmatpush1.msra.mxu0 0.0
      %1156 = vmatprep.subr.mxu0 0.0
      %1157 = vmatpush1.msra.mxu0 0.0
      %1158 = vmatprep.subr.mxu0 0.0
      %1159 = vmatpush1.msra.mxu0 0.0
      %1160 = vmatprep.subr.mxu0 0.0
      %1161 = vmatpush1.msra.mxu0 0.0
      %1162 = vmatprep.subr.mxu0 0.0
      %1163 = vmatpush1.msra.mxu0 0.0
      %1164 = vmatprep.subr.mxu0 0.0
      %1165 = vmatpush1.msra.mxu0 0.0
      %1166 = vmatprep.subr.mxu0 0.0
      %1167 = vmatpush1.msra.mxu0 0.0
      %1168 = vmatprep.subr.mxu0 0.0
      %1169 = vmatpush1.msra.mxu0 0.0
      %1170 = vmatprep.subr.mxu0 0.0
      %1171 = vmatpush1.msra.mxu0 0.0
      %1172 = vmatprep.subr.mxu0 0.0
      %1173 = vmatpush1.msra.mxu0 0.0
      %1174 = vmatprep.subr.mxu0 0.0
      %1175 = vmatpush1.msra.mxu0 0.0
      %1176 = vmatprep.subr.mxu0 0.0
      %1177 = vmatpush1.msra.mxu0 0.0
      %1178 = vmatprep.subr.mxu0 0.0
      %1179 = vmatpush1.msra.mxu0 0.0
      %1180 = vmatprep.subr.mxu0 0.0
      %1181 = vmatpush1.msra.mxu0 0.0
      %1182 = vmatprep.subr.mxu0 0.0
      %1183 = vmatpush1.msra.mxu0 0.0
      %1184 = vmatprep.subr.mxu0 0.0
      %1185 = vmatpush1.msra.mxu0 0.0
      %1186 = vmatprep.subr.mxu0 0.0
      %1187 = vmatpush1.msra.mxu0 0.0
      %1188 = vmatprep.subr.mxu0 0.0
      %1189 = vmatpush1.msra.mxu0 0.0
      %1190 = vmatprep.subr.mxu0 0.0
      %1191 = vmatpush1.msra.mxu0 0.0
      %1192 = vmatprep.subr.mxu0 0.0
      %1193 = vmatpush1.msra.mxu0 0.0
      %1194 = vmatprep.subr.mxu0 0.0
      %1195 = vmatpush1.msra.mxu0 0.0
      %1196 = vmatprep.mubr.f32.mxu0 0.0
      %v1197 = vand.u32 %v1129, 4294901760
      %v1198 = vsub.f32 %v1129, %v1197
      %v1199 = vand.u32 %v1198, 4294901760
      %v1200 = vsub.f32 %v1198, %v1199
      %v1201 = vand.u32 %v1200, 4294901760
      %1202 = vmatmul.mubr.f32.gmra.mrb[0].mxu0 %v1201
      %v1203 = vpop.f32.mrb[0].mxu0
      %v1204 = vadd.f32 0.0, %v1203
      %v1205 = vpop.f32.mrb[0].mxu0
      %1206 = vdwg.mxu0
      %1207 = vmatprep.subr.mxu0 0.0
      %v1208 = vand.u32 %v166, 4294901760
      %v1209 = vsub.f32 %v166, %v1208
      %v1210 = vand.u32 %v1209, 4294901760
      %v1211 = vsub.f32 %v1209, %v1210
      %v1212 = vand.u32 %v1211, 4294901760
      %1213 = vmatpush1.msra.mxu0 %v1212
      %1214 = vmatprep.subr.mxu0 0.0
      %1215 = vmatpush1.msra.mxu0 0.0
      %1216 = vmatprep.subr.mxu0 0.0
      %1217 = vmatpush1.msra.mxu0 0.0
      %1218 = vmatprep.subr.mxu0 0.0
      %1219 = vmatpush1.msra.mxu0 0.0
      %1220 = vmatprep.subr.mxu0 0.0
      %1221 = vmatpush1.msra.mxu0 0.0
      %1222 = vmatprep.subr.mxu0 0.0
      %1223 = vmatpush1.msra.mxu0 0.0
      %1224 = vmatprep.subr.mxu0 0.0
      %1225 = vmatpush1.msra.mxu0 0.0
      %1226 = vmatprep.subr.mxu0 0.0
      %1227 = vmatpush1.msra.mxu0 0.0
      %1228 = vmatprep.subr.mxu0 0.0
      %1229 = vmatpush1.msra.mxu0 0.0
      %1230 = vmatprep.subr.mxu0 0.0
      %1231 = vmatpush1.msra.mxu0 0.0
      %1232 = vmatprep.subr.mxu0 0.0
      %1233 = vmatpush1.msra.mxu0 0.0
      %1234 = vmatprep.subr.mxu0 0.0
      %1235 = vmatpush1.msra.mxu0 0.0
      %1236 = vmatprep.subr.mxu0 0.0
      %1237 = vmatpush1.msra.mxu0 0.0
      %1238 = vmatprep.subr.mxu0 0.0
      %1239 = vmatpush1.msra.mxu0 0.0
      %1240 = vmatprep.subr.mxu0 0.0
      %1241 = vmatpush1.msra.mxu0 0.0
      %1242 = vmatprep.subr.mxu0 0.0
      %1243 = vmatpush1.msra.mxu0 0.0
      %1244 = vmatprep.subr.mxu0 0.0
      %1245 = vmatpush1.msra.mxu0 0.0
      %1246 = vmatprep.subr.mxu0 0.0
      %1247 = vmatpush1.msra.mxu0 0.0
      %1248 = vmatprep.subr.mxu0 0.0
      %1249 = vmatpush1.msra.mxu0 0.0
      %1250 = vmatprep.subr.mxu0 0.0
      %1251 = vmatpush1.msra.mxu0 0.0
      %1252 = vmatprep.subr.mxu0 0.0
      %1253 = vmatpush1.msra.mxu0 0.0
      %1254 = vmatprep.subr.mxu0 0.0
      %1255 = vmatpush1.msra.mxu0 0.0
      %1256 = vmatprep.subr.mxu0 0.0
      %1257 = vmatpush1.msra.mxu0 0.0
      %1258 = vmatprep.subr.mxu0 0.0
      %1259 = vmatpush1.msra.mxu0 0.0
      %1260 = vmatprep.subr.mxu0 0.0
      %1261 = vmatpush1.msra.mxu0 0.0
      %1262 = vmatprep.subr.mxu0 0.0
      %1263 = vmatpush1.msra.mxu0 0.0
      %1264 = vmatprep.subr.mxu0 0.0
      %1265 = vmatpush1.msra.mxu0 0.0
      %1266 = vmatprep.subr.mxu0 0.0
      %1267 = vmatpush1.msra.mxu0 0.0
      %1268 = vmatprep.subr.mxu0 0.0
      %1269 = vmatpush1.msra.mxu0 0.0
      %1270 = vmatprep.subr.mxu0 0.0
      %1271 = vmatpush1.msra.mxu0 0.0
      %1272 = vmatprep.subr.mxu0 0.0
      %1273 = vmatpush1.msra.mxu0 0.0
      %1274 = vmatprep.subr.mxu0 0.0
      %1275 = vmatpush1.msra.mxu0 0.0
      %1276 = vmatprep.mubr.f32.mxu0 0.0
      %v1277 = vand.u32 %v1129, 4294901760
      %1278 = vmatmul.mubr.f32.gmra.mrb[0].mxu0 %v1277
      %v1279 = vpop.f32.mrb[0].mxu0
      %v1280 = vadd.f32 %v1204, %v1279
      %v1281 = vpop.f32.mrb[0].mxu0
      %1282 = vdwg.mxu0
      %1283 = vmatprep.subr.mxu0 0.0
      %v1284 = vand.u32 %v166, 4294901760
      %v1285 = vsub.f32 %v166, %v1284
      %1286 = vmatpush1.msra.mxu0 %v1285
      %1287 = vmatprep.subr.mxu0 0.0
      %1288 = vmatpush1.msra.mxu0 0.0
      %1289 = vmatprep.subr.mxu0 0.0
      %1290 = vmatpush1.msra.mxu0 0.0
      %1291 = vmatprep.subr.mxu0 0.0
      %1292 = vmatpush1.msra.mxu0 0.0
      %1293 = vmatprep.subr.mxu0 0.0
      %1294 = vmatpush1.msra.mxu0 0.0
      %1295 = vmatprep.subr.mxu0 0.0
      %1296 = vmatpush1.msra.mxu0 0.0
      %1297 = vmatprep.subr.mxu0 0.0
      %1298 = vmatpush1.msra.mxu0 0.0
      %1299 = vmatprep.subr.mxu0 0.0
      %1300 = vmatpush1.msra.mxu0 0.0
      %1301 = vmatprep.subr.mxu0 0.0
      %1302 = vmatpush1.msra.mxu0 0.0
      %1303 = vmatprep.subr.mxu0 0.0
      %1304 = vmatpush1.msra.mxu0 0.0
      %1305 = vmatprep.subr.mxu0 0.0
      %1306 = vmatpush1.msra.mxu0 0.0
      %1307 = vmatprep.subr.mxu0 0.0
      %1308 = vmatpush1.msra.mxu0 0.0
      %1309 = vmatprep.subr.mxu0 0.0
      %1310 = vmatpush1.msra.mxu0 0.0
      %1311 = vmatprep.subr.mxu0 0.0
      %1312 = vmatpush1.msra.mxu0 0.0
      %1313 = vmatprep.subr.mxu0 0.0
      %1314 = vmatpush1.msra.mxu0 0.0
      %1315 = vmatprep.subr.mxu0 0.0
      %1316 = vmatpush1.msra.mxu0 0.0
      %1317 = vmatprep.subr.mxu0 0.0
      %1318 = vmatpush1.msra.mxu0 0.0
      %1319 = vmatprep.subr.mxu0 0.0
      %1320 = vmatpush1.msra.mxu0 0.0
      %1321 = vmatprep.subr.mxu0 0.0
      %1322 = vmatpush1.msra.mxu0 0.0
      %1323 = vmatprep.subr.mxu0 0.0
      %1324 = vmatpush1.msra.mxu0 0.0
      %1325 = vmatprep.subr.mxu0 0.0
      %1326 = vmatpush1.msra.mxu0 0.0
      %1327 = vmatprep.subr.mxu0 0.0
      %1328 = vmatpush1.msra.mxu0 0.0
      %1329 = vmatprep.subr.mxu0 0.0
      %1330 = vmatpush1.msra.mxu0 0.0
      %1331 = vmatprep.subr.mxu0 0.0
      %1332 = vmatpush1.msra.mxu0 0.0
      %1333 = vmatprep.subr.mxu0 0.0
      %1334 = vmatpush1.msra.mxu0 0.0
      %1335 = vmatprep.subr.mxu0 0.0
      %1336 = vmatpush1.msra.mxu0 0.0
      %1337 = vmatprep.subr.mxu0 0.0
      %1338 = vmatpush1.msra.mxu0 0.0
      %1339 = vmatprep.subr.mxu0 0.0
      %1340 = vmatpush1.msra.mxu0 0.0
      %1341 = vmatprep.subr.mxu0 0.0
      %1342 = vmatpush1.msra.mxu0 0.0
      %1343 = vmatprep.subr.mxu0 0.0
      %1344 = vmatpush1.msra.mxu0 0.0
      %1345 = vmatprep.subr.mxu0 0.0
      %1346 = vmatpush1.msra.mxu0 0.0
      %1347 = vmatprep.subr.mxu0 0.0
      %1348 = vmatpush1.msra.mxu0 0.0
      %1349 = vmatprep.mubr.f32.mxu0 0.0
      %v1350 = vand.u32 %v1129, 4294901760
      %v1351 = vsub.f32 %v1129, %v1350
      %1352 = vmatmul.mubr.f32.gmra.mrb[0].mxu0 %v1351
      %v1353 = vpop.f32.mrb[0].mxu0
      %v1354 = vadd.f32 %v1280, %v1353
      %v1355 = vpop.f32.mrb[0].mxu0
      %1356 = vdwg.mxu0
      %1357 = vmatprep.subr.mxu0 0.0
      %v1358 = vand.u32 %v166, 4294901760
      %1359 = vmatpush1.msra.mxu0 %v1358
      %1360 = vmatprep.subr.mxu0 0.0
      %1361 = vmatpush1.msra.mxu0 0.0
      %1362 = vmatprep.subr.mxu0 0.0
      %1363 = vmatpush1.msra.mxu0 0.0
      %1364 = vmatprep.subr.mxu0 0.0
      %1365 = vmatpush1.msra.mxu0 0.0
      %1366 = vmatprep.subr.mxu0 0.0
      %1367 = vmatpush1.msra.mxu0 0.0
      %1368 = vmatprep.subr.mxu0 0.0
      %1369 = vmatpush1.msra.mxu0 0.0
      %1370 = vmatprep.subr.mxu0 0.0
      %1371 = vmatpush1.msra.mxu0 0.0
      %1372 = vmatprep.subr.mxu0 0.0
      %1373 = vmatpush1.msra.mxu0 0.0
      %1374 = vmatprep.subr.mxu0 0.0
      %1375 = vmatpush1.msra.mxu0 0.0
      %1376 = vmatprep.subr.mxu0 0.0
      %1377 = vmatpush1.msra.mxu0 0.0
      %1378 = vmatprep.subr.mxu0 0.0
      %1379 = vmatpush1.msra.mxu0 0.0
      %1380 = vmatprep.subr.mxu0 0.0
      %1381 = vmatpush1.msra.mxu0 0.0
      %1382 = vmatprep.subr.mxu0 0.0
      %1383 = vmatpush1.msra.mxu0 0.0
      %1384 = vmatprep.subr.mxu0 0.0
      %1385 = vmatpush1.msra.mxu0 0.0
      %1386 = vmatprep.subr.mxu0 0.0
      %1387 = vmatpush1.msra.mxu0 0.0
      %1388 = vmatprep.subr.mxu0 0.0
      %1389 = vmatpush1.msra.mxu0 0.0
      %1390 = vmatprep.subr.mxu0 0.0
      %1391 = vmatpush1.msra.mxu0 0.0
      %1392 = vmatprep.subr.mxu0 0.0
      %1393 = vmatpush1.msra.mxu0 0.0
      %1394 = vmatprep.subr.mxu0 0.0
      %1395 = vmatpush1.msra.mxu0 0.0
      %1396 = vmatprep.subr.mxu0 0.0
      %1397 = vmatpush1.msra.mxu0 0.0
      %1398 = vmatprep.subr.mxu0 0.0
      %1399 = vmatpush1.msra.mxu0 0.0
      %1400 = vmatprep.subr.mxu0 0.0
      %1401 = vmatpush1.msra.mxu0 0.0
      %1402 = vmatprep.subr.mxu0 0.0
      %1403 = vmatpush1.msra.mxu0 0.0
      %1404 = vmatprep.subr.mxu0 0.0
      %1405 = vmatpush1.msra.mxu0 0.0
      %1406 = vmatprep.subr.mxu0 0.0
      %1407 = vmatpush1.msra.mxu0 0.0
      %1408 = vmatprep.subr.mxu0 0.0
      %1409 = vmatpush1.msra.mxu0 0.0
      %1410 = vmatprep.subr.mxu0 0.0
      %1411 = vmatpush1.msra.mxu0 0.0
      %1412 = vmatprep.subr.mxu0 0.0
      %1413 = vmatpush1.msra.mxu0 0.0
      %1414 = vmatprep.subr.mxu0 0.0
      %1415 = vmatpush1.msra.mxu0 0.0
      %1416 = vmatprep.subr.mxu0 0.0
      %1417 = vmatpush1.msra.mxu0 0.0
      %1418 = vmatprep.subr.mxu0 0.0
      %1419 = vmatpush1.msra.mxu0 0.0
      %1420 = vmatprep.subr.mxu0 0.0
      %1421 = vmatpush1.msra.mxu0 0.0
      %1422 = vmatprep.mubr.f32.mxu0 0.0
      %v1423 = vand.u32 %v1129, 4294901760
      %v1424 = vsub.f32 %v1129, %v1423
      %v1425 = vand.u32 %v1424, 4294901760
      %1426 = vmatmul.mubr.f32.gmra.mrb[0].mxu0 %v1425
      %v1427 = vpop.f32.mrb[0].mxu0
      %v1428 = vadd.f32 %v1354, %v1427
      %v1429 = vpop.f32.mrb[0].mxu0
      %1430 = vdwg.mxu0
      %1431 = vmatprep.subr.mxu0 0.0
      %v1432 = vand.u32 %v166, 4294901760
      %v1433 = vsub.f32 %v166, %v1432
      %v1434 = vand.u32 %v1433, 4294901760
      %1435 = vmatpush1.msra.mxu0 %v1434
      %1436 = vmatprep.subr.mxu0 0.0
      %1437 = vmatpush1.msra.mxu0 0.0
      %1438 = vmatprep.subr.mxu0 0.0
      %1439 = vmatpush1.msra.mxu0 0.0
      %1440 = vmatprep.subr.mxu0 0.0
      %1441 = vmatpush1.msra.mxu0 0.0
      %1442 = vmatprep.subr.mxu0 0.0
      %1443 = vmatpush1.msra.mxu0 0.0
      %1444 = vmatprep.subr.mxu0 0.0
      %1445 = vmatpush1.msra.mxu0 0.0
      %1446 = vmatprep.subr.mxu0 0.0
      %1447 = vmatpush1.msra.mxu0 0.0
      %1448 = vmatprep.subr.mxu0 0.0
      %1449 = vmatpush1.msra.mxu0 0.0
      %1450 = vmatprep.subr.mxu0 0.0
      %1451 = vmatpush1.msra.mxu0 0.0
      %1452 = vmatprep.subr.mxu0 0.0
      %1453 = vmatpush1.msra.mxu0 0.0
      %1454 = vmatprep.subr.mxu0 0.0
      %1455 = vmatpush1.msra.mxu0 0.0
      %1456 = vmatprep.subr.mxu0 0.0
      %1457 = vmatpush1.msra.mxu0 0.0
      %1458 = vmatprep.subr.mxu0 0.0
      %1459 = vmatpush1.msra.mxu0 0.0
      %1460 = vmatprep.subr.mxu0 0.0
      %1461 = vmatpush1.msra.mxu0 0.0
      %1462 = vmatprep.subr.mxu0 0.0
      %1463 = vmatpush1.msra.mxu0 0.0
      %1464 = vmatprep.subr.mxu0 0.0
      %1465 = vmatpush1.msra.mxu0 0.0
      %1466 = vmatprep.subr.mxu0 0.0
      %1467 = vmatpush1.msra.mxu0 0.0
      %1468 = vmatprep.subr.mxu0 0.0
      %1469 = vmatpush1.msra.mxu0 0.0
      %1470 = vmatprep.subr.mxu0 0.0
      %1471 = vmatpush1.msra.mxu0 0.0
      %1472 = vmatprep.subr.mxu0 0.0
      %1473 = vmatpush1.msra.mxu0 0.0
      %1474 = vmatprep.subr.mxu0 0.0
      %1475 = vmatpush1.msra.mxu0 0.0
      %1476 = vmatprep.subr.mxu0 0.0
      %1477 = vmatpush1.msra.mxu0 0.0
      %1478 = vmatprep.subr.mxu0 0.0
      %1479 = vmatpush1.msra.mxu0 0.0
      %1480 = vmatprep.subr.mxu0 0.0
      %1481 = vmatpush1.msra.mxu0 0.0
      %1482 = vmatprep.subr.mxu0 0.0
      %1483 = vmatpush1.msra.mxu0 0.0
      %1484 = vmatprep.subr.mxu0 0.0
      %1485 = vmatpush1.msra.mxu0 0.0
      %1486 = vmatprep.subr.mxu0 0.0
      %1487 = vmatpush1.msra.mxu0 0.0
      %1488 = vmatprep.subr.mxu0 0.0
      %1489 = vmatpush1.msra.mxu0 0.0
      %1490 = vmatprep.subr.mxu0 0.0
      %1491 = vmatpush1.msra.mxu0 0.0
      %1492 = vmatprep.subr.mxu0 0.0
      %1493 = vmatpush1.msra.mxu0 0.0
      %1494 = vmatprep.subr.mxu0 0.0
      %1495 = vmatpush1.msra.mxu0 0.0
      %1496 = vmatprep.subr.mxu0 0.0
      %1497 = vmatpush1.msra.mxu0 0.0
      %1498 = vmatprep.mubr.f32.mxu0 0.0
      %v1499 = vand.u32 %v1129, 4294901760
      %1500 = vmatmul.mubr.f32.gmra.mrb[0].mxu0 %v1499
      %v1501 = vpop.f32.mrb[0].mxu0
      %v1502 = vadd.f32 %v1428, %v1501
      %v1503 = vpop.f32.mrb[0].mxu0
      %1504 = vdwg.mxu0
      %1505 = vmatprep.subr.mxu0 0.0
      %v1506 = vand.u32 %v166, 4294901760
      %1507 = vmatpush1.msra.mxu0 %v1506
      %1508 = vmatprep.subr.mxu0 0.0
      %1509 = vmatpush1.msra.mxu0 0.0
      %1510 = vmatprep.subr.mxu0 0.0
      %1511 = vmatpush1.msra.mxu0 0.0
      %1512 = vmatprep.subr.mxu0 0.0
      %1513 = vmatpush1.msra.mxu0 0.0
      %1514 = vmatprep.subr.mxu0 0.0
      %1515 = vmatpush1.msra.mxu0 0.0
      %1516 = vmatprep.subr.mxu0 0.0
      %1517 = vmatpush1.msra.mxu0 0.0
      %1518 = vmatprep.subr.mxu0 0.0
      %1519 = vmatpush1.msra.mxu0 0.0
      %1520 = vmatprep.subr.mxu0 0.0
      %1521 = vmatpush1.msra.mxu0 0.0
      %1522 = vmatprep.subr.mxu0 0.0
      %1523 = vmatpush1.msra.mxu0 0.0
      %1524 = vmatprep.subr.mxu0 0.0
      %1525 = vmatpush1.msra.mxu0 0.0
      %1526 = vmatprep.subr.mxu0 0.0
      %1527 = vmatpush1.msra.mxu0 0.0
      %1528 = vmatprep.subr.mxu0 0.0
      %1529 = vmatpush1.msra.mxu0 0.0
      %1530 = vmatprep.subr.mxu0 0.0
      %1531 = vmatpush1.msra.mxu0 0.0
      %1532 = vmatprep.subr.mxu0 0.0
      %1533 = vmatpush1.msra.mxu0 0.0
      %1534 = vmatprep.subr.mxu0 0.0
      %1535 = vmatpush1.msra.mxu0 0.0
      %1536 = vmatprep.subr.mxu0 0.0
      %1537 = vmatpush1.msra.mxu0 0.0
      %1538 = vmatprep.subr.mxu0 0.0
      %1539 = vmatpush1.msra.mxu0 0.0
      %1540 = vmatprep.subr.mxu0 0.0
      %1541 = vmatpush1.msra.mxu0 0.0
      %1542 = vmatprep.subr.mxu0 0.0
      %1543 = vmatpush1.msra.mxu0 0.0
      %1544 = vmatprep.subr.mxu0 0.0
      %1545 = vmatpush1.msra.mxu0 0.0
      %1546 = vmatprep.subr.mxu0 0.0
      %1547 = vmatpush1.msra.mxu0 0.0
      %1548 = vmatprep.subr.mxu0 0.0
      %1549 = vmatpush1.msra.mxu0 0.0
      %1550 = vmatprep.subr.mxu0 0.0
      %1551 = vmatpush1.msra.mxu0 0.0
      %1552 = vmatprep.subr.mxu0 0.0
      %1553 = vmatpush1.msra.mxu0 0.0
      %1554 = vmatprep.subr.mxu0 0.0
      %1555 = vmatpush1.msra.mxu0 0.0
      %1556 = vmatprep.subr.mxu0 0.0
      %1557 = vmatpush1.msra.mxu0 0.0
      %1558 = vmatprep.subr.mxu0 0.0
      %1559 = vmatpush1.msra.mxu0 0.0
      %1560 = vmatprep.subr.mxu0 0.0
      %1561 = vmatpush1.msra.mxu0 0.0
      %1562 = vmatprep.subr.mxu0 0.0
      %1563 = vmatpush1.msra.mxu0 0.0
      %1564 = vmatprep.subr.mxu0 0.0
      %1565 = vmatpush1.msra.mxu0 0.0
      %1566 = vmatprep.subr.mxu0 0.0
      %1567 = vmatpush1.msra.mxu0 0.0
      %1568 = vmatprep.subr.mxu0 0.0
      %1569 = vmatpush1.msra.mxu0 0.0
      %1570 = vmatprep.mubr.f32.mxu0 0.0
      %v1571 = vand.u32 %v1129, 4294901760
      %1572 = vmatmul.mubr.f32.gmra.mrb[0].mxu0 %v1571
      %v1573 = vpop.f32.mrb[0].mxu0
      %v1574 = vadd.f32 %v1502, %v1573
      %v1575 = vpop.f32.mrb[0].mxu0
      %1576 = vdwg.mxu0
      %v1577 = vsub.f32 %v167, %v1574
      %v1578 = vlaneseq
      %v1579 = vshrl.u32 %v1578, 7
      %v1580 = vsub.s32 0, %v1579
      %v1581 = vrot.slane %v1577, %v1580
      %v1582 = vmul.f32 %v1112, %v1581
      %v1583 = vadd.f32 %v166, %v1582
      %v1584 = vlaneseq
      %v1585 = vshrl.u32 %v1584, 7
      %v1586 = vsub.s32 1, %v1585
      %v1587 = vrot.slane %v1577, %v1586
      %v1588 = vmul.f32 %v1127, %v1587
      %v1590 = vrot.slane %v1588, 4
      %v1592 = vadd.f32 %v1583, %v1590
      %v1593 = vlaneseq
      %v1594 = vshrl.u32 %v1593, 7
      %v1595 = vsub.s32 0, %v1594
      %v1596 = vrot.slane %v1112, %v1595
      %v1597 = vmul.f32 %v1596, %v628
      %v1598 = vsub.f32 %v164, %v1597
      %v1599 = vlaneseq
      %v1600 = vshrl.u32 %v1599, 7
      %v1601 = vsub.s32 4, %v1600
      %v1602 = vrot.slane %v1127, %v1601
      %v1603 = vmul.f32 %v1602, %v628
      %v1605 = vrot.slane %v1603, 4
      %v1607 = vsub.f32 %v1598, %v1605
      %v1608 = vlaneseq
      %v1609 = vshrl.u32 %v1608, 7
      %v1610 = vsub.s32 1, %v1609
      %v1611 = vrot.slane %v1112, %v1610
      %v1612 = vmul.f32 %v1611, %v628
      %v1614 = vrot.slane %v1612, 4
      %v1616 = vsub.f32 %v164, %v1614
      %v1617 = vlaneseq
      %v1618 = vshrl.u32 %v1617, 7
      %v1619 = vsub.s32 5, %v1618
      %v1620 = vrot.slane %v1127, %v1619
      %v1621 = vmul.f32 %v1620, %v628
      %v1622 = vsub.f32 %v1616, %v1621
      %v1623 = vlaneseq
      %v1624 = vshrl.u32 %v1623, 7
      %v1625 = vsub.s32 2, %v1624
      %v1626 = vrot.slane %v1112, %v1625
      %v1627 = vmul.f32 %v1626, %v628
      %v1628 = vsub.f32 %v165, %v1627
      %v1629 = vlaneseq
      %v1630 = vshrl.u32 %v1629, 7
      %v1631 = vsub.s32 6, %v1630
      %v1632 = vrot.slane %v1127, %v1631
      %v1633 = vmul.f32 %v1632, %v628
      %v1635 = vrot.slane %v1633, 4
      %v1637 = vsub.f32 %v1628, %v1635
      %v1638 = vlaneseq
      %v1639 = vshrl.u32 %v1638, 7
      %v1640 = vsub.s32 3, %v1639
      %v1641 = vrot.slane %v1112, %v1640
      %v1642 = vmul.f32 %v1641, %v628
      %v1644 = vrot.slane %v1642, 4
      %v1646 = vsub.f32 %v165, %v1644
      %v1647 = vlaneseq
      %v1648 = vshrl.u32 %v1647, 7
      %v1649 = vsub.s32 7, %v1648
      %v1650 = vrot.slane %v1127, %v1649
      %v1651 = vmul.f32 %v1650, %v628
      %v1652 = vsub.f32 %v1646, %v1651
      %vm1653 = vcmask 1043456
      %v1654 = vsel %vm1653, %v1607, %v1622
      %v1655 = vsel %vm1653, %v1637, %v1652
      %v1657 = vrot.slane %v1577, 5
      %v1659 = vmul.f32 %v1078, %v1657
      %v1660 = vmul.f32 %v1659, %v1657
      %v1661 = vadd.f32 %v1078, %v1085
      %v1662 = vrot.slane %v1577, 7
      %v1664 = vmul.f32 %v1661, %v1662
      %v1665 = vmul.f32 %v1664, %v1577
      %v1667 = vrot.slane %v1665, 6
      %v1669 = vsub.f32 %v1660, %v1667
      %v1670 = vrot.slane %v1577, 1
      %v1672 = vmul.f32 %v1078, %v1670
      %v1673 = vmul.f32 %v1672, %v1670
      %v1675 = vrot.slane %v1673, 5
      %v1677 = vadd.f32 %v1669, %v1675
      %v1679 = vrot.slane %v1093, 5
      %v1681 = vmul.f32 %v1677, %v1679
      %v1682 = vlog2.pop %v1091
      %v1683 = vmul.f32 %v1682, 0.6931472
      %1684 = vst [vmem:[#allocation19] sm:$0xf] %v1592
      %1685 = vst [vmem:[#allocation19 + $0x4] sm:$0x3] %v1574
      %1686 = vst [vmem:[#allocation19 + $0x8] sm:$0xff] %v1654
      %1687 = vst [vmem:[#allocation19 + $0x10] sm:$0xff] %v1655
      %1688 = vst [vmem:[#allocation19 + $0x18] sm:$0xf] %v1078
      %v1689 = vsel %vm1653, %v1592, 0.0
      %1690 = vst [vmem:[#allocation2] sm:$0xff] %v1689
      %1691 = vst [vmem:[#allocation3] sm:$0xff] %v1654
      %1692 = vst [vmem:[#allocation3 + $0x8] sm:$0xff] %v1655
      %1693 = vst [vmem:[#allocation20 - $0x3] sm:$0x8] %v1681
      %1694 = vst [vmem:[#allocation20 + $0x1] sm:$0x1] %v1683
    $region85: #{tpu_custom_call.1} parent=1 // pred_fallthru
      _
    %s1695 = scalar_select %p160, 1, 0
    %v1696 = vld [vmem:[#allocation2] sm:$0xff]
    %v1697 = vld [vmem:[#allocation3] sm:$0xff]
    %v1698 = vld [vmem:[#allocation3 + $0x8] sm:$0xff]
    %v1699 = vld [vmem:[#allocation20] sm:$0x1]
    %v1700 = vld [vmem:[#allocation20 + $0x1] sm:$0x1]
    // While loop
    $region86: #{tpu_custom_call.1} parent=1 // loop_pre_header
      _
    $region87: #{tpu_custom_call.1} parent=1 // loop_header
      %s1702 = sphi %s1695, %s1704
      %p1703 = scmp.ge.s32.totalorder %s1702, 6
      %v1707 = vphi %v1696, %v4658
      %v1708 = vphi %v1697, %v4608
      %v1709 = vphi %v1698, %v4609
      %v1710 = vphi %v1699, %v4655
      %v1711 = vphi %v1700, %v4657
    $region88: #{tpu_custom_call.1} parent=1 // loop_header_branch
      %1706 = sbr.rel (%p1703) target = $region92
    $region89: #{tpu_custom_call.1} parent=1 // loop_body
      %s1712 = smul.u32 %s1702, 16
      %s1713 = scalar_lea.vmem [#allocation16], %s1712
      %v1714 = vld [vmem:[%s1713] sm:$0xff]
      %v1715 = vld [vmem:[%s1713 + $0x8] sm:$0xff]
      %vm1716 = vcmask 130048
      %v1718 = vsel %vm1716, %v150, 0
      %v1721 = vsel %vm1716, %v151, 0
      %1723 = vmatprep.subr.mxu0 0.0
      %v1724 = vand.u32 %v1708, 4294901760
      %1725 = vmatpush1.msra.mxu0 %v1724
      %1726 = vmatprep.subr.mxu0 0.0
      %v1727 = vand.u32 %v1709, 4294901760
      %1728 = vmatpush1.msra.mxu0 %v1727
      %1729 = vmatprep.subr.mxu0 0.0
      %1730 = vmatpush1.msra.mxu0 0.0
      %1731 = vmatprep.subr.mxu0 0.0
      %1732 = vmatpush1.msra.mxu0 0.0
      %1733 = vmatprep.subr.mxu0 0.0
      %1734 = vmatpush1.msra.mxu0 0.0
      %1735 = vmatprep.subr.mxu0 0.0
      %1736 = vmatpush1.msra.mxu0 0.0
      %1737 = vmatprep.subr.mxu0 0.0
      %1738 = vmatpush1.msra.mxu0 0.0
      %1739 = vmatprep.subr.mxu0 0.0
      %1740 = vmatpush1.msra.mxu0 0.0
      %1741 = vmatprep.subr.mxu0 0.0
      %1742 = vmatpush1.msra.mxu0 0.0
      %1743 = vmatprep.subr.mxu0 0.0
      %1744 = vmatpush1.msra.mxu0 0.0
      %1745 = vmatprep.subr.mxu0 0.0
      %1746 = vmatpush1.msra.mxu0 0.0
      %1747 = vmatprep.subr.mxu0 0.0
      %1748 = vmatpush1.msra.mxu0 0.0
      %1749 = vmatprep.subr.mxu0 0.0
      %1750 = vmatpush1.msra.mxu0 0.0
      %1751 = vmatprep.subr.mxu0 0.0
      %1752 = vmatpush1.msra.mxu0 0.0
      %1753 = vmatprep.subr.mxu0 0.0
      %1754 = vmatpush1.msra.mxu0 0.0
      %1755 = vmatprep.subr.mxu0 0.0
      %1756 = vmatpush1.msra.mxu0 0.0
      %1757 = vmatprep.subr.mxu0 0.0
      %1758 = vmatpush1.msra.mxu0 0.0
      %1759 = vmatprep.subr.mxu0 0.0
      %1760 = vmatpush1.msra.mxu0 0.0
      %1761 = vmatprep.subr.mxu0 0.0
      %1762 = vmatpush1.msra.mxu0 0.0
      %1763 = vmatprep.subr.mxu0 0.0
      %1764 = vmatpush1.msra.mxu0 0.0
      %1765 = vmatprep.subr.mxu0 0.0
      %1766 = vmatpush1.msra.mxu0 0.0
      %1767 = vmatprep.subr.mxu0 0.0
      %1768 = vmatpush1.msra.mxu0 0.0
      %1769 = vmatprep.subr.mxu0 0.0
      %1770 = vmatpush1.msra.mxu0 0.0
      %1771 = vmatprep.subr.mxu0 0.0
      %1772 = vmatpush1.msra.mxu0 0.0
      %1773 = vmatprep.subr.mxu0 0.0
      %1774 = vmatpush1.msra.mxu0 0.0
      %1775 = vmatprep.subr.mxu0 0.0
      %1776 = vmatpush1.msra.mxu0 0.0
      %1777 = vmatprep.subr.mxu0 0.0
      %1778 = vmatpush1.msra.mxu0 0.0
      %1779 = vmatprep.subr.mxu0 0.0
      %1780 = vmatpush1.msra.mxu0 0.0
      %1781 = vmatprep.subr.mxu0 0.0
      %1782 = vmatpush1.msra.mxu0 0.0
      %1783 = vmatprep.subr.mxu0 0.0
      %1784 = vmatpush1.msra.mxu0 0.0
      %1785 = vmatprep.subr.mxu0 0.0
      %1786 = vmatpush1.msra.mxu0 0.0
      %1787 = vmatprep.subr.mxu0 0.0
      %1788 = vmatpush1.msra.mxu0 0.0
      %1789 = vmatprep.mubr.f32.mxu0 0.0
      %v1790 = vand.u32 %v1718, 4294901760
      %v1791 = vsub.f32 %v1718, %v1790
      %v1792 = vand.u32 %v1791, 4294901760
      %v1793 = vsub.f32 %v1791, %v1792
      %v1794 = vand.u32 %v1793, 4294901760
      %1795 = vmatmul.mubr.f32.gmra.mrb[0].mxu0 %v1794
      %v1796 = vpop.f32.mrb[0].mxu0
      %v1797 = vadd.f32 %v157, %v1796
      %v1798 = vpop.f32.mrb[0].mxu0
      %1799 = vmatprep.mubr.f32.mxu0 0.0
      %v1800 = vand.u32 %v1721, 4294901760
      %v1801 = vsub.f32 %v1721, %v1800
      %v1802 = vand.u32 %v1801, 4294901760
      %v1803 = vsub.f32 %v1801, %v1802
      %v1804 = vand.u32 %v1803, 4294901760
      %1805 = vmatmul.mubr.f32.gmra.mrb[0].mxu0 %v1804
      %v1806 = vpop.f32.mrb[0].mxu0
      %v1807 = vadd.f32 %v158, %v1806
      %v1808 = vpop.f32.mrb[0].mxu0
      %1809 = vdwg.mxu0
      %1810 = vmatprep.subr.mxu0 0.0
      %v1811 = vand.u32 %v1708, 4294901760
      %v1812 = vsub.f32 %v1708, %v1811
      %v1813 = vand.u32 %v1812, 4294901760
      %v1814 = vsub.f32 %v1812, %v1813
      %v1815 = vand.u32 %v1814, 4294901760
      %1816 = vmatpush1.msra.mxu0 %v1815
      %1817 = vmatprep.subr.mxu0 0.0
      %v1818 = vand.u32 %v1709, 4294901760
      %v1819 = vsub.f32 %v1709, %v1818
      %v1820 = vand.u32 %v1819, 4294901760
      %v1821 = vsub.f32 %v1819, %v1820
      %v1822 = vand.u32 %v1821, 4294901760
      %1823 = vmatpush1.msra.mxu0 %v1822
      %1824 = vmatprep.subr.mxu0 0.0
      %1825 = vmatpush1.msra.mxu0 0.0
      %1826 = vmatprep.subr.mxu0 0.0
      %1827 = vmatpush1.msra.mxu0 0.0
      %1828 = vmatprep.subr.mxu0 0.0
      %1829 = vmatpush1.msra.mxu0 0.0
      %1830 = vmatprep.subr.mxu0 0.0
      %1831 = vmatpush1.msra.mxu0 0.0
      %1832 = vmatprep.subr.mxu0 0.0
      %1833 = vmatpush1.msra.mxu0 0.0
      %1834 = vmatprep.subr.mxu0 0.0
      %1835 = vmatpush1.msra.mxu0 0.0
      %1836 = vmatprep.subr.mxu0 0.0
      %1837 = vmatpush1.msra.mxu0 0.0
      %1838 = vmatprep.subr.mxu0 0.0
      %1839 = vmatpush1.msra.mxu0 0.0
      %1840 = vmatprep.subr.mxu0 0.0
      %1841 = vmatpush1.msra.mxu0 0.0
      %1842 = vmatprep.subr.mxu0 0.0
      %1843 = vmatpush1.msra.mxu0 0.0
      %1844 = vmatprep.subr.mxu0 0.0
      %1845 = vmatpush1.msra.mxu0 0.0
      %1846 = vmatprep.subr.mxu0 0.0
      %1847 = vmatpush1.msra.mxu0 0.0
      %1848 = vmatprep.subr.mxu0 0.0
      %1849 = vmatpush1.msra.mxu0 0.0
      %1850 = vmatprep.subr.mxu0 0.0
      %1851 = vmatpush1.msra.mxu0 0.0
      %1852 = vmatprep.subr.mxu0 0.0
      %1853 = vmatpush1.msra.mxu0 0.0
      %1854 = vmatprep.subr.mxu0 0.0
      %1855 = vmatpush1.msra.mxu0 0.0
      %1856 = vmatprep.subr.mxu0 0.0
      %1857 = vmatpush1.msra.mxu0 0.0
      %1858 = vmatprep.subr.mxu0 0.0
      %1859 = vmatpush1.msra.mxu0 0.0
      %1860 = vmatprep.subr.mxu0 0.0
      %1861 = vmatpush1.msra.mxu0 0.0
      %1862 = vmatprep.subr.mxu0 0.0
      %1863 = vmatpush1.msra.mxu0 0.0
      %1864 = vmatprep.subr.mxu0 0.0
      %1865 = vmatpush1.msra.mxu0 0.0
      %1866 = vmatprep.subr.mxu0 0.0
      %1867 = vmatpush1.msra.mxu0 0.0
      %1868 = vmatprep.subr.mxu0 0.0
      %1869 = vmatpush1.msra.mxu0 0.0
      %1870 = vmatprep.subr.mxu0 0.0
      %1871 = vmatpush1.msra.mxu0 0.0
      %1872 = vmatprep.subr.mxu0 0.0
      %1873 = vmatpush1.msra.mxu0 0.0
      %1874 = vmatprep.subr.mxu0 0.0
      %1875 = vmatpush1.msra.mxu0 0.0
      %1876 = vmatprep.subr.mxu0 0.0
      %1877 = vmatpush1.msra.mxu0 0.0
      %1878 = vmatprep.subr.mxu0 0.0
      %1879 = vmatpush1.msra.mxu0 0.0
      %1880 = vmatprep.subr.mxu0 0.0
      %1881 = vmatpush1.msra.mxu0 0.0
      %1882 = vmatprep.subr.mxu0 0.0
      %1883 = vmatpush1.msra.mxu0 0.0
      %1884 = vmatprep.mubr.f32.mxu0 0.0
      %v1885 = vand.u32 %v1718, 4294901760
      %1886 = vmatmul.mubr.f32.gmra.mrb[0].mxu0 %v1885
      %v1887 = vpop.f32.mrb[0].mxu0
      %v1888 = vadd.f32 %v1797, %v1887
      %v1889 = vpop.f32.mrb[0].mxu0
      %1890 = vmatprep.mubr.f32.mxu0 0.0
      %v1891 = vand.u32 %v1721, 4294901760
      %1892 = vmatmul.mubr.f32.gmra.mrb[0].mxu0 %v1891
      %v1893 = vpop.f32.mrb[0].mxu0
      %v1894 = vadd.f32 %v1807, %v1893
      %v1895 = vpop.f32.mrb[0].mxu0
      %1896 = vdwg.mxu0
      %1897 = vmatprep.subr.mxu0 0.0
      %v1898 = vand.u32 %v1708, 4294901760
      %v1899 = vsub.f32 %v1708, %v1898
      %1900 = vmatpush1.msra.mxu0 %v1899
      %1901 = vmatprep.subr.mxu0 0.0
      %v1902 = vand.u32 %v1709, 4294901760
      %v1903 = vsub.f32 %v1709, %v1902
      %1904 = vmatpush1.msra.mxu0 %v1903
      %1905 = vmatprep.subr.mxu0 0.0
      %1906 = vmatpush1.msra.mxu0 0.0
      %1907 = vmatprep.subr.mxu0 0.0
      %1908 = vmatpush1.msra.mxu0 0.0
      %1909 = vmatprep.subr.mxu0 0.0
      %1910 = vmatpush1.msra.mxu0 0.0
      %1911 = vmatprep.subr.mxu0 0.0
      %1912 = vmatpush1.msra.mxu0 0.0
      %1913 = vmatprep.subr.mxu0 0.0
      %1914 = vmatpush1.msra.mxu0 0.0
      %1915 = vmatprep.subr.mxu0 0.0
      %1916 = vmatpush1.msra.mxu0 0.0
      %1917 = vmatprep.subr.mxu0 0.0
      %1918 = vmatpush1.msra.mxu0 0.0
      %1919 = vmatprep.subr.mxu0 0.0
      %1920 = vmatpush1.msra.mxu0 0.0
      %1921 = vmatprep.subr.mxu0 0.0
      %1922 = vmatpush1.msra.mxu0 0.0
      %1923 = vmatprep.subr.mxu0 0.0
      %1924 = vmatpush1.msra.mxu0 0.0
      %1925 = vmatprep.subr.mxu0 0.0
      %1926 = vmatpush1.msra.mxu0 0.0
      %1927 = vmatprep.subr.mxu0 0.0
      %1928 = vmatpush1.msra.mxu0 0.0
      %1929 = vmatprep.subr.mxu0 0.0
      %1930 = vmatpush1.msra.mxu0 0.0
      %1931 = vmatprep.subr.mxu0 0.0
      %1932 = vmatpush1.msra.mxu0 0.0
      %1933 = vmatprep.subr.mxu0 0.0
      %1934 = vmatpush1.msra.mxu0 0.0
      %1935 = vmatprep.subr.mxu0 0.0
      %1936 = vmatpush1.msra.mxu0 0.0
      %1937 = vmatprep.subr.mxu0 0.0
      %1938 = vmatpush1.msra.mxu0 0.0
      %1939 = vmatprep.subr.mxu0 0.0
      %1940 = vmatpush1.msra.mxu0 0.0
      %1941 = vmatprep.subr.mxu0 0.0
      %1942 = vmatpush1.msra.mxu0 0.0
      %1943 = vmatprep.subr.mxu0 0.0
      %1944 = vmatpush1.msra.mxu0 0.0
      %1945 = vmatprep.subr.mxu0 0.0
      %1946 = vmatpush1.msra.mxu0 0.0
      %1947 = vmatprep.subr.mxu0 0.0
      %1948 = vmatpush1.msra.mxu0 0.0
      %1949 = vmatprep.subr.mxu0 0.0
      %1950 = vmatpush1.msra.mxu0 0.0
      %1951 = vmatprep.subr.mxu0 0.0
      %1952 = vmatpush1.msra.mxu0 0.0
      %1953 = vmatprep.subr.mxu0 0.0
      %1954 = vmatpush1.msra.mxu0 0.0
      %1955 = vmatprep.subr.mxu0 0.0
      %1956 = vmatpush1.msra.mxu0 0.0
      %1957 = vmatprep.subr.mxu0 0.0
      %1958 = vmatpush1.msra.mxu0 0.0
      %1959 = vmatprep.subr.mxu0 0.0
      %1960 = vmatpush1.msra.mxu0 0.0
      %1961 = vmatprep.subr.mxu0 0.0
      %1962 = vmatpush1.msra.mxu0 0.0
      %1963 = vmatprep.subr.mxu0 0.0
      %1964 = vmatpush1.msra.mxu0 0.0
      %1965 = vmatprep.mubr.f32.mxu0 0.0
      %v1966 = vand.u32 %v1718, 4294901760
      %v1967 = vsub.f32 %v1718, %v1966
      %1968 = vmatmul.mubr.f32.gmra.mrb[0].mxu0 %v1967
      %v1969 = vpop.f32.mrb[0].mxu0
      %v1970 = vadd.f32 %v1888, %v1969
      %v1971 = vpop.f32.mrb[0].mxu0
      %1972 = vmatprep.mubr.f32.mxu0 0.0
      %v1973 = vand.u32 %v1721, 4294901760
      %v1974 = vsub.f32 %v1721, %v1973
      %1975 = vmatmul.mubr.f32.gmra.mrb[0].mxu0 %v1974
      %v1976 = vpop.f32.mrb[0].mxu0
      %v1977 = vadd.f32 %v1894, %v1976
      %v1978 = vpop.f32.mrb[0].mxu0
      %1979 = vdwg.mxu0
      %1980 = vmatprep.subr.mxu0 0.0
      %v1981 = vand.u32 %v1708, 4294901760
      %1982 = vmatpush1.msra.mxu0 %v1981
      %1983 = vmatprep.subr.mxu0 0.0
      %v1984 = vand.u32 %v1709, 4294901760
      %1985 = vmatpush1.msra.mxu0 %v1984
      %1986 = vmatprep.subr.mxu0 0.0
      %1987 = vmatpush1.msra.mxu0 0.0
      %1988 = vmatprep.subr.mxu0 0.0
      %1989 = vmatpush1.msra.mxu0 0.0
      %1990 = vmatprep.subr.mxu0 0.0
      %1991 = vmatpush1.msra.mxu0 0.0
      %1992 = vmatprep.subr.mxu0 0.0
      %1993 = vmatpush1.msra.mxu0 0.0
      %1994 = vmatprep.subr.mxu0 0.0
      %1995 = vmatpush1.msra.mxu0 0.0
      %1996 = vmatprep.subr.mxu0 0.0
      %1997 = vmatpush1.msra.mxu0 0.0
      %1998 = vmatprep.subr.mxu0 0.0
      %1999 = vmatpush1.msra.mxu0 0.0
      %2000 = vmatprep.subr.mxu0 0.0
      %2001 = vmatpush1.msra.mxu0 0.0
      %2002 = vmatprep.subr.mxu0 0.0
      %2003 = vmatpush1.msra.mxu0 0.0
      %2004 = vmatprep.subr.mxu0 0.0
      %2005 = vmatpush1.msra.mxu0 0.0
      %2006 = vmatprep.subr.mxu0 0.0
      %2007 = vmatpush1.msra.mxu0 0.0
      %2008 = vmatprep.subr.mxu0 0.0
      %2009 = vmatpush1.msra.mxu0 0.0
      %2010 = vmatprep.subr.mxu0 0.0
      %2011 = vmatpush1.msra.mxu0 0.0
      %2012 = vmatprep.subr.mxu0 0.0
      %2013 = vmatpush1.msra.mxu0 0.0
      %2014 = vmatprep.subr.mxu0 0.0
      %2015 = vmatpush1.msra.mxu0 0.0
      %2016 = vmatprep.subr.mxu0 0.0
      %2017 = vmatpush1.msra.mxu0 0.0
      %2018 = vmatprep.subr.mxu0 0.0
      %2019 = vmatpush1.msra.mxu0 0.0
      %2020 = vmatprep.subr.mxu0 0.0
      %2021 = vmatpush1.msra.mxu0 0.0
      %2022 = vmatprep.subr.mxu0 0.0
      %2023 = vmatpush1.msra.mxu0 0.0
      %2024 = vmatprep.subr.mxu0 0.0
      %2025 = vmatpush1.msra.mxu0 0.0
      %2026 = vmatprep.subr.mxu0 0.0
      %2027 = vmatpush1.msra.mxu0 0.0
      %2028 = vmatprep.subr.mxu0 0.0
      %2029 = vmatpush1.msra.mxu0 0.0
      %2030 = vmatprep.subr.mxu0 0.0
      %2031 = vmatpush1.msra.mxu0 0.0
      %2032 = vmatprep.subr.mxu0 0.0
      %2033 = vmatpush1.msra.mxu0 0.0
      %2034 = vmatprep.subr.mxu0 0.0
      %2035 = vmatpush1.msra.mxu0 0.0
      %2036 = vmatprep.subr.mxu0 0.0
      %2037 = vmatpush1.msra.mxu0 0.0
      %2038 = vmatprep.subr.mxu0 0.0
      %2039 = vmatpush1.msra.mxu0 0.0
      %2040 = vmatprep.subr.mxu0 0.0
      %2041 = vmatpush1.msra.mxu0 0.0
      %2042 = vmatprep.subr.mxu0 0.0
      %2043 = vmatpush1.msra.mxu0 0.0
      %2044 = vmatprep.subr.mxu0 0.0
      %2045 = vmatpush1.msra.mxu0 0.0
      %2046 = vmatprep.mubr.f32.mxu0 0.0
      %v2047 = vand.u32 %v1718, 4294901760
      %v2048 = vsub.f32 %v1718, %v2047
      %v2049 = vand.u32 %v2048, 4294901760
      %2050 = vmatmul.mubr.f32.gmra.mrb[0].mxu0 %v2049
      %v2051 = vpop.f32.mrb[0].mxu0
      %v2052 = vadd.f32 %v1970, %v2051
      %v2053 = vpop.f32.mrb[0].mxu0
      %2054 = vmatprep.mubr.f32.mxu0 0.0
      %v2055 = vand.u32 %v1721, 4294901760
      %v2056 = vsub.f32 %v1721, %v2055
      %v2057 = vand.u32 %v2056, 4294901760
      %2058 = vmatmul.mubr.f32.gmra.mrb[0].mxu0 %v2057
      %v2059 = vpop.f32.mrb[0].mxu0
      %v2060 = vadd.f32 %v1977, %v2059
      %v2061 = vpop.f32.mrb[0].mxu0
      %2062 = vdwg.mxu0
      %2063 = vmatprep.subr.mxu0 0.0
      %v2064 = vand.u32 %v1708, 4294901760
      %v2065 = vsub.f32 %v1708, %v2064
      %v2066 = vand.u32 %v2065, 4294901760
      %2067 = vmatpush1.msra.mxu0 %v2066
      %2068 = vmatprep.subr.mxu0 0.0
      %v2069 = vand.u32 %v1709, 4294901760
      %v2070 = vsub.f32 %v1709, %v2069
      %v2071 = vand.u32 %v2070, 4294901760
      %2072 = vmatpush1.msra.mxu0 %v2071
      %2073 = vmatprep.subr.mxu0 0.0
      %2074 = vmatpush1.msra.mxu0 0.0
      %2075 = vmatprep.subr.mxu0 0.0
      %2076 = vmatpush1.msra.mxu0 0.0
      %2077 = vmatprep.subr.mxu0 0.0
      %2078 = vmatpush1.msra.mxu0 0.0
      %2079 = vmatprep.subr.mxu0 0.0
      %2080 = vmatpush1.msra.mxu0 0.0
      %2081 = vmatprep.subr.mxu0 0.0
      %2082 = vmatpush1.msra.mxu0 0.0
      %2083 = vmatprep.subr.mxu0 0.0
      %2084 = vmatpush1.msra.mxu0 0.0
      %2085 = vmatprep.subr.mxu0 0.0
      %2086 = vmatpush1.msra.mxu0 0.0
      %2087 = vmatprep.subr.mxu0 0.0
      %2088 = vmatpush1.msra.mxu0 0.0
      %2089 = vmatprep.subr.mxu0 0.0
      %2090 = vmatpush1.msra.mxu0 0.0
      %2091 = vmatprep.subr.mxu0 0.0
      %2092 = vmatpush1.msra.mxu0 0.0
      %2093 = vmatprep.subr.mxu0 0.0
      %2094 = vmatpush1.msra.mxu0 0.0
      %2095 = vmatprep.subr.mxu0 0.0
      %2096 = vmatpush1.msra.mxu0 0.0
      %2097 = vmatprep.subr.mxu0 0.0
      %2098 = vmatpush1.msra.mxu0 0.0
      %2099 = vmatprep.subr.mxu0 0.0
      %2100 = vmatpush1.msra.mxu0 0.0
      %2101 = vmatprep.subr.mxu0 0.0
      %2102 = vmatpush1.msra.mxu0 0.0
      %2103 = vmatprep.subr.mxu0 0.0
      %2104 = vmatpush1.msra.mxu0 0.0
      %2105 = vmatprep.subr.mxu0 0.0
      %2106 = vmatpush1.msra.mxu0 0.0
      %2107 = vmatprep.subr.mxu0 0.0
      %2108 = vmatpush1.msra.mxu0 0.0
      %2109 = vmatprep.subr.mxu0 0.0
      %2110 = vmatpush1.msra.mxu0 0.0
      %2111 = vmatprep.subr.mxu0 0.0
      %2112 = vmatpush1.msra.mxu0 0.0
      %2113 = vmatprep.subr.mxu0 0.0
      %2114 = vmatpush1.msra.mxu0 0.0
      %2115 = vmatprep.subr.mxu0 0.0
      %2116 = vmatpush1.msra.mxu0 0.0
      %2117 = vmatprep.subr.mxu0 0.0
      %2118 = vmatpush1.msra.mxu0 0.0
      %2119 = vmatprep.subr.mxu0 0.0
      %2120 = vmatpush1.msra.mxu0 0.0
      %2121 = vmatprep.subr.mxu0 0.0
      %2122 = vmatpush1.msra.mxu0 0.0
      %2123 = vmatprep.subr.mxu0 0.0
      %2124 = vmatpush1.msra.mxu0 0.0
      %2125 = vmatprep.subr.mxu0 0.0
      %2126 = vmatpush1.msra.mxu0 0.0
      %2127 = vmatprep.subr.mxu0 0.0
      %2128 = vmatpush1.msra.mxu0 0.0
      %2129 = vmatprep.subr.mxu0 0.0
      %2130 = vmatpush1.msra.mxu0 0.0
      %2131 = vmatprep.subr.mxu0 0.0
      %2132 = vmatpush1.msra.mxu0 0.0
      %2133 = vmatprep.mubr.f32.mxu0 0.0
      %v2134 = vand.u32 %v1718, 4294901760
      %2135 = vmatmul.mubr.f32.gmra.mrb[0].mxu0 %v2134
      %v2136 = vpop.f32.mrb[0].mxu0
      %v2137 = vadd.f32 %v2052, %v2136
      %v2138 = vpop.f32.mrb[0].mxu0
      %2139 = vmatprep.mubr.f32.mxu0 0.0
      %v2140 = vand.u32 %v1721, 4294901760
      %2141 = vmatmul.mubr.f32.gmra.mrb[0].mxu0 %v2140
      %v2142 = vpop.f32.mrb[0].mxu0
      %v2143 = vadd.f32 %v2060, %v2142
      %v2144 = vpop.f32.mrb[0].mxu0
      %2145 = vdwg.mxu0
      %2146 = vmatprep.subr.mxu0 0.0
      %v2147 = vand.u32 %v1708, 4294901760
      %2148 = vmatpush1.msra.mxu0 %v2147
      %2149 = vmatprep.subr.mxu0 0.0
      %v2150 = vand.u32 %v1709, 4294901760
      %2151 = vmatpush1.msra.mxu0 %v2150
      %2152 = vmatprep.subr.mxu0 0.0
      %2153 = vmatpush1.msra.mxu0 0.0
      %2154 = vmatprep.subr.mxu0 0.0
      %2155 = vmatpush1.msra.mxu0 0.0
      %2156 = vmatprep.subr.mxu0 0.0
      %2157 = vmatpush1.msra.mxu0 0.0
      %2158 = vmatprep.subr.mxu0 0.0
      %2159 = vmatpush1.msra.mxu0 0.0
      %2160 = vmatprep.subr.mxu0 0.0
      %2161 = vmatpush1.msra.mxu0 0.0
      %2162 = vmatprep.subr.mxu0 0.0
      %2163 = vmatpush1.msra.mxu0 0.0
      %2164 = vmatprep.subr.mxu0 0.0
      %2165 = vmatpush1.msra.mxu0 0.0
      %2166 = vmatprep.subr.mxu0 0.0
      %2167 = vmatpush1.msra.mxu0 0.0
      %2168 = vmatprep.subr.mxu0 0.0
      %2169 = vmatpush1.msra.mxu0 0.0
      %2170 = vmatprep.subr.mxu0 0.0
      %2171 = vmatpush1.msra.mxu0 0.0
      %2172 = vmatprep.subr.mxu0 0.0
      %2173 = vmatpush1.msra.mxu0 0.0
      %2174 = vmatprep.subr.mxu0 0.0
      %2175 = vmatpush1.msra.mxu0 0.0
      %2176 = vmatprep.subr.mxu0 0.0
      %2177 = vmatpush1.msra.mxu0 0.0
      %2178 = vmatprep.subr.mxu0 0.0
      %2179 = vmatpush1.msra.mxu0 0.0
      %2180 = vmatprep.subr.mxu0 0.0
      %2181 = vmatpush1.msra.mxu0 0.0
      %2182 = vmatprep.subr.mxu0 0.0
      %2183 = vmatpush1.msra.mxu0 0.0
      %2184 = vmatprep.subr.mxu0 0.0
      %2185 = vmatpush1.msra.mxu0 0.0
      %2186 = vmatprep.subr.mxu0 0.0
      %2187 = vmatpush1.msra.mxu0 0.0
      %2188 = vmatprep.subr.mxu0 0.0
      %2189 = vmatpush1.msra.mxu0 0.0
      %2190 = vmatprep.subr.mxu0 0.0
      %2191 = vmatpush1.msra.mxu0 0.0
      %2192 = vmatprep.subr.mxu0 0.0
      %2193 = vmatpush1.msra.mxu0 0.0
      %2194 = vmatprep.subr.mxu0 0.0
      %2195 = vmatpush1.msra.mxu0 0.0
      %2196 = vmatprep.subr.mxu0 0.0
      %2197 = vmatpush1.msra.mxu0 0.0
      %2198 = vmatprep.subr.mxu0 0.0
      %2199 = vmatpush1.msra.mxu0 0.0
      %2200 = vmatprep.subr.mxu0 0.0
      %2201 = vmatpush1.msra.mxu0 0.0
      %2202 = vmatprep.subr.mxu0 0.0
      %2203 = vmatpush1.msra.mxu0 0.0
      %2204 = vmatprep.subr.mxu0 0.0
      %2205 = vmatpush1.msra.mxu0 0.0
      %2206 = vmatprep.subr.mxu0 0.0
      %2207 = vmatpush1.msra.mxu0 0.0
      %2208 = vmatprep.subr.mxu0 0.0
      %2209 = vmatpush1.msra.mxu0 0.0
      %2210 = vmatprep.subr.mxu0 0.0
      %2211 = vmatpush1.msra.mxu0 0.0
      %2212 = vmatprep.mubr.f32.mxu0 0.0
      %v2213 = vand.u32 %v1718, 4294901760
      %2214 = vmatmul.mubr.f32.gmra.mrb[0].mxu0 %v2213
      %v2215 = vpop.f32.mrb[0].mxu0
      %v2216 = vadd.f32 %v2137, %v2215
      %v2217 = vpop.f32.mrb[0].mxu0
      %2218 = vmatprep.mubr.f32.mxu0 0.0
      %v2219 = vand.u32 %v1721, 4294901760
      %2220 = vmatmul.mubr.f32.gmra.mrb[0].mxu0 %v2219
      %v2221 = vpop.f32.mrb[0].mxu0
      %v2222 = vadd.f32 %v2143, %v2221
      %v2223 = vpop.f32.mrb[0].mxu0
      %2224 = vdwg.mxu0
      %vm2225 = vcmask 64512
      %v2227 = vsel %vm2225, %v155, 0
      %2229 = vmatprep.subr.mxu0 0.0
      %v2230 = vand.u32 %v1715, 4294901760
      %2231 = vmatpush1.msra.mxu0 %v2230
      %2232 = vmatprep.subr.mxu0 0.0
      %2233 = vmatpush1.msra.mxu0 0.0
      %2234 = vmatprep.subr.mxu0 0.0
      %2235 = vmatpush1.msra.mxu0 0.0
      %2236 = vmatprep.subr.mxu0 0.0
      %2237 = vmatpush1.msra.mxu0 0.0
      %2238 = vmatprep.subr.mxu0 0.0
      %2239 = vmatpush1.msra.mxu0 0.0
      %2240 = vmatprep.subr.mxu0 0.0
      %2241 = vmatpush1.msra.mxu0 0.0
      %2242 = vmatprep.subr.mxu0 0.0
      %2243 = vmatpush1.msra.mxu0 0.0
      %2244 = vmatprep.subr.mxu0 0.0
      %2245 = vmatpush1.msra.mxu0 0.0
      %2246 = vmatprep.subr.mxu0 0.0
      %2247 = vmatpush1.msra.mxu0 0.0
      %2248 = vmatprep.subr.mxu0 0.0
      %2249 = vmatpush1.msra.mxu0 0.0
      %2250 = vmatprep.subr.mxu0 0.0
      %2251 = vmatpush1.msra.mxu0 0.0
      %2252 = vmatprep.subr.mxu0 0.0
      %2253 = vmatpush1.msra.mxu0 0.0
      %2254 = vmatprep.subr.mxu0 0.0
      %2255 = vmatpush1.msra.mxu0 0.0
      %2256 = vmatprep.subr.mxu0 0.0
      %2257 = vmatpush1.msra.mxu0 0.0
      %2258 = vmatprep.subr.mxu0 0.0
      %2259 = vmatpush1.msra.mxu0 0.0
      %2260 = vmatprep.subr.mxu0 0.0
      %2261 = vmatpush1.msra.mxu0 0.0
      %2262 = vmatprep.subr.mxu0 0.0
      %2263 = vmatpush1.msra.mxu0 0.0
      %2264 = vmatprep.subr.mxu0 0.0
      %2265 = vmatpush1.msra.mxu0 0.0
      %2266 = vmatprep.subr.mxu0 0.0
      %2267 = vmatpush1.msra.mxu0 0.0
      %2268 = vmatprep.subr.mxu0 0.0
      %2269 = vmatpush1.msra.mxu0 0.0
      %2270 = vmatprep.subr.mxu0 0.0
      %2271 = vmatpush1.msra.mxu0 0.0
      %2272 = vmatprep.subr.mxu0 0.0
      %2273 = vmatpush1.msra.mxu0 0.0
      %2274 = vmatprep.subr.mxu0 0.0
      %2275 = vmatpush1.msra.mxu0 0.0
      %2276 = vmatprep.subr.mxu0 0.0
      %2277 = vmatpush1.msra.mxu0 0.0
      %2278 = vmatprep.subr.mxu0 0.0
      %2279 = vmatpush1.msra.mxu0 0.0
      %2280 = vmatprep.subr.mxu0 0.0
      %2281 = vmatpush1.msra.mxu0 0.0
      %2282 = vmatprep.subr.mxu0 0.0
      %2283 = vmatpush1.msra.mxu0 0.0
      %2284 = vmatprep.subr.mxu0 0.0
      %2285 = vmatpush1.msra.mxu0 0.0
      %2286 = vmatprep.subr.mxu0 0.0
      %2287 = vmatpush1.msra.mxu0 0.0
      %2288 = vmatprep.subr.mxu0 0.0
      %2289 = vmatpush1.msra.mxu0 0.0
      %2290 = vmatprep.subr.mxu0 0.0
      %2291 = vmatpush1.msra.mxu0 0.0
      %2292 = vmatprep.subr.mxu0 0.0
      %2293 = vmatpush1.msra.mxu0 0.0
      %2294 = vmatprep.mubr.f32.mxu0 0.0
      %v2295 = vand.u32 %v2227, 4294901760
      %v2296 = vsub.f32 %v2227, %v2295
      %v2297 = vand.u32 %v2296, 4294901760
      %v2298 = vsub.f32 %v2296, %v2297
      %v2299 = vand.u32 %v2298, 4294901760
      %2300 = vmatmul.mubr.f32.gmra.mrb[0].mxu0 %v2299
      %v2301 = vpop.f32.mrb[0].mxu0
      %v2302 = vadd.f32 0.0, %v2301
      %v2303 = vpop.f32.mrb[0].mxu0
      %2304 = vdwg.mxu0
      %2305 = vmatprep.subr.mxu0 0.0
      %v2306 = vand.u32 %v1715, 4294901760
      %v2307 = vsub.f32 %v1715, %v2306
      %v2308 = vand.u32 %v2307, 4294901760
      %v2309 = vsub.f32 %v2307, %v2308
      %v2310 = vand.u32 %v2309, 4294901760
      %2311 = vmatpush1.msra.mxu0 %v2310
      %2312 = vmatprep.subr.mxu0 0.0
      %2313 = vmatpush1.msra.mxu0 0.0
      %2314 = vmatprep.subr.mxu0 0.0
      %2315 = vmatpush1.msra.mxu0 0.0
      %2316 = vmatprep.subr.mxu0 0.0
      %2317 = vmatpush1.msra.mxu0 0.0
      %2318 = vmatprep.subr.mxu0 0.0
      %2319 = vmatpush1.msra.mxu0 0.0
      %2320 = vmatprep.subr.mxu0 0.0
      %2321 = vmatpush1.msra.mxu0 0.0
      %2322 = vmatprep.subr.mxu0 0.0
      %2323 = vmatpush1.msra.mxu0 0.0
      %2324 = vmatprep.subr.mxu0 0.0
      %2325 = vmatpush1.msra.mxu0 0.0
      %2326 = vmatprep.subr.mxu0 0.0
      %2327 = vmatpush1.msra.mxu0 0.0
      %2328 = vmatprep.subr.mxu0 0.0
      %2329 = vmatpush1.msra.mxu0 0.0
      %2330 = vmatprep.subr.mxu0 0.0
      %2331 = vmatpush1.msra.mxu0 0.0
      %2332 = vmatprep.subr.mxu0 0.0
      %2333 = vmatpush1.msra.mxu0 0.0
      %2334 = vmatprep.subr.mxu0 0.0
      %2335 = vmatpush1.msra.mxu0 0.0
      %2336 = vmatprep.subr.mxu0 0.0
      %2337 = vmatpush1.msra.mxu0 0.0
      %2338 = vmatprep.subr.mxu0 0.0
      %2339 = vmatpush1.msra.mxu0 0.0
      %2340 = vmatprep.subr.mxu0 0.0
      %2341 = vmatpush1.msra.mxu0 0.0
      %2342 = vmatprep.subr.mxu0 0.0
      %2343 = vmatpush1.msra.mxu0 0.0
      %2344 = vmatprep.subr.mxu0 0.0
      %2345 = vmatpush1.msra.mxu0 0.0
      %2346 = vmatprep.subr.mxu0 0.0
      %2347 = vmatpush1.msra.mxu0 0.0
      %2348 = vmatprep.subr.mxu0 0.0
      %2349 = vmatpush1.msra.mxu0 0.0
      %2350 = vmatprep.subr.mxu0 0.0
      %2351 = vmatpush1.msra.mxu0 0.0
      %2352 = vmatprep.subr.mxu0 0.0
      %2353 = vmatpush1.msra.mxu0 0.0
      %2354 = vmatprep.subr.mxu0 0.0
      %2355 = vmatpush1.msra.mxu0 0.0
      %2356 = vmatprep.subr.mxu0 0.0
      %2357 = vmatpush1.msra.mxu0 0.0
      %2358 = vmatprep.subr.mxu0 0.0
      %2359 = vmatpush1.msra.mxu0 0.0
      %2360 = vmatprep.subr.mxu0 0.0
      %2361 = vmatpush1.msra.mxu0 0.0
      %2362 = vmatprep.subr.mxu0 0.0
      %2363 = vmatpush1.msra.mxu0 0.0
      %2364 = vmatprep.subr.mxu0 0.0
      %2365 = vmatpush1.msra.mxu0 0.0
      %2366 = vmatprep.subr.mxu0 0.0
      %2367 = vmatpush1.msra.mxu0 0.0
      %2368 = vmatprep.subr.mxu0 0.0
      %2369 = vmatpush1.msra.mxu0 0.0
      %2370 = vmatprep.subr.mxu0 0.0
      %2371 = vmatpush1.msra.mxu0 0.0
      %2372 = vmatprep.subr.mxu0 0.0
      %2373 = vmatpush1.msra.mxu0 0.0
      %2374 = vmatprep.mubr.f32.mxu0 0.0
      %v2375 = vand.u32 %v2227, 4294901760
      %2376 = vmatmul.mubr.f32.gmra.mrb[0].mxu0 %v2375
      %v2377 = vpop.f32.mrb[0].mxu0
      %v2378 = vadd.f32 %v2302, %v2377
      %v2379 = vpop.f32.mrb[0].mxu0
      %2380 = vdwg.mxu0
      %2381 = vmatprep.subr.mxu0 0.0
      %v2382 = vand.u32 %v1715, 4294901760
      %v2383 = vsub.f32 %v1715, %v2382
      %2384 = vmatpush1.msra.mxu0 %v2383
      %2385 = vmatprep.subr.mxu0 0.0
      %2386 = vmatpush1.msra.mxu0 0.0
      %2387 = vmatprep.subr.mxu0 0.0
      %2388 = vmatpush1.msra.mxu0 0.0
      %2389 = vmatprep.subr.mxu0 0.0
      %2390 = vmatpush1.msra.mxu0 0.0
      %2391 = vmatprep.subr.mxu0 0.0
      %2392 = vmatpush1.msra.mxu0 0.0
      %2393 = vmatprep.subr.mxu0 0.0
      %2394 = vmatpush1.msra.mxu0 0.0
      %2395 = vmatprep.subr.mxu0 0.0
      %2396 = vmatpush1.msra.mxu0 0.0
      %2397 = vmatprep.subr.mxu0 0.0
      %2398 = vmatpush1.msra.mxu0 0.0
      %2399 = vmatprep.subr.mxu0 0.0
      %2400 = vmatpush1.msra.mxu0 0.0
      %2401 = vmatprep.subr.mxu0 0.0
      %2402 = vmatpush1.msra.mxu0 0.0
      %2403 = vmatprep.subr.mxu0 0.0
      %2404 = vmatpush1.msra.mxu0 0.0
      %2405 = vmatprep.subr.mxu0 0.0
      %2406 = vmatpush1.msra.mxu0 0.0
      %2407 = vmatprep.subr.mxu0 0.0
      %2408 = vmatpush1.msra.mxu0 0.0
      %2409 = vmatprep.subr.mxu0 0.0
      %2410 = vmatpush1.msra.mxu0 0.0
      %2411 = vmatprep.subr.mxu0 0.0
      %2412 = vmatpush1.msra.mxu0 0.0
      %2413 = vmatprep.subr.mxu0 0.0
      %2414 = vmatpush1.msra.mxu0 0.0
      %2415 = vmatprep.subr.mxu0 0.0
      %2416 = vmatpush1.msra.mxu0 0.0
      %2417 = vmatprep.subr.mxu0 0.0
      %2418 = vmatpush1.msra.mxu0 0.0
      %2419 = vmatprep.subr.mxu0 0.0
      %2420 = vmatpush1.msra.mxu0 0.0
      %2421 = vmatprep.subr.mxu0 0.0
      %2422 = vmatpush1.msra.mxu0 0.0
      %2423 = vmatprep.subr.mxu0 0.0
      %2424 = vmatpush1.msra.mxu0 0.0
      %2425 = vmatprep.subr.mxu0 0.0
      %2426 = vmatpush1.msra.mxu0 0.0
      %2427 = vmatprep.subr.mxu0 0.0
      %2428 = vmatpush1.msra.mxu0 0.0
      %2429 = vmatprep.subr.mxu0 0.0
      %2430 = vmatpush1.msra.mxu0 0.0
      %2431 = vmatprep.subr.mxu0 0.0
      %2432 = vmatpush1.msra.mxu0 0.0
      %2433 = vmatprep.subr.mxu0 0.0
      %2434 = vmatpush1.msra.mxu0 0.0
      %2435 = vmatprep.subr.mxu0 0.0
      %2436 = vmatpush1.msra.mxu0 0.0
      %2437 = vmatprep.subr.mxu0 0.0
      %2438 = vmatpush1.msra.mxu0 0.0
      %2439 = vmatprep.subr.mxu0 0.0
      %2440 = vmatpush1.msra.mxu0 0.0
      %2441 = vmatprep.subr.mxu0 0.0
      %2442 = vmatpush1.msra.mxu0 0.0
      %2443 = vmatprep.subr.mxu0 0.0
      %2444 = vmatpush1.msra.mxu0 0.0
      %2445 = vmatprep.subr.mxu0 0.0
      %2446 = vmatpush1.msra.mxu0 0.0
      %2447 = vmatprep.mubr.f32.mxu0 0.0
      %v2448 = vand.u32 %v2227, 4294901760
      %v2449 = vsub.f32 %v2227, %v2448
      %2450 = vmatmul.mubr.f32.gmra.mrb[0].mxu0 %v2449
      %v2451 = vpop.f32.mrb[0].mxu0
      %v2452 = vadd.f32 %v2378, %v2451
      %v2453 = vpop.f32.mrb[0].mxu0
      %2454 = vdwg.mxu0
      %2455 = vmatprep.subr.mxu0 0.0
      %v2456 = vand.u32 %v1715, 4294901760
      %2457 = vmatpush1.msra.mxu0 %v2456
      %2458 = vmatprep.subr.mxu0 0.0
      %2459 = vmatpush1.msra.mxu0 0.0
      %2460 = vmatprep.subr.mxu0 0.0
      %2461 = vmatpush1.msra.mxu0 0.0
      %2462 = vmatprep.subr.mxu0 0.0
      %2463 = vmatpush1.msra.mxu0 0.0
      %2464 = vmatprep.subr.mxu0 0.0
      %2465 = vmatpush1.msra.mxu0 0.0
      %2466 = vmatprep.subr.mxu0 0.0
      %2467 = vmatpush1.msra.mxu0 0.0
      %2468 = vmatprep.subr.mxu0 0.0
      %2469 = vmatpush1.msra.mxu0 0.0
      %2470 = vmatprep.subr.mxu0 0.0
      %2471 = vmatpush1.msra.mxu0 0.0
      %2472 = vmatprep.subr.mxu0 0.0
      %2473 = vmatpush1.msra.mxu0 0.0
      %2474 = vmatprep.subr.mxu0 0.0
      %2475 = vmatpush1.msra.mxu0 0.0
      %2476 = vmatprep.subr.mxu0 0.0
      %2477 = vmatpush1.msra.mxu0 0.0
      %2478 = vmatprep.subr.mxu0 0.0
      %2479 = vmatpush1.msra.mxu0 0.0
      %2480 = vmatprep.subr.mxu0 0.0
      %2481 = vmatpush1.msra.mxu0 0.0
      %2482 = vmatprep.subr.mxu0 0.0
      %2483 = vmatpush1.msra.mxu0 0.0
      %2484 = vmatprep.subr.mxu0 0.0
      %2485 = vmatpush1.msra.mxu0 0.0
      %2486 = vmatprep.subr.mxu0 0.0
      %2487 = vmatpush1.msra.mxu0 0.0
      %2488 = vmatprep.subr.mxu0 0.0
      %2489 = vmatpush1.msra.mxu0 0.0
      %2490 = vmatprep.subr.mxu0 0.0
      %2491 = vmatpush1.msra.mxu0 0.0
      %2492 = vmatprep.subr.mxu0 0.0
      %2493 = vmatpush1.msra.mxu0 0.0
      %2494 = vmatprep.subr.mxu0 0.0
      %2495 = vmatpush1.msra.mxu0 0.0
      %2496 = vmatprep.subr.mxu0 0.0
      %2497 = vmatpush1.msra.mxu0 0.0
      %2498 = vmatprep.subr.mxu0 0.0
      %2499 = vmatpush1.msra.mxu0 0.0
      %2500 = vmatprep.subr.mxu0 0.0
      %2501 = vmatpush1.msra.mxu0 0.0
      %2502 = vmatprep.subr.mxu0 0.0
      %2503 = vmatpush1.msra.mxu0 0.0
      %2504 = vmatprep.subr.mxu0 0.0
      %2505 = vmatpush1.msra.mxu0 0.0
      %2506 = vmatprep.subr.mxu0 0.0
      %2507 = vmatpush1.msra.mxu0 0.0
      %2508 = vmatprep.subr.mxu0 0.0
      %2509 = vmatpush1.msra.mxu0 0.0
      %2510 = vmatprep.subr.mxu0 0.0
      %2511 = vmatpush1.msra.mxu0 0.0
      %2512 = vmatprep.subr.mxu0 0.0
      %2513 = vmatpush1.msra.mxu0 0.0
      %2514 = vmatprep.subr.mxu0 0.0
      %2515 = vmatpush1.msra.mxu0 0.0
      %2516 = vmatprep.subr.mxu0 0.0
      %2517 = vmatpush1.msra.mxu0 0.0
      %2518 = vmatprep.subr.mxu0 0.0
      %2519 = vmatpush1.msra.mxu0 0.0
      %2520 = vmatprep.mubr.f32.mxu0 0.0
      %v2521 = vand.u32 %v2227, 4294901760
      %v2522 = vsub.f32 %v2227, %v2521
      %v2523 = vand.u32 %v2522, 4294901760
      %2524 = vmatmul.mubr.f32.gmra.mrb[0].mxu0 %v2523
      %v2525 = vpop.f32.mrb[0].mxu0
      %v2526 = vadd.f32 %v2452, %v2525
      %v2527 = vpop.f32.mrb[0].mxu0
      %2528 = vdwg.mxu0
      %2529 = vmatprep.subr.mxu0 0.0
      %v2530 = vand.u32 %v1715, 4294901760
      %v2531 = vsub.f32 %v1715, %v2530
      %v2532 = vand.u32 %v2531, 4294901760
      %2533 = vmatpush1.msra.mxu0 %v2532
      %2534 = vmatprep.subr.mxu0 0.0
      %2535 = vmatpush1.msra.mxu0 0.0
      %2536 = vmatprep.subr.mxu0 0.0
      %2537 = vmatpush1.msra.mxu0 0.0
      %2538 = vmatprep.subr.mxu0 0.0
      %2539 = vmatpush1.msra.mxu0 0.0
      %2540 = vmatprep.subr.mxu0 0.0
      %2541 = vmatpush1.msra.mxu0 0.0
      %2542 = vmatprep.subr.mxu0 0.0
      %2543 = vmatpush1.msra.mxu0 0.0
      %2544 = vmatprep.subr.mxu0 0.0
      %2545 = vmatpush1.msra.mxu0 0.0
      %2546 = vmatprep.subr.mxu0 0.0
      %2547 = vmatpush1.msra.mxu0 0.0
      %2548 = vmatprep.subr.mxu0 0.0
      %2549 = vmatpush1.msra.mxu0 0.0
      %2550 = vmatprep.subr.mxu0 0.0
      %2551 = vmatpush1.msra.mxu0 0.0
      %2552 = vmatprep.subr.mxu0 0.0
      %2553 = vmatpush1.msra.mxu0 0.0
      %2554 = vmatprep.subr.mxu0 0.0
      %2555 = vmatpush1.msra.mxu0 0.0
      %2556 = vmatprep.subr.mxu0 0.0
      %2557 = vmatpush1.msra.mxu0 0.0
      %2558 = vmatprep.subr.mxu0 0.0
      %2559 = vmatpush1.msra.mxu0 0.0
      %2560 = vmatprep.subr.mxu0 0.0
      %2561 = vmatpush1.msra.mxu0 0.0
      %2562 = vmatprep.subr.mxu0 0.0
      %2563 = vmatpush1.msra.mxu0 0.0
      %2564 = vmatprep.subr.mxu0 0.0
      %2565 = vmatpush1.msra.mxu0 0.0
      %2566 = vmatprep.subr.mxu0 0.0
      %2567 = vmatpush1.msra.mxu0 0.0
      %2568 = vmatprep.subr.mxu0 0.0
      %2569 = vmatpush1.msra.mxu0 0.0
      %2570 = vmatprep.subr.mxu0 0.0
      %2571 = vmatpush1.msra.mxu0 0.0
      %2572 = vmatprep.subr.mxu0 0.0
      %2573 = vmatpush1.msra.mxu0 0.0
      %2574 = vmatprep.subr.mxu0 0.0
      %2575 = vmatpush1.msra.mxu0 0.0
      %2576 = vmatprep.subr.mxu0 0.0
      %2577 = vmatpush1.msra.mxu0 0.0
      %2578 = vmatprep.subr.mxu0 0.0
      %2579 = vmatpush1.msra.mxu0 0.0
      %2580 = vmatprep.subr.mxu0 0.0
      %2581 = vmatpush1.msra.mxu0 0.0
      %2582 = vmatprep.subr.mxu0 0.0
      %2583 = vmatpush1.msra.mxu0 0.0
      %2584 = vmatprep.subr.mxu0 0.0
      %2585 = vmatpush1.msra.mxu0 0.0
      %2586 = vmatprep.subr.mxu0 0.0
      %2587 = vmatpush1.msra.mxu0 0.0
      %2588 = vmatprep.subr.mxu0 0.0
      %2589 = vmatpush1.msra.mxu0 0.0
      %2590 = vmatprep.subr.mxu0 0.0
      %2591 = vmatpush1.msra.mxu0 0.0
      %2592 = vmatprep.subr.mxu0 0.0
      %2593 = vmatpush1.msra.mxu0 0.0
      %2594 = vmatprep.subr.mxu0 0.0
      %2595 = vmatpush1.msra.mxu0 0.0
      %2596 = vmatprep.mubr.f32.mxu0 0.0
      %v2597 = vand.u32 %v2227, 4294901760
      %2598 = vmatmul.mubr.f32.gmra.mrb[0].mxu0 %v2597
      %v2599 = vpop.f32.mrb[0].mxu0
      %v2600 = vadd.f32 %v2526, %v2599
      %v2601 = vpop.f32.mrb[0].mxu0
      %2602 = vdwg.mxu0
      %2603 = vmatprep.subr.mxu0 0.0
      %v2604 = vand.u32 %v1715, 4294901760
      %2605 = vmatpush1.msra.mxu0 %v2604
      %2606 = vmatprep.subr.mxu0 0.0
      %2607 = vmatpush1.msra.mxu0 0.0
      %2608 = vmatprep.subr.mxu0 0.0
      %2609 = vmatpush1.msra.mxu0 0.0
      %2610 = vmatprep.subr.mxu0 0.0
      %2611 = vmatpush1.msra.mxu0 0.0
      %2612 = vmatprep.subr.mxu0 0.0
      %2613 = vmatpush1.msra.mxu0 0.0
      %2614 = vmatprep.subr.mxu0 0.0
      %2615 = vmatpush1.msra.mxu0 0.0
      %2616 = vmatprep.subr.mxu0 0.0
      %2617 = vmatpush1.msra.mxu0 0.0
      %2618 = vmatprep.subr.mxu0 0.0
      %2619 = vmatpush1.msra.mxu0 0.0
      %2620 = vmatprep.subr.mxu0 0.0
      %2621 = vmatpush1.msra.mxu0 0.0
      %2622 = vmatprep.subr.mxu0 0.0
      %2623 = vmatpush1.msra.mxu0 0.0
      %2624 = vmatprep.subr.mxu0 0.0
      %2625 = vmatpush1.msra.mxu0 0.0
      %2626 = vmatprep.subr.mxu0 0.0
      %2627 = vmatpush1.msra.mxu0 0.0
      %2628 = vmatprep.subr.mxu0 0.0
      %2629 = vmatpush1.msra.mxu0 0.0
      %2630 = vmatprep.subr.mxu0 0.0
      %2631 = vmatpush1.msra.mxu0 0.0
      %2632 = vmatprep.subr.mxu0 0.0
      %2633 = vmatpush1.msra.mxu0 0.0
      %2634 = vmatprep.subr.mxu0 0.0
      %2635 = vmatpush1.msra.mxu0 0.0
      %2636 = vmatprep.subr.mxu0 0.0
      %2637 = vmatpush1.msra.mxu0 0.0
      %2638 = vmatprep.subr.mxu0 0.0
      %2639 = vmatpush1.msra.mxu0 0.0
      %2640 = vmatprep.subr.mxu0 0.0
      %2641 = vmatpush1.msra.mxu0 0.0
      %2642 = vmatprep.subr.mxu0 0.0
      %2643 = vmatpush1.msra.mxu0 0.0
      %2644 = vmatprep.subr.mxu0 0.0
      %2645 = vmatpush1.msra.mxu0 0.0
      %2646 = vmatprep.subr.mxu0 0.0
      %2647 = vmatpush1.msra.mxu0 0.0
      %2648 = vmatprep.subr.mxu0 0.0
      %2649 = vmatpush1.msra.mxu0 0.0
      %2650 = vmatprep.subr.mxu0 0.0
      %2651 = vmatpush1.msra.mxu0 0.0
      %2652 = vmatprep.subr.mxu0 0.0
      %2653 = vmatpush1.msra.mxu0 0.0
      %2654 = vmatprep.subr.mxu0 0.0
      %2655 = vmatpush1.msra.mxu0 0.0
      %2656 = vmatprep.subr.mxu0 0.0
      %2657 = vmatpush1.msra.mxu0 0.0
      %2658 = vmatprep.subr.mxu0 0.0
      %2659 = vmatpush1.msra.mxu0 0.0
      %2660 = vmatprep.subr.mxu0 0.0
      %2661 = vmatpush1.msra.mxu0 0.0
      %2662 = vmatprep.subr.mxu0 0.0
      %2663 = vmatpush1.msra.mxu0 0.0
      %2664 = vmatprep.subr.mxu0 0.0
      %2665 = vmatpush1.msra.mxu0 0.0
      %2666 = vmatprep.subr.mxu0 0.0
      %2667 = vmatpush1.msra.mxu0 0.0
      %2668 = vmatprep.mubr.f32.mxu0 0.0
      %v2669 = vand.u32 %v2227, 4294901760
      %2670 = vmatmul.mubr.f32.gmra.mrb[0].mxu0 %v2669
      %v2671 = vpop.f32.mrb[0].mxu0
      %v2672 = vadd.f32 %v2600, %v2671
      %v2673 = vpop.f32.mrb[0].mxu0
      %2674 = vdwg.mxu0
      %v2676 = vsel %vm2225, %v154, 0
      %2678 = vmatprep.subr.mxu0 0.0
      %v2679 = vand.u32 %v1707, 4294901760
      %2680 = vmatpush1.msra.mxu0 %v2679
      %2681 = vmatprep.subr.mxu0 0.0
      %2682 = vmatpush1.msra.mxu0 0.0
      %2683 = vmatprep.subr.mxu0 0.0
      %2684 = vmatpush1.msra.mxu0 0.0
      %2685 = vmatprep.subr.mxu0 0.0
      %2686 = vmatpush1.msra.mxu0 0.0
      %2687 = vmatprep.subr.mxu0 0.0
      %2688 = vmatpush1.msra.mxu0 0.0
      %2689 = vmatprep.subr.mxu0 0.0
      %2690 = vmatpush1.msra.mxu0 0.0
      %2691 = vmatprep.subr.mxu0 0.0
      %2692 = vmatpush1.msra.mxu0 0.0
      %2693 = vmatprep.subr.mxu0 0.0
      %2694 = vmatpush1.msra.mxu0 0.0
      %2695 = vmatprep.subr.mxu0 0.0
      %2696 = vmatpush1.msra.mxu0 0.0
      %2697 = vmatprep.subr.mxu0 0.0
      %2698 = vmatpush1.msra.mxu0 0.0
      %2699 = vmatprep.subr.mxu0 0.0
      %2700 = vmatpush1.msra.mxu0 0.0
      %2701 = vmatprep.subr.mxu0 0.0
      %2702 = vmatpush1.msra.mxu0 0.0
      %2703 = vmatprep.subr.mxu0 0.0
      %2704 = vmatpush1.msra.mxu0 0.0
      %2705 = vmatprep.subr.mxu0 0.0
      %2706 = vmatpush1.msra.mxu0 0.0
      %2707 = vmatprep.subr.mxu0 0.0
      %2708 = vmatpush1.msra.mxu0 0.0
      %2709 = vmatprep.subr.mxu0 0.0
      %2710 = vmatpush1.msra.mxu0 0.0
      %2711 = vmatprep.subr.mxu0 0.0
      %2712 = vmatpush1.msra.mxu0 0.0
      %2713 = vmatprep.subr.mxu0 0.0
      %2714 = vmatpush1.msra.mxu0 0.0
      %2715 = vmatprep.subr.mxu0 0.0
      %2716 = vmatpush1.msra.mxu0 0.0
      %2717 = vmatprep.subr.mxu0 0.0
      %2718 = vmatpush1.msra.mxu0 0.0
      %2719 = vmatprep.subr.mxu0 0.0
      %2720 = vmatpush1.msra.mxu0 0.0
      %2721 = vmatprep.subr.mxu0 0.0
      %2722 = vmatpush1.msra.mxu0 0.0
      %2723 = vmatprep.subr.mxu0 0.0
      %2724 = vmatpush1.msra.mxu0 0.0
      %2725 = vmatprep.subr.mxu0 0.0
      %2726 = vmatpush1.msra.mxu0 0.0
      %2727 = vmatprep.subr.mxu0 0.0
      %2728 = vmatpush1.msra.mxu0 0.0
      %2729 = vmatprep.subr.mxu0 0.0
      %2730 = vmatpush1.msra.mxu0 0.0
      %2731 = vmatprep.subr.mxu0 0.0
      %2732 = vmatpush1.msra.mxu0 0.0
      %2733 = vmatprep.subr.mxu0 0.0
      %2734 = vmatpush1.msra.mxu0 0.0
      %2735 = vmatprep.subr.mxu0 0.0
      %2736 = vmatpush1.msra.mxu0 0.0
      %2737 = vmatprep.subr.mxu0 0.0
      %2738 = vmatpush1.msra.mxu0 0.0
      %2739 = vmatprep.subr.mxu0 0.0
      %2740 = vmatpush1.msra.mxu0 0.0
      %2741 = vmatprep.subr.mxu0 0.0
      %2742 = vmatpush1.msra.mxu0 0.0
      %2743 = vmatprep.mubr.f32.mxu0 0.0
      %v2744 = vand.u32 %v2676, 4294901760
      %v2745 = vsub.f32 %v2676, %v2744
      %v2746 = vand.u32 %v2745, 4294901760
      %v2747 = vsub.f32 %v2745, %v2746
      %v2748 = vand.u32 %v2747, 4294901760
      %2749 = vmatmul.mubr.f32.gmra.mrb[0].mxu0 %v2748
      %v2750 = vpop.f32.mrb[0].mxu0
      %v2751 = vadd.f32 %v2672, %v2750
      %v2752 = vpop.f32.mrb[0].mxu0
      %2753 = vdwg.mxu0
      %2754 = vmatprep.subr.mxu0 0.0
      %v2755 = vand.u32 %v1707, 4294901760
      %v2756 = vsub.f32 %v1707, %v2755
      %v2757 = vand.u32 %v2756, 4294901760
      %v2758 = vsub.f32 %v2756, %v2757
      %v2759 = vand.u32 %v2758, 4294901760
      %2760 = vmatpush1.msra.mxu0 %v2759
      %2761 = vmatprep.subr.mxu0 0.0
      %2762 = vmatpush1.msra.mxu0 0.0
      %2763 = vmatprep.subr.mxu0 0.0
      %2764 = vmatpush1.msra.mxu0 0.0
      %2765 = vmatprep.subr.mxu0 0.0
      %2766 = vmatpush1.msra.mxu0 0.0
      %2767 = vmatprep.subr.mxu0 0.0
      %2768 = vmatpush1.msra.mxu0 0.0
      %2769 = vmatprep.subr.mxu0 0.0
      %2770 = vmatpush1.msra.mxu0 0.0
      %2771 = vmatprep.subr.mxu0 0.0
      %2772 = vmatpush1.msra.mxu0 0.0
      %2773 = vmatprep.subr.mxu0 0.0
      %2774 = vmatpush1.msra.mxu0 0.0
      %2775 = vmatprep.subr.mxu0 0.0
      %2776 = vmatpush1.msra.mxu0 0.0
      %2777 = vmatprep.subr.mxu0 0.0
      %2778 = vmatpush1.msra.mxu0 0.0
      %2779 = vmatprep.subr.mxu0 0.0
      %2780 = vmatpush1.msra.mxu0 0.0
      %2781 = vmatprep.subr.mxu0 0.0
      %2782 = vmatpush1.msra.mxu0 0.0
      %2783 = vmatprep.subr.mxu0 0.0
      %2784 = vmatpush1.msra.mxu0 0.0
      %2785 = vmatprep.subr.mxu0 0.0
      %2786 = vmatpush1.msra.mxu0 0.0
      %2787 = vmatprep.subr.mxu0 0.0
      %2788 = vmatpush1.msra.mxu0 0.0
      %2789 = vmatprep.subr.mxu0 0.0
      %2790 = vmatpush1.msra.mxu0 0.0
      %2791 = vmatprep.subr.mxu0 0.0
      %2792 = vmatpush1.msra.mxu0 0.0
      %2793 = vmatprep.subr.mxu0 0.0
      %2794 = vmatpush1.msra.mxu0 0.0
      %2795 = vmatprep.subr.mxu0 0.0
      %2796 = vmatpush1.msra.mxu0 0.0
      %2797 = vmatprep.subr.mxu0 0.0
      %2798 = vmatpush1.msra.mxu0 0.0
      %2799 = vmatprep.subr.mxu0 0.0
      %2800 = vmatpush1.msra.mxu0 0.0
      %2801 = vmatprep.subr.mxu0 0.0
      %2802 = vmatpush1.msra.mxu0 0.0
      %2803 = vmatprep.subr.mxu0 0.0
      %2804 = vmatpush1.msra.mxu0 0.0
      %2805 = vmatprep.subr.mxu0 0.0
      %2806 = vmatpush1.msra.mxu0 0.0
      %2807 = vmatprep.subr.mxu0 0.0
      %2808 = vmatpush1.msra.mxu0 0.0
      %2809 = vmatprep.subr.mxu0 0.0
      %2810 = vmatpush1.msra.mxu0 0.0
      %2811 = vmatprep.subr.mxu0 0.0
      %2812 = vmatpush1.msra.mxu0 0.0
      %2813 = vmatprep.subr.mxu0 0.0
      %2814 = vmatpush1.msra.mxu0 0.0
      %2815 = vmatprep.subr.mxu0 0.0
      %2816 = vmatpush1.msra.mxu0 0.0
      %2817 = vmatprep.subr.mxu0 0.0
      %2818 = vmatpush1.msra.mxu0 0.0
      %2819 = vmatprep.subr.mxu0 0.0
      %2820 = vmatpush1.msra.mxu0 0.0
      %2821 = vmatprep.subr.mxu0 0.0
      %2822 = vmatpush1.msra.mxu0 0.0
      %2823 = vmatprep.mubr.f32.mxu0 0.0
      %v2824 = vand.u32 %v2676, 4294901760
      %2825 = vmatmul.mubr.f32.gmra.mrb[0].mxu0 %v2824
      %v2826 = vpop.f32.mrb[0].mxu0
      %v2827 = vadd.f32 %v2751, %v2826
      %v2828 = vpop.f32.mrb[0].mxu0
      %2829 = vdwg.mxu0
      %2830 = vmatprep.subr.mxu0 0.0
      %v2831 = vand.u32 %v1707, 4294901760
      %v2832 = vsub.f32 %v1707, %v2831
      %2833 = vmatpush1.msra.mxu0 %v2832
      %2834 = vmatprep.subr.mxu0 0.0
      %2835 = vmatpush1.msra.mxu0 0.0
      %2836 = vmatprep.subr.mxu0 0.0
      %2837 = vmatpush1.msra.mxu0 0.0
      %2838 = vmatprep.subr.mxu0 0.0
      %2839 = vmatpush1.msra.mxu0 0.0
      %2840 = vmatprep.subr.mxu0 0.0
      %2841 = vmatpush1.msra.mxu0 0.0
      %2842 = vmatprep.subr.mxu0 0.0
      %2843 = vmatpush1.msra.mxu0 0.0
      %2844 = vmatprep.subr.mxu0 0.0
      %2845 = vmatpush1.msra.mxu0 0.0
      %2846 = vmatprep.subr.mxu0 0.0
      %2847 = vmatpush1.msra.mxu0 0.0
      %2848 = vmatprep.subr.mxu0 0.0
      %2849 = vmatpush1.msra.mxu0 0.0
      %2850 = vmatprep.subr.mxu0 0.0
      %2851 = vmatpush1.msra.mxu0 0.0
      %2852 = vmatprep.subr.mxu0 0.0
      %2853 = vmatpush1.msra.mxu0 0.0
      %2854 = vmatprep.subr.mxu0 0.0
      %2855 = vmatpush1.msra.mxu0 0.0
      %2856 = vmatprep.subr.mxu0 0.0
      %2857 = vmatpush1.msra.mxu0 0.0
      %2858 = vmatprep.subr.mxu0 0.0
      %2859 = vmatpush1.msra.mxu0 0.0
      %2860 = vmatprep.subr.mxu0 0.0
      %2861 = vmatpush1.msra.mxu0 0.0
      %2862 = vmatprep.subr.mxu0 0.0
      %2863 = vmatpush1.msra.mxu0 0.0
      %2864 = vmatprep.subr.mxu0 0.0
      %2865 = vmatpush1.msra.mxu0 0.0
      %2866 = vmatprep.subr.mxu0 0.0
      %2867 = vmatpush1.msra.mxu0 0.0
      %2868 = vmatprep.subr.mxu0 0.0
      %2869 = vmatpush1.msra.mxu0 0.0
      %2870 = vmatprep.subr.mxu0 0.0
      %2871 = vmatpush1.msra.mxu0 0.0
      %2872 = vmatprep.subr.mxu0 0.0
      %2873 = vmatpush1.msra.mxu0 0.0
      %2874 = vmatprep.subr.mxu0 0.0
      %2875 = vmatpush1.msra.mxu0 0.0
      %2876 = vmatprep.subr.mxu0 0.0
      %2877 = vmatpush1.msra.mxu0 0.0
      %2878 = vmatprep.subr.mxu0 0.0
      %2879 = vmatpush1.msra.mxu0 0.0
      %2880 = vmatprep.subr.mxu0 0.0
      %2881 = vmatpush1.msra.mxu0 0.0
      %2882 = vmatprep.subr.mxu0 0.0
      %2883 = vmatpush1.msra.mxu0 0.0
      %2884 = vmatprep.subr.mxu0 0.0
      %2885 = vmatpush1.msra.mxu0 0.0
      %2886 = vmatprep.subr.mxu0 0.0
      %2887 = vmatpush1.msra.mxu0 0.0
      %2888 = vmatprep.subr.mxu0 0.0
      %2889 = vmatpush1.msra.mxu0 0.0
      %2890 = vmatprep.subr.mxu0 0.0
      %2891 = vmatpush1.msra.mxu0 0.0
      %2892 = vmatprep.subr.mxu0 0.0
      %2893 = vmatpush1.msra.mxu0 0.0
      %2894 = vmatprep.subr.mxu0 0.0
      %2895 = vmatpush1.msra.mxu0 0.0
      %2896 = vmatprep.mubr.f32.mxu0 0.0
      %v2897 = vand.u32 %v2676, 4294901760
      %v2898 = vsub.f32 %v2676, %v2897
      %2899 = vmatmul.mubr.f32.gmra.mrb[0].mxu0 %v2898
      %v2900 = vpop.f32.mrb[0].mxu0
      %v2901 = vadd.f32 %v2827, %v2900
      %v2902 = vpop.f32.mrb[0].mxu0
      %2903 = vdwg.mxu0
      %2904 = vmatprep.subr.mxu0 0.0
      %v2905 = vand.u32 %v1707, 4294901760
      %2906 = vmatpush1.msra.mxu0 %v2905
      %2907 = vmatprep.subr.mxu0 0.0
      %2908 = vmatpush1.msra.mxu0 0.0
      %2909 = vmatprep.subr.mxu0 0.0
      %2910 = vmatpush1.msra.mxu0 0.0
      %2911 = vmatprep.subr.mxu0 0.0
      %2912 = vmatpush1.msra.mxu0 0.0
      %2913 = vmatprep.subr.mxu0 0.0
      %2914 = vmatpush1.msra.mxu0 0.0
      %2915 = vmatprep.subr.mxu0 0.0
      %2916 = vmatpush1.msra.mxu0 0.0
      %2917 = vmatprep.subr.mxu0 0.0
      %2918 = vmatpush1.msra.mxu0 0.0
      %2919 = vmatprep.subr.mxu0 0.0
      %2920 = vmatpush1.msra.mxu0 0.0
      %2921 = vmatprep.subr.mxu0 0.0
      %2922 = vmatpush1.msra.mxu0 0.0
      %2923 = vmatprep.subr.mxu0 0.0
      %2924 = vmatpush1.msra.mxu0 0.0
      %2925 = vmatprep.subr.mxu0 0.0
      %2926 = vmatpush1.msra.mxu0 0.0
      %2927 = vmatprep.subr.mxu0 0.0
      %2928 = vmatpush1.msra.mxu0 0.0
      %2929 = vmatprep.subr.mxu0 0.0
      %2930 = vmatpush1.msra.mxu0 0.0
      %2931 = vmatprep.subr.mxu0 0.0
      %2932 = vmatpush1.msra.mxu0 0.0
      %2933 = vmatprep.subr.mxu0 0.0
      %2934 = vmatpush1.msra.mxu0 0.0
      %2935 = vmatprep.subr.mxu0 0.0
      %2936 = vmatpush1.msra.mxu0 0.0
      %2937 = vmatprep.subr.mxu0 0.0
      %2938 = vmatpush1.msra.mxu0 0.0
      %2939 = vmatprep.subr.mxu0 0.0
      %2940 = vmatpush1.msra.mxu0 0.0
      %2941 = vmatprep.subr.mxu0 0.0
      %2942 = vmatpush1.msra.mxu0 0.0
      %2943 = vmatprep.subr.mxu0 0.0
      %2944 = vmatpush1.msra.mxu0 0.0
      %2945 = vmatprep.subr.mxu0 0.0
      %2946 = vmatpush1.msra.mxu0 0.0
      %2947 = vmatprep.subr.mxu0 0.0
      %2948 = vmatpush1.msra.mxu0 0.0
      %2949 = vmatprep.subr.mxu0 0.0
      %2950 = vmatpush1.msra.mxu0 0.0
      %2951 = vmatprep.subr.mxu0 0.0
      %2952 = vmatpush1.msra.mxu0 0.0
      %2953 = vmatprep.subr.mxu0 0.0
      %2954 = vmatpush1.msra.mxu0 0.0
      %2955 = vmatprep.subr.mxu0 0.0
      %2956 = vmatpush1.msra.mxu0 0.0
      %2957 = vmatprep.subr.mxu0 0.0
      %2958 = vmatpush1.msra.mxu0 0.0
      %2959 = vmatprep.subr.mxu0 0.0
      %2960 = vmatpush1.msra.mxu0 0.0
      %2961 = vmatprep.subr.mxu0 0.0
      %2962 = vmatpush1.msra.mxu0 0.0
      %2963 = vmatprep.subr.mxu0 0.0
      %2964 = vmatpush1.msra.mxu0 0.0
      %2965 = vmatprep.subr.mxu0 0.0
      %2966 = vmatpush1.msra.mxu0 0.0
      %2967 = vmatprep.subr.mxu0 0.0
      %2968 = vmatpush1.msra.mxu0 0.0
      %2969 = vmatprep.mubr.f32.mxu0 0.0
      %v2970 = vand.u32 %v2676, 4294901760
      %v2971 = vsub.f32 %v2676, %v2970
      %v2972 = vand.u32 %v2971, 4294901760
      %2973 = vmatmul.mubr.f32.gmra.mrb[0].mxu0 %v2972
      %v2974 = vpop.f32.mrb[0].mxu0
      %v2975 = vadd.f32 %v2901, %v2974
      %v2976 = vpop.f32.mrb[0].mxu0
      %2977 = vdwg.mxu0
      %2978 = vmatprep.subr.mxu0 0.0
      %v2979 = vand.u32 %v1707, 4294901760
      %v2980 = vsub.f32 %v1707, %v2979
      %v2981 = vand.u32 %v2980, 4294901760
      %2982 = vmatpush1.msra.mxu0 %v2981
      %2983 = vmatprep.subr.mxu0 0.0
      %2984 = vmatpush1.msra.mxu0 0.0
      %2985 = vmatprep.subr.mxu0 0.0
      %2986 = vmatpush1.msra.mxu0 0.0
      %2987 = vmatprep.subr.mxu0 0.0
      %2988 = vmatpush1.msra.mxu0 0.0
      %2989 = vmatprep.subr.mxu0 0.0
      %2990 = vmatpush1.msra.mxu0 0.0
      %2991 = vmatprep.subr.mxu0 0.0
      %2992 = vmatpush1.msra.mxu0 0.0
      %2993 = vmatprep.subr.mxu0 0.0
      %2994 = vmatpush1.msra.mxu0 0.0
      %2995 = vmatprep.subr.mxu0 0.0
      %2996 = vmatpush1.msra.mxu0 0.0
      %2997 = vmatprep.subr.mxu0 0.0
      %2998 = vmatpush1.msra.mxu0 0.0
      %2999 = vmatprep.subr.mxu0 0.0
      %3000 = vmatpush1.msra.mxu0 0.0
      %3001 = vmatprep.subr.mxu0 0.0
      %3002 = vmatpush1.msra.mxu0 0.0
      %3003 = vmatprep.subr.mxu0 0.0
      %3004 = vmatpush1.msra.mxu0 0.0
      %3005 = vmatprep.subr.mxu0 0.0
      %3006 = vmatpush1.msra.mxu0 0.0
      %3007 = vmatprep.subr.mxu0 0.0
      %3008 = vmatpush1.msra.mxu0 0.0
      %3009 = vmatprep.subr.mxu0 0.0
      %3010 = vmatpush1.msra.mxu0 0.0
      %3011 = vmatprep.subr.mxu0 0.0
      %3012 = vmatpush1.msra.mxu0 0.0
      %3013 = vmatprep.subr.mxu0 0.0
      %3014 = vmatpush1.msra.mxu0 0.0
      %3015 = vmatprep.subr.mxu0 0.0
      %3016 = vmatpush1.msra.mxu0 0.0
      %3017 = vmatprep.subr.mxu0 0.0
      %3018 = vmatpush1.msra.mxu0 0.0
      %3019 = vmatprep.subr.mxu0 0.0
      %3020 = vmatpush1.msra.mxu0 0.0
      %3021 = vmatprep.subr.mxu0 0.0
      %3022 = vmatpush1.msra.mxu0 0.0
      %3023 = vmatprep.subr.mxu0 0.0
      %3024 = vmatpush1.msra.mxu0 0.0
      %3025 = vmatprep.subr.mxu0 0.0
      %3026 = vmatpush1.msra.mxu0 0.0
      %3027 = vmatprep.subr.mxu0 0.0
      %3028 = vmatpush1.msra.mxu0 0.0
      %3029 = vmatprep.subr.mxu0 0.0
      %3030 = vmatpush1.msra.mxu0 0.0
      %3031 = vmatprep.subr.mxu0 0.0
      %3032 = vmatpush1.msra.mxu0 0.0
      %3033 = vmatprep.subr.mxu0 0.0
      %3034 = vmatpush1.msra.mxu0 0.0
      %3035 = vmatprep.subr.mxu0 0.0
      %3036 = vmatpush1.msra.mxu0 0.0
      %3037 = vmatprep.subr.mxu0 0.0
      %3038 = vmatpush1.msra.mxu0 0.0
      %3039 = vmatprep.subr.mxu0 0.0
      %3040 = vmatpush1.msra.mxu0 0.0
      %3041 = vmatprep.subr.mxu0 0.0
      %3042 = vmatpush1.msra.mxu0 0.0
      %3043 = vmatprep.subr.mxu0 0.0
      %3044 = vmatpush1.msra.mxu0 0.0
      %3045 = vmatprep.mubr.f32.mxu0 0.0
      %v3046 = vand.u32 %v2676, 4294901760
      %3047 = vmatmul.mubr.f32.gmra.mrb[0].mxu0 %v3046
      %v3048 = vpop.f32.mrb[0].mxu0
      %v3049 = vadd.f32 %v2975, %v3048
      %v3050 = vpop.f32.mrb[0].mxu0
      %3051 = vdwg.mxu0
      %3052 = vmatprep.subr.mxu0 0.0
      %v3053 = vand.u32 %v1707, 4294901760
      %3054 = vmatpush1.msra.mxu0 %v3053
      %3055 = vmatprep.subr.mxu0 0.0
      %3056 = vmatpush1.msra.mxu0 0.0
      %3057 = vmatprep.subr.mxu0 0.0
      %3058 = vmatpush1.msra.mxu0 0.0
      %3059 = vmatprep.subr.mxu0 0.0
      %3060 = vmatpush1.msra.mxu0 0.0
      %3061 = vmatprep.subr.mxu0 0.0
      %3062 = vmatpush1.msra.mxu0 0.0
      %3063 = vmatprep.subr.mxu0 0.0
      %3064 = vmatpush1.msra.mxu0 0.0
      %3065 = vmatprep.subr.mxu0 0.0
      %3066 = vmatpush1.msra.mxu0 0.0
      %3067 = vmatprep.subr.mxu0 0.0
      %3068 = vmatpush1.msra.mxu0 0.0
      %3069 = vmatprep.subr.mxu0 0.0
      %3070 = vmatpush1.msra.mxu0 0.0
      %3071 = vmatprep.subr.mxu0 0.0
      %3072 = vmatpush1.msra.mxu0 0.0
      %3073 = vmatprep.subr.mxu0 0.0
      %3074 = vmatpush1.msra.mxu0 0.0
      %3075 = vmatprep.subr.mxu0 0.0
      %3076 = vmatpush1.msra.mxu0 0.0
      %3077 = vmatprep.subr.mxu0 0.0
      %3078 = vmatpush1.msra.mxu0 0.0
      %3079 = vmatprep.subr.mxu0 0.0
      %3080 = vmatpush1.msra.mxu0 0.0
      %3081 = vmatprep.subr.mxu0 0.0
      %3082 = vmatpush1.msra.mxu0 0.0
      %3083 = vmatprep.subr.mxu0 0.0
      %3084 = vmatpush1.msra.mxu0 0.0
      %3085 = vmatprep.subr.mxu0 0.0
      %3086 = vmatpush1.msra.mxu0 0.0
      %3087 = vmatprep.subr.mxu0 0.0
      %3088 = vmatpush1.msra.mxu0 0.0
      %3089 = vmatprep.subr.mxu0 0.0
      %3090 = vmatpush1.msra.mxu0 0.0
      %3091 = vmatprep.subr.mxu0 0.0
      %3092 = vmatpush1.msra.mxu0 0.0
      %3093 = vmatprep.subr.mxu0 0.0
      %3094 = vmatpush1.msra.mxu0 0.0
      %3095 = vmatprep.subr.mxu0 0.0
      %3096 = vmatpush1.msra.mxu0 0.0
      %3097 = vmatprep.subr.mxu0 0.0
      %3098 = vmatpush1.msra.mxu0 0.0
      %3099 = vmatprep.subr.mxu0 0.0
      %3100 = vmatpush1.msra.mxu0 0.0
      %3101 = vmatprep.subr.mxu0 0.0
      %3102 = vmatpush1.msra.mxu0 0.0
      %3103 = vmatprep.subr.mxu0 0.0
      %3104 = vmatpush1.msra.mxu0 0.0
      %3105 = vmatprep.subr.mxu0 0.0
      %3106 = vmatpush1.msra.mxu0 0.0
      %3107 = vmatprep.subr.mxu0 0.0
      %3108 = vmatpush1.msra.mxu0 0.0
      %3109 = vmatprep.subr.mxu0 0.0
      %3110 = vmatpush1.msra.mxu0 0.0
      %3111 = vmatprep.subr.mxu0 0.0
      %3112 = vmatpush1.msra.mxu0 0.0
      %3113 = vmatprep.subr.mxu0 0.0
      %3114 = vmatpush1.msra.mxu0 0.0
      %3115 = vmatprep.subr.mxu0 0.0
      %3116 = vmatpush1.msra.mxu0 0.0
      %3117 = vmatprep.mubr.f32.mxu0 0.0
      %v3118 = vand.u32 %v2676, 4294901760
      %3119 = vmatmul.mubr.f32.gmra.mrb[0].mxu0 %v3118
      %v3120 = vpop.f32.mrb[0].mxu0
      %v3121 = vadd.f32 %v3049, %v3120
      %v3122 = vpop.f32.mrb[0].mxu0
      %3123 = vdwg.mxu0
      %v3125 = vsel %vm1716, %v152, 0
      %3127 = vmatprep.subr.mxu0 0.0
      %v3128 = vand.u32 %v2216, 4294901760
      %3129 = vmatpush1.msra.mxu0 %v3128
      %3130 = vmatprep.subr.mxu0 0.0
      %v3131 = vand.u32 %v2222, 4294901760
      %3132 = vmatpush1.msra.mxu0 %v3131
      %3133 = vmatprep.subr.mxu0 0.0
      %3134 = vmatpush1.msra.mxu0 0.0
      %3135 = vmatprep.subr.mxu0 0.0
      %3136 = vmatpush1.msra.mxu0 0.0
      %3137 = vmatprep.subr.mxu0 0.0
      %3138 = vmatpush1.msra.mxu0 0.0
      %3139 = vmatprep.subr.mxu0 0.0
      %3140 = vmatpush1.msra.mxu0 0.0
      %3141 = vmatprep.subr.mxu0 0.0
      %3142 = vmatpush1.msra.mxu0 0.0
      %3143 = vmatprep.subr.mxu0 0.0
      %3144 = vmatpush1.msra.mxu0 0.0
      %3145 = vmatprep.subr.mxu0 0.0
      %3146 = vmatpush1.msra.mxu0 0.0
      %3147 = vmatprep.subr.mxu0 0.0
      %3148 = vmatpush1.msra.mxu0 0.0
      %3149 = vmatprep.subr.mxu0 0.0
      %3150 = vmatpush1.msra.mxu0 0.0
      %3151 = vmatprep.subr.mxu0 0.0
      %3152 = vmatpush1.msra.mxu0 0.0
      %3153 = vmatprep.subr.mxu0 0.0
      %3154 = vmatpush1.msra.mxu0 0.0
      %3155 = vmatprep.subr.mxu0 0.0
      %3156 = vmatpush1.msra.mxu0 0.0
      %3157 = vmatprep.subr.mxu0 0.0
      %3158 = vmatpush1.msra.mxu0 0.0
      %3159 = vmatprep.subr.mxu0 0.0
      %3160 = vmatpush1.msra.mxu0 0.0
      %3161 = vmatprep.subr.mxu0 0.0
      %3162 = vmatpush1.msra.mxu0 0.0
      %3163 = vmatprep.subr.mxu0 0.0
      %3164 = vmatpush1.msra.mxu0 0.0
      %3165 = vmatprep.subr.mxu0 0.0
      %3166 = vmatpush1.msra.mxu0 0.0
      %3167 = vmatprep.subr.mxu0 0.0
      %3168 = vmatpush1.msra.mxu0 0.0
      %3169 = vmatprep.subr.mxu0 0.0
      %3170 = vmatpush1.msra.mxu0 0.0
      %3171 = vmatprep.subr.mxu0 0.0
      %3172 = vmatpush1.msra.mxu0 0.0
      %3173 = vmatprep.subr.mxu0 0.0
      %3174 = vmatpush1.msra.mxu0 0.0
      %3175 = vmatprep.subr.mxu0 0.0
      %3176 = vmatpush1.msra.mxu0 0.0
      %3177 = vmatprep.subr.mxu0 0.0
      %3178 = vmatpush1.msra.mxu0 0.0
      %3179 = vmatprep.subr.mxu0 0.0
      %3180 = vmatpush1.msra.mxu0 0.0
      %3181 = vmatprep.subr.mxu0 0.0
      %3182 = vmatpush1.msra.mxu0 0.0
      %3183 = vmatprep.subr.mxu0 0.0
      %3184 = vmatpush1.msra.mxu0 0.0
      %3185 = vmatprep.subr.mxu0 0.0
      %3186 = vmatpush1.msra.mxu0 0.0
      %3187 = vmatprep.subr.mxu0 0.0
      %3188 = vmatpush1.msra.mxu0 0.0
      %3189 = vmatprep.subr.mxu0 0.0
      %3190 = vmatpush1.msra.mxu0 0.0
      %3191 = vmatprep.subr.mxu0 0.0
      %3192 = vmatpush1.msra.mxu0 0.0
      %3193 = vmatprep.mubr.f32.mxu0 0.0
      %v3194 = vand.u32 %v3125, 4294901760
      %v3195 = vsub.f32 %v3125, %v3194
      %v3196 = vand.u32 %v3195, 4294901760
      %v3197 = vsub.f32 %v3195, %v3196
      %v3198 = vand.u32 %v3197, 4294901760
      %3199 = vmatmul.mubr.f32.gmra.mrb[0].mxu0 %v3198
      %v3200 = vpop.f32.mrb[0].mxu0
      %v3201 = vadd.f32 0.0, %v3200
      %v3202 = vpop.f32.mrb[0].mxu0
      %3203 = vdwg.mxu0
      %3204 = vmatprep.subr.mxu0 0.0
      %v3205 = vand.u32 %v2216, 4294901760
      %v3206 = vsub.f32 %v2216, %v3205
      %v3207 = vand.u32 %v3206, 4294901760
      %v3208 = vsub.f32 %v3206, %v3207
      %v3209 = vand.u32 %v3208, 4294901760
      %3210 = vmatpush1.msra.mxu0 %v3209
      %3211 = vmatprep.subr.mxu0 0.0
      %v3212 = vand.u32 %v2222, 4294901760
      %v3213 = vsub.f32 %v2222, %v3212
      %v3214 = vand.u32 %v3213, 4294901760
      %v3215 = vsub.f32 %v3213, %v3214
      %v3216 = vand.u32 %v3215, 4294901760
      %3217 = vmatpush1.msra.mxu0 %v3216
      %3218 = vmatprep.subr.mxu0 0.0
      %3219 = vmatpush1.msra.mxu0 0.0
      %3220 = vmatprep.subr.mxu0 0.0
      %3221 = vmatpush1.msra.mxu0 0.0
      %3222 = vmatprep.subr.mxu0 0.0
      %3223 = vmatpush1.msra.mxu0 0.0
      %3224 = vmatprep.subr.mxu0 0.0
      %3225 = vmatpush1.msra.mxu0 0.0
      %3226 = vmatprep.subr.mxu0 0.0
      %3227 = vmatpush1.msra.mxu0 0.0
      %3228 = vmatprep.subr.mxu0 0.0
      %3229 = vmatpush1.msra.mxu0 0.0
      %3230 = vmatprep.subr.mxu0 0.0
      %3231 = vmatpush1.msra.mxu0 0.0
      %3232 = vmatprep.subr.mxu0 0.0
      %3233 = vmatpush1.msra.mxu0 0.0
      %3234 = vmatprep.subr.mxu0 0.0
      %3235 = vmatpush1.msra.mxu0 0.0
      %3236 = vmatprep.subr.mxu0 0.0
      %3237 = vmatpush1.msra.mxu0 0.0
      %3238 = vmatprep.subr.mxu0 0.0
      %3239 = vmatpush1.msra.mxu0 0.0
      %3240 = vmatprep.subr.mxu0 0.0
      %3241 = vmatpush1.msra.mxu0 0.0
      %3242 = vmatprep.subr.mxu0 0.0
      %3243 = vmatpush1.msra.mxu0 0.0
      %3244 = vmatprep.subr.mxu0 0.0
      %3245 = vmatpush1.msra.mxu0 0.0
      %3246 = vmatprep.subr.mxu0 0.0
      %3247 = vmatpush1.msra.mxu0 0.0
      %3248 = vmatprep.subr.mxu0 0.0
      %3249 = vmatpush1.msra.mxu0 0.0
      %3250 = vmatprep.subr.mxu0 0.0
      %3251 = vmatpush1.msra.mxu0 0.0
      %3252 = vmatprep.subr.mxu0 0.0
      %3253 = vmatpush1.msra.mxu0 0.0
      %3254 = vmatprep.subr.mxu0 0.0
      %3255 = vmatpush1.msra.mxu0 0.0
      %3256 = vmatprep.subr.mxu0 0.0
      %3257 = vmatpush1.msra.mxu0 0.0
      %3258 = vmatprep.subr.mxu0 0.0
      %3259 = vmatpush1.msra.mxu0 0.0
      %3260 = vmatprep.subr.mxu0 0.0
      %3261 = vmatpush1.msra.mxu0 0.0
      %3262 = vmatprep.subr.mxu0 0.0
      %3263 = vmatpush1.msra.mxu0 0.0
      %3264 = vmatprep.subr.mxu0 0.0
      %3265 = vmatpush1.msra.mxu0 0.0
      %3266 = vmatprep.subr.mxu0 0.0
      %3267 = vmatpush1.msra.mxu0 0.0
      %3268 = vmatprep.subr.mxu0 0.0
      %3269 = vmatpush1.msra.mxu0 0.0
      %3270 = vmatprep.subr.mxu0 0.0
      %3271 = vmatpush1.msra.mxu0 0.0
      %3272 = vmatprep.subr.mxu0 0.0
      %3273 = vmatpush1.msra.mxu0 0.0
      %3274 = vmatprep.subr.mxu0 0.0
      %3275 = vmatpush1.msra.mxu0 0.0
      %3276 = vmatprep.subr.mxu0 0.0
      %3277 = vmatpush1.msra.mxu0 0.0
      %3278 = vmatprep.mubr.f32.mxu0 0.0
      %v3279 = vand.u32 %v3125, 4294901760
      %3280 = vmatmul.mubr.f32.gmra.mrb[0].mxu0 %v3279
      %v3281 = vpop.f32.mrb[0].mxu0
      %v3282 = vadd.f32 %v3201, %v3281
      %v3283 = vpop.f32.mrb[0].mxu0
      %3284 = vdwg.mxu0
      %3285 = vmatprep.subr.mxu0 0.0
      %v3286 = vand.u32 %v2216, 4294901760
      %v3287 = vsub.f32 %v2216, %v3286
      %3288 = vmatpush1.msra.mxu0 %v3287
      %3289 = vmatprep.subr.mxu0 0.0
      %v3290 = vand.u32 %v2222, 4294901760
      %v3291 = vsub.f32 %v2222, %v3290
      %3292 = vmatpush1.msra.mxu0 %v3291
      %3293 = vmatprep.subr.mxu0 0.0
      %3294 = vmatpush1.msra.mxu0 0.0
      %3295 = vmatprep.subr.mxu0 0.0
      %3296 = vmatpush1.msra.mxu0 0.0
      %3297 = vmatprep.subr.mxu0 0.0
      %3298 = vmatpush1.msra.mxu0 0.0
      %3299 = vmatprep.subr.mxu0 0.0
      %3300 = vmatpush1.msra.mxu0 0.0
      %3301 = vmatprep.subr.mxu0 0.0
      %3302 = vmatpush1.msra.mxu0 0.0
      %3303 = vmatprep.subr.mxu0 0.0
      %3304 = vmatpush1.msra.mxu0 0.0
      %3305 = vmatprep.subr.mxu0 0.0
      %3306 = vmatpush1.msra.mxu0 0.0
      %3307 = vmatprep.subr.mxu0 0.0
      %3308 = vmatpush1.msra.mxu0 0.0
      %3309 = vmatprep.subr.mxu0 0.0
      %3310 = vmatpush1.msra.mxu0 0.0
      %3311 = vmatprep.subr.mxu0 0.0
      %3312 = vmatpush1.msra.mxu0 0.0
      %3313 = vmatprep.subr.mxu0 0.0
      %3314 = vmatpush1.msra.mxu0 0.0
      %3315 = vmatprep.subr.mxu0 0.0
      %3316 = vmatpush1.msra.mxu0 0.0
      %3317 = vmatprep.subr.mxu0 0.0
      %3318 = vmatpush1.msra.mxu0 0.0
      %3319 = vmatprep.subr.mxu0 0.0
      %3320 = vmatpush1.msra.mxu0 0.0
      %3321 = vmatprep.subr.mxu0 0.0
      %3322 = vmatpush1.msra.mxu0 0.0
      %3323 = vmatprep.subr.mxu0 0.0
      %3324 = vmatpush1.msra.mxu0 0.0
      %3325 = vmatprep.subr.mxu0 0.0
      %3326 = vmatpush1.msra.mxu0 0.0
      %3327 = vmatprep.subr.mxu0 0.0
      %3328 = vmatpush1.msra.mxu0 0.0
      %3329 = vmatprep.subr.mxu0 0.0
      %3330 = vmatpush1.msra.mxu0 0.0
      %3331 = vmatprep.subr.mxu0 0.0
      %3332 = vmatpush1.msra.mxu0 0.0
      %3333 = vmatprep.subr.mxu0 0.0
      %3334 = vmatpush1.msra.mxu0 0.0
      %3335 = vmatprep.subr.mxu0 0.0
      %3336 = vmatpush1.msra.mxu0 0.0
      %3337 = vmatprep.subr.mxu0 0.0
      %3338 = vmatpush1.msra.mxu0 0.0
      %3339 = vmatprep.subr.mxu0 0.0
      %3340 = vmatpush1.msra.mxu0 0.0
      %3341 = vmatprep.subr.mxu0 0.0
      %3342 = vmatpush1.msra.mxu0 0.0
      %3343 = vmatprep.subr.mxu0 0.0
      %3344 = vmatpush1.msra.mxu0 0.0
      %3345 = vmatprep.subr.mxu0 0.0
      %3346 = vmatpush1.msra.mxu0 0.0
      %3347 = vmatprep.subr.mxu0 0.0
      %3348 = vmatpush1.msra.mxu0 0.0
      %3349 = vmatprep.subr.mxu0 0.0
      %3350 = vmatpush1.msra.mxu0 0.0
      %3351 = vmatprep.subr.mxu0 0.0
      %3352 = vmatpush1.msra.mxu0 0.0
      %3353 = vmatprep.mubr.f32.mxu0 0.0
      %v3354 = vand.u32 %v3125, 4294901760
      %v3355 = vsub.f32 %v3125, %v3354
      %3356 = vmatmul.mubr.f32.gmra.mrb[0].mxu0 %v3355
      %v3357 = vpop.f32.mrb[0].mxu0
      %v3358 = vadd.f32 %v3282, %v3357
      %v3359 = vpop.f32.mrb[0].mxu0
      %3360 = vdwg.mxu0
      %3361 = vmatprep.subr.mxu0 0.0
      %v3362 = vand.u32 %v2216, 4294901760
      %3363 = vmatpush1.msra.mxu0 %v3362
      %3364 = vmatprep.subr.mxu0 0.0
      %v3365 = vand.u32 %v2222, 4294901760
      %3366 = vmatpush1.msra.mxu0 %v3365
      %3367 = vmatprep.subr.mxu0 0.0
      %3368 = vmatpush1.msra.mxu0 0.0
      %3369 = vmatprep.subr.mxu0 0.0
      %3370 = vmatpush1.msra.mxu0 0.0
      %3371 = vmatprep.subr.mxu0 0.0
      %3372 = vmatpush1.msra.mxu0 0.0
      %3373 = vmatprep.subr.mxu0 0.0
      %3374 = vmatpush1.msra.mxu0 0.0
      %3375 = vmatprep.subr.mxu0 0.0
      %3376 = vmatpush1.msra.mxu0 0.0
      %3377 = vmatprep.subr.mxu0 0.0
      %3378 = vmatpush1.msra.mxu0 0.0
      %3379 = vmatprep.subr.mxu0 0.0
      %3380 = vmatpush1.msra.mxu0 0.0
      %3381 = vmatprep.subr.mxu0 0.0
      %3382 = vmatpush1.msra.mxu0 0.0
      %3383 = vmatprep.subr.mxu0 0.0
      %3384 = vmatpush1.msra.mxu0 0.0
      %3385 = vmatprep.subr.mxu0 0.0
      %3386 = vmatpush1.msra.mxu0 0.0
      %3387 = vmatprep.subr.mxu0 0.0
      %3388 = vmatpush1.msra.mxu0 0.0
      %3389 = vmatprep.subr.mxu0 0.0
      %3390 = vmatpush1.msra.mxu0 0.0
      %3391 = vmatprep.subr.mxu0 0.0
      %3392 = vmatpush1.msra.mxu0 0.0
      %3393 = vmatprep.subr.mxu0 0.0
      %3394 = vmatpush1.msra.mxu0 0.0
      %3395 = vmatprep.subr.mxu0 0.0
      %3396 = vmatpush1.msra.mxu0 0.0
      %3397 = vmatprep.subr.mxu0 0.0
      %3398 = vmatpush1.msra.mxu0 0.0
      %3399 = vmatprep.subr.mxu0 0.0
      %3400 = vmatpush1.msra.mxu0 0.0
      %3401 = vmatprep.subr.mxu0 0.0
      %3402 = vmatpush1.msra.mxu0 0.0
      %3403 = vmatprep.subr.mxu0 0.0
      %3404 = vmatpush1.msra.mxu0 0.0
      %3405 = vmatprep.subr.mxu0 0.0
      %3406 = vmatpush1.msra.mxu0 0.0
      %3407 = vmatprep.subr.mxu0 0.0
      %3408 = vmatpush1.msra.mxu0 0.0
      %3409 = vmatprep.subr.mxu0 0.0
      %3410 = vmatpush1.msra.mxu0 0.0
      %3411 = vmatprep.subr.mxu0 0.0
      %3412 = vmatpush1.msra.mxu0 0.0
      %3413 = vmatprep.subr.mxu0 0.0
      %3414 = vmatpush1.msra.mxu0 0.0
      %3415 = vmatprep.subr.mxu0 0.0
      %3416 = vmatpush1.msra.mxu0 0.0
      %3417 = vmatprep.subr.mxu0 0.0
      %3418 = vmatpush1.msra.mxu0 0.0
      %3419 = vmatprep.subr.mxu0 0.0
      %3420 = vmatpush1.msra.mxu0 0.0
      %3421 = vmatprep.subr.mxu0 0.0
      %3422 = vmatpush1.msra.mxu0 0.0
      %3423 = vmatprep.subr.mxu0 0.0
      %3424 = vmatpush1.msra.mxu0 0.0
      %3425 = vmatprep.subr.mxu0 0.0
      %3426 = vmatpush1.msra.mxu0 0.0
      %3427 = vmatprep.mubr.f32.mxu0 0.0
      %v3428 = vand.u32 %v3125, 4294901760
      %v3429 = vsub.f32 %v3125, %v3428
      %v3430 = vand.u32 %v3429, 4294901760
      %3431 = vmatmul.mubr.f32.gmra.mrb[0].mxu0 %v3430
      %v3432 = vpop.f32.mrb[0].mxu0
      %v3433 = vadd.f32 %v3358, %v3432
      %v3434 = vpop.f32.mrb[0].mxu0
      %3435 = vdwg.mxu0
      %3436 = vmatprep.subr.mxu0 0.0
      %v3437 = vand.u32 %v2216, 4294901760
      %v3438 = vsub.f32 %v2216, %v3437
      %v3439 = vand.u32 %v3438, 4294901760
      %3440 = vmatpush1.msra.mxu0 %v3439
      %3441 = vmatprep.subr.mxu0 0.0
      %v3442 = vand.u32 %v2222, 4294901760
      %v3443 = vsub.f32 %v2222, %v3442
      %v3444 = vand.u32 %v3443, 4294901760
      %3445 = vmatpush1.msra.mxu0 %v3444
      %3446 = vmatprep.subr.mxu0 0.0
      %3447 = vmatpush1.msra.mxu0 0.0
      %3448 = vmatprep.subr.mxu0 0.0
      %3449 = vmatpush1.msra.mxu0 0.0
      %3450 = vmatprep.subr.mxu0 0.0
      %3451 = vmatpush1.msra.mxu0 0.0
      %3452 = vmatprep.subr.mxu0 0.0
      %3453 = vmatpush1.msra.mxu0 0.0
      %3454 = vmatprep.subr.mxu0 0.0
      %3455 = vmatpush1.msra.mxu0 0.0
      %3456 = vmatprep.subr.mxu0 0.0
      %3457 = vmatpush1.msra.mxu0 0.0
      %3458 = vmatprep.subr.mxu0 0.0
      %3459 = vmatpush1.msra.mxu0 0.0
      %3460 = vmatprep.subr.mxu0 0.0
      %3461 = vmatpush1.msra.mxu0 0.0
      %3462 = vmatprep.subr.mxu0 0.0
      %3463 = vmatpush1.msra.mxu0 0.0
      %3464 = vmatprep.subr.mxu0 0.0
      %3465 = vmatpush1.msra.mxu0 0.0
      %3466 = vmatprep.subr.mxu0 0.0
      %3467 = vmatpush1.msra.mxu0 0.0
      %3468 = vmatprep.subr.mxu0 0.0
      %3469 = vmatpush1.msra.mxu0 0.0
      %3470 = vmatprep.subr.mxu0 0.0
      %3471 = vmatpush1.msra.mxu0 0.0
      %3472 = vmatprep.subr.mxu0 0.0
      %3473 = vmatpush1.msra.mxu0 0.0
      %3474 = vmatprep.subr.mxu0 0.0
      %3475 = vmatpush1.msra.mxu0 0.0
      %3476 = vmatprep.subr.mxu0 0.0
      %3477 = vmatpush1.msra.mxu0 0.0
      %3478 = vmatprep.subr.mxu0 0.0
      %3479 = vmatpush1.msra.mxu0 0.0
      %3480 = vmatprep.subr.mxu0 0.0
      %3481 = vmatpush1.msra.mxu0 0.0
      %3482 = vmatprep.subr.mxu0 0.0
      %3483 = vmatpush1.msra.mxu0 0.0
      %3484 = vmatprep.subr.mxu0 0.0
      %3485 = vmatpush1.msra.mxu0 0.0
      %3486 = vmatprep.subr.mxu0 0.0
      %3487 = vmatpush1.msra.mxu0 0.0
      %3488 = vmatprep.subr.mxu0 0.0
      %3489 = vmatpush1.msra.mxu0 0.0
      %3490 = vmatprep.subr.mxu0 0.0
      %3491 = vmatpush1.msra.mxu0 0.0
      %3492 = vmatprep.subr.mxu0 0.0
      %3493 = vmatpush1.msra.mxu0 0.0
      %3494 = vmatprep.subr.mxu0 0.0
      %3495 = vmatpush1.msra.mxu0 0.0
      %3496 = vmatprep.subr.mxu0 0.0
      %3497 = vmatpush1.msra.mxu0 0.0
      %3498 = vmatprep.subr.mxu0 0.0
      %3499 = vmatpush1.msra.mxu0 0.0
      %3500 = vmatprep.subr.mxu0 0.0
      %3501 = vmatpush1.msra.mxu0 0.0
      %3502 = vmatprep.subr.mxu0 0.0
      %3503 = vmatpush1.msra.mxu0 0.0
      %3504 = vmatprep.subr.mxu0 0.0
      %3505 = vmatpush1.msra.mxu0 0.0
      %3506 = vmatprep.mubr.f32.mxu0 0.0
      %v3507 = vand.u32 %v3125, 4294901760
      %3508 = vmatmul.mubr.f32.gmra.mrb[0].mxu0 %v3507
      %v3509 = vpop.f32.mrb[0].mxu0
      %v3510 = vadd.f32 %v3433, %v3509
      %v3511 = vpop.f32.mrb[0].mxu0
      %3512 = vdwg.mxu0
      %3513 = vmatprep.subr.mxu0 0.0
      %v3514 = vand.u32 %v2216, 4294901760
      %3515 = vmatpush1.msra.mxu0 %v3514
      %3516 = vmatprep.subr.mxu0 0.0
      %v3517 = vand.u32 %v2222, 4294901760
      %3518 = vmatpush1.msra.mxu0 %v3517
      %3519 = vmatprep.subr.mxu0 0.0
      %3520 = vmatpush1.msra.mxu0 0.0
      %3521 = vmatprep.subr.mxu0 0.0
      %3522 = vmatpush1.msra.mxu0 0.0
      %3523 = vmatprep.subr.mxu0 0.0
      %3524 = vmatpush1.msra.mxu0 0.0
      %3525 = vmatprep.subr.mxu0 0.0
      %3526 = vmatpush1.msra.mxu0 0.0
      %3527 = vmatprep.subr.mxu0 0.0
      %3528 = vmatpush1.msra.mxu0 0.0
      %3529 = vmatprep.subr.mxu0 0.0
      %3530 = vmatpush1.msra.mxu0 0.0
      %3531 = vmatprep.subr.mxu0 0.0
      %3532 = vmatpush1.msra.mxu0 0.0
      %3533 = vmatprep.subr.mxu0 0.0
      %3534 = vmatpush1.msra.mxu0 0.0
      %3535 = vmatprep.subr.mxu0 0.0
      %3536 = vmatpush1.msra.mxu0 0.0
      %3537 = vmatprep.subr.mxu0 0.0
      %3538 = vmatpush1.msra.mxu0 0.0
      %3539 = vmatprep.subr.mxu0 0.0
      %3540 = vmatpush1.msra.mxu0 0.0
      %3541 = vmatprep.subr.mxu0 0.0
      %3542 = vmatpush1.msra.mxu0 0.0
      %3543 = vmatprep.subr.mxu0 0.0
      %3544 = vmatpush1.msra.mxu0 0.0
      %3545 = vmatprep.subr.mxu0 0.0
      %3546 = vmatpush1.msra.mxu0 0.0
      %3547 = vmatprep.subr.mxu0 0.0
      %3548 = vmatpush1.msra.mxu0 0.0
      %3549 = vmatprep.subr.mxu0 0.0
      %3550 = vmatpush1.msra.mxu0 0.0
      %3551 = vmatprep.subr.mxu0 0.0
      %3552 = vmatpush1.msra.mxu0 0.0
      %3553 = vmatprep.subr.mxu0 0.0
      %3554 = vmatpush1.msra.mxu0 0.0
      %3555 = vmatprep.subr.mxu0 0.0
      %3556 = vmatpush1.msra.mxu0 0.0
      %3557 = vmatprep.subr.mxu0 0.0
      %3558 = vmatpush1.msra.mxu0 0.0
      %3559 = vmatprep.subr.mxu0 0.0
      %3560 = vmatpush1.msra.mxu0 0.0
      %3561 = vmatprep.subr.mxu0 0.0
      %3562 = vmatpush1.msra.mxu0 0.0
      %3563 = vmatprep.subr.mxu0 0.0
      %3564 = vmatpush1.msra.mxu0 0.0
      %3565 = vmatprep.subr.mxu0 0.0
      %3566 = vmatpush1.msra.mxu0 0.0
      %3567 = vmatprep.subr.mxu0 0.0
      %3568 = vmatpush1.msra.mxu0 0.0
      %3569 = vmatprep.subr.mxu0 0.0
      %3570 = vmatpush1.msra.mxu0 0.0
      %3571 = vmatprep.subr.mxu0 0.0
      %3572 = vmatpush1.msra.mxu0 0.0
      %3573 = vmatprep.subr.mxu0 0.0
      %3574 = vmatpush1.msra.mxu0 0.0
      %3575 = vmatprep.subr.mxu0 0.0
      %3576 = vmatpush1.msra.mxu0 0.0
      %3577 = vmatprep.subr.mxu0 0.0
      %3578 = vmatpush1.msra.mxu0 0.0
      %3579 = vmatprep.mubr.f32.mxu0 0.0
      %v3580 = vand.u32 %v3125, 4294901760
      %3581 = vmatmul.mubr.f32.gmra.mrb[0].mxu0 %v3580
      %v3582 = vpop.f32.mrb[0].mxu0
      %v3583 = vadd.f32 %v3510, %v3582
      %v3584 = vpop.f32.mrb[0].mxu0
      %3585 = vdwg.mxu0
      %v3587 = vsel %vm2225, %v153, 0
      %3589 = vmatprep.subr.mxu0 0.0
      %v3590 = vand.u32 %v3583, 4294901760
      %3591 = vmatpush1.msra.mxu0 %v3590
      %3592 = vmatprep.subr.mxu0 0.0
      %3593 = vmatpush1.msra.mxu0 0.0
      %3594 = vmatprep.subr.mxu0 0.0
      %3595 = vmatpush1.msra.mxu0 0.0
      %3596 = vmatprep.subr.mxu0 0.0
      %3597 = vmatpush1.msra.mxu0 0.0
      %3598 = vmatprep.subr.mxu0 0.0
      %3599 = vmatpush1.msra.mxu0 0.0
      %3600 = vmatprep.subr.mxu0 0.0
      %3601 = vmatpush1.msra.mxu0 0.0
      %3602 = vmatprep.subr.mxu0 0.0
      %3603 = vmatpush1.msra.mxu0 0.0
      %3604 = vmatprep.subr.mxu0 0.0
      %3605 = vmatpush1.msra.mxu0 0.0
      %3606 = vmatprep.subr.mxu0 0.0
      %3607 = vmatpush1.msra.mxu0 0.0
      %3608 = vmatprep.subr.mxu0 0.0
      %3609 = vmatpush1.msra.mxu0 0.0
      %3610 = vmatprep.subr.mxu0 0.0
      %3611 = vmatpush1.msra.mxu0 0.0
      %3612 = vmatprep.subr.mxu0 0.0
      %3613 = vmatpush1.msra.mxu0 0.0
      %3614 = vmatprep.subr.mxu0 0.0
      %3615 = vmatpush1.msra.mxu0 0.0
      %3616 = vmatprep.subr.mxu0 0.0
      %3617 = vmatpush1.msra.mxu0 0.0
      %3618 = vmatprep.subr.mxu0 0.0
      %3619 = vmatpush1.msra.mxu0 0.0
      %3620 = vmatprep.subr.mxu0 0.0
      %3621 = vmatpush1.msra.mxu0 0.0
      %3622 = vmatprep.subr.mxu0 0.0
      %3623 = vmatpush1.msra.mxu0 0.0
      %3624 = vmatprep.subr.mxu0 0.0
      %3625 = vmatpush1.msra.mxu0 0.0
      %3626 = vmatprep.subr.mxu0 0.0
      %3627 = vmatpush1.msra.mxu0 0.0
      %3628 = vmatprep.subr.mxu0 0.0
      %3629 = vmatpush1.msra.mxu0 0.0
      %3630 = vmatprep.subr.mxu0 0.0
      %3631 = vmatpush1.msra.mxu0 0.0
      %3632 = vmatprep.subr.mxu0 0.0
      %3633 = vmatpush1.msra.mxu0 0.0
      %3634 = vmatprep.subr.mxu0 0.0
      %3635 = vmatpush1.msra.mxu0 0.0
      %3636 = vmatprep.subr.mxu0 0.0
      %3637 = vmatpush1.msra.mxu0 0.0
      %3638 = vmatprep.subr.mxu0 0.0
      %3639 = vmatpush1.msra.mxu0 0.0
      %3640 = vmatprep.subr.mxu0 0.0
      %3641 = vmatpush1.msra.mxu0 0.0
      %3642 = vmatprep.subr.mxu0 0.0
      %3643 = vmatpush1.msra.mxu0 0.0
      %3644 = vmatprep.subr.mxu0 0.0
      %3645 = vmatpush1.msra.mxu0 0.0
      %3646 = vmatprep.subr.mxu0 0.0
      %3647 = vmatpush1.msra.mxu0 0.0
      %3648 = vmatprep.subr.mxu0 0.0
      %3649 = vmatpush1.msra.mxu0 0.0
      %3650 = vmatprep.subr.mxu0 0.0
      %3651 = vmatpush1.msra.mxu0 0.0
      %3652 = vmatprep.subr.mxu0 0.0
      %3653 = vmatpush1.msra.mxu0 0.0
      %3654 = vmatprep.mubr.f32.mxu0 0.0
      %v3655 = vand.u32 %v3587, 4294901760
      %v3656 = vsub.f32 %v3587, %v3655
      %v3657 = vand.u32 %v3656, 4294901760
      %v3658 = vsub.f32 %v3656, %v3657
      %v3659 = vand.u32 %v3658, 4294901760
      %3660 = vmatmul.mubr.f32.gmra.mrb[0].mxu0 %v3659
      %v3661 = vpop.f32.mrb[0].mxu0
      %v3662 = vadd.f32 %v159, %v3661
      %v3663 = vpop.f32.mrb[0].mxu0
      %3664 = vdwg.mxu0
      %3665 = vmatprep.subr.mxu0 0.0
      %v3666 = vand.u32 %v3583, 4294901760
      %v3667 = vsub.f32 %v3583, %v3666
      %v3668 = vand.u32 %v3667, 4294901760
      %v3669 = vsub.f32 %v3667, %v3668
      %v3670 = vand.u32 %v3669, 4294901760
      %3671 = vmatpush1.msra.mxu0 %v3670
      %3672 = vmatprep.subr.mxu0 0.0
      %3673 = vmatpush1.msra.mxu0 0.0
      %3674 = vmatprep.subr.mxu0 0.0
      %3675 = vmatpush1.msra.mxu0 0.0
      %3676 = vmatprep.subr.mxu0 0.0
      %3677 = vmatpush1.msra.mxu0 0.0
      %3678 = vmatprep.subr.mxu0 0.0
      %3679 = vmatpush1.msra.mxu0 0.0
      %3680 = vmatprep.subr.mxu0 0.0
      %3681 = vmatpush1.msra.mxu0 0.0
      %3682 = vmatprep.subr.mxu0 0.0
      %3683 = vmatpush1.msra.mxu0 0.0
      %3684 = vmatprep.subr.mxu0 0.0
      %3685 = vmatpush1.msra.mxu0 0.0
      %3686 = vmatprep.subr.mxu0 0.0
      %3687 = vmatpush1.msra.mxu0 0.0
      %3688 = vmatprep.subr.mxu0 0.0
      %3689 = vmatpush1.msra.mxu0 0.0
      %3690 = vmatprep.subr.mxu0 0.0
      %3691 = vmatpush1.msra.mxu0 0.0
      %3692 = vmatprep.subr.mxu0 0.0
      %3693 = vmatpush1.msra.mxu0 0.0
      %3694 = vmatprep.subr.mxu0 0.0
      %3695 = vmatpush1.msra.mxu0 0.0
      %3696 = vmatprep.subr.mxu0 0.0
      %3697 = vmatpush1.msra.mxu0 0.0
      %3698 = vmatprep.subr.mxu0 0.0
      %3699 = vmatpush1.msra.mxu0 0.0
      %3700 = vmatprep.subr.mxu0 0.0
      %3701 = vmatpush1.msra.mxu0 0.0
      %3702 = vmatprep.subr.mxu0 0.0
      %3703 = vmatpush1.msra.mxu0 0.0
      %3704 = vmatprep.subr.mxu0 0.0
      %3705 = vmatpush1.msra.mxu0 0.0
      %3706 = vmatprep.subr.mxu0 0.0
      %3707 = vmatpush1.msra.mxu0 0.0
      %3708 = vmatprep.subr.mxu0 0.0
      %3709 = vmatpush1.msra.mxu0 0.0
      %3710 = vmatprep.subr.mxu0 0.0
      %3711 = vmatpush1.msra.mxu0 0.0
      %3712 = vmatprep.subr.mxu0 0.0
      %3713 = vmatpush1.msra.mxu0 0.0
      %3714 = vmatprep.subr.mxu0 0.0
      %3715 = vmatpush1.msra.mxu0 0.0
      %3716 = vmatprep.subr.mxu0 0.0
      %3717 = vmatpush1.msra.mxu0 0.0
      %3718 = vmatprep.subr.mxu0 0.0
      %3719 = vmatpush1.msra.mxu0 0.0
      %3720 = vmatprep.subr.mxu0 0.0
      %3721 = vmatpush1.msra.mxu0 0.0
      %3722 = vmatprep.subr.mxu0 0.0
      %3723 = vmatpush1.msra.mxu0 0.0
      %3724 = vmatprep.subr.mxu0 0.0
      %3725 = vmatpush1.msra.mxu0 0.0
      %3726 = vmatprep.subr.mxu0 0.0
      %3727 = vmatpush1.msra.mxu0 0.0
      %3728 = vmatprep.subr.mxu0 0.0
      %3729 = vmatpush1.msra.mxu0 0.0
      %3730 = vmatprep.subr.mxu0 0.0
      %3731 = vmatpush1.msra.mxu0 0.0
      %3732 = vmatprep.subr.mxu0 0.0
      %3733 = vmatpush1.msra.mxu0 0.0
      %3734 = vmatprep.mubr.f32.mxu0 0.0
      %v3735 = vand.u32 %v3587, 4294901760
      %3736 = vmatmul.mubr.f32.gmra.mrb[0].mxu0 %v3735
      %v3737 = vpop.f32.mrb[0].mxu0
      %v3738 = vadd.f32 %v3662, %v3737
      %v3739 = vpop.f32.mrb[0].mxu0
      %3740 = vdwg.mxu0
      %3741 = vmatprep.subr.mxu0 0.0
      %v3742 = vand.u32 %v3583, 4294901760
      %v3743 = vsub.f32 %v3583, %v3742
      %3744 = vmatpush1.msra.mxu0 %v3743
      %3745 = vmatprep.subr.mxu0 0.0
      %3746 = vmatpush1.msra.mxu0 0.0
      %3747 = vmatprep.subr.mxu0 0.0
      %3748 = vmatpush1.msra.mxu0 0.0
      %3749 = vmatprep.subr.mxu0 0.0
      %3750 = vmatpush1.msra.mxu0 0.0
      %3751 = vmatprep.subr.mxu0 0.0
      %3752 = vmatpush1.msra.mxu0 0.0
      %3753 = vmatprep.subr.mxu0 0.0
      %3754 = vmatpush1.msra.mxu0 0.0
      %3755 = vmatprep.subr.mxu0 0.0
      %3756 = vmatpush1.msra.mxu0 0.0
      %3757 = vmatprep.subr.mxu0 0.0
      %3758 = vmatpush1.msra.mxu0 0.0
      %3759 = vmatprep.subr.mxu0 0.0
      %3760 = vmatpush1.msra.mxu0 0.0
      %3761 = vmatprep.subr.mxu0 0.0
      %3762 = vmatpush1.msra.mxu0 0.0
      %3763 = vmatprep.subr.mxu0 0.0
      %3764 = vmatpush1.msra.mxu0 0.0
      %3765 = vmatprep.subr.mxu0 0.0
      %3766 = vmatpush1.msra.mxu0 0.0
      %3767 = vmatprep.subr.mxu0 0.0
      %3768 = vmatpush1.msra.mxu0 0.0
      %3769 = vmatprep.subr.mxu0 0.0
      %3770 = vmatpush1.msra.mxu0 0.0
      %3771 = vmatprep.subr.mxu0 0.0
      %3772 = vmatpush1.msra.mxu0 0.0
      %3773 = vmatprep.subr.mxu0 0.0
      %3774 = vmatpush1.msra.mxu0 0.0
      %3775 = vmatprep.subr.mxu0 0.0
      %3776 = vmatpush1.msra.mxu0 0.0
      %3777 = vmatprep.subr.mxu0 0.0
      %3778 = vmatpush1.msra.mxu0 0.0
      %3779 = vmatprep.subr.mxu0 0.0
      %3780 = vmatpush1.msra.mxu0 0.0
      %3781 = vmatprep.subr.mxu0 0.0
      %3782 = vmatpush1.msra.mxu0 0.0
      %3783 = vmatprep.subr.mxu0 0.0
      %3784 = vmatpush1.msra.mxu0 0.0
      %3785 = vmatprep.subr.mxu0 0.0
      %3786 = vmatpush1.msra.mxu0 0.0
      %3787 = vmatprep.subr.mxu0 0.0
      %3788 = vmatpush1.msra.mxu0 0.0
      %3789 = vmatprep.subr.mxu0 0.0
      %3790 = vmatpush1.msra.mxu0 0.0
      %3791 = vmatprep.subr.mxu0 0.0
      %3792 = vmatpush1.msra.mxu0 0.0
      %3793 = vmatprep.subr.mxu0 0.0
      %3794 = vmatpush1.msra.mxu0 0.0
      %3795 = vmatprep.subr.mxu0 0.0
      %3796 = vmatpush1.msra.mxu0 0.0
      %3797 = vmatprep.subr.mxu0 0.0
      %3798 = vmatpush1.msra.mxu0 0.0
      %3799 = vmatprep.subr.mxu0 0.0
      %3800 = vmatpush1.msra.mxu0 0.0
      %3801 = vmatprep.subr.mxu0 0.0
      %3802 = vmatpush1.msra.mxu0 0.0
      %3803 = vmatprep.subr.mxu0 0.0
      %3804 = vmatpush1.msra.mxu0 0.0
      %3805 = vmatprep.subr.mxu0 0.0
      %3806 = vmatpush1.msra.mxu0 0.0
      %3807 = vmatprep.mubr.f32.mxu0 0.0
      %v3808 = vand.u32 %v3587, 4294901760
      %v3809 = vsub.f32 %v3587, %v3808
      %3810 = vmatmul.mubr.f32.gmra.mrb[0].mxu0 %v3809
      %v3811 = vpop.f32.mrb[0].mxu0
      %v3812 = vadd.f32 %v3738, %v3811
      %v3813 = vpop.f32.mrb[0].mxu0
      %3814 = vdwg.mxu0
      %3815 = vmatprep.subr.mxu0 0.0
      %v3816 = vand.u32 %v3583, 4294901760
      %3817 = vmatpush1.msra.mxu0 %v3816
      %3818 = vmatprep.subr.mxu0 0.0
      %3819 = vmatpush1.msra.mxu0 0.0
      %3820 = vmatprep.subr.mxu0 0.0
      %3821 = vmatpush1.msra.mxu0 0.0
      %3822 = vmatprep.subr.mxu0 0.0
      %3823 = vmatpush1.msra.mxu0 0.0
      %3824 = vmatprep.subr.mxu0 0.0
      %3825 = vmatpush1.msra.mxu0 0.0
      %3826 = vmatprep.subr.mxu0 0.0
      %3827 = vmatpush1.msra.mxu0 0.0
      %3828 = vmatprep.subr.mxu0 0.0
      %3829 = vmatpush1.msra.mxu0 0.0
      %3830 = vmatprep.subr.mxu0 0.0
      %3831 = vmatpush1.msra.mxu0 0.0
      %3832 = vmatprep.subr.mxu0 0.0
      %3833 = vmatpush1.msra.mxu0 0.0
      %3834 = vmatprep.subr.mxu0 0.0
      %3835 = vmatpush1.msra.mxu0 0.0
      %3836 = vmatprep.subr.mxu0 0.0
      %3837 = vmatpush1.msra.mxu0 0.0
      %3838 = vmatprep.subr.mxu0 0.0
      %3839 = vmatpush1.msra.mxu0 0.0
      %3840 = vmatprep.subr.mxu0 0.0
      %3841 = vmatpush1.msra.mxu0 0.0
      %3842 = vmatprep.subr.mxu0 0.0
      %3843 = vmatpush1.msra.mxu0 0.0
      %3844 = vmatprep.subr.mxu0 0.0
      %3845 = vmatpush1.msra.mxu0 0.0
      %3846 = vmatprep.subr.mxu0 0.0
      %3847 = vmatpush1.msra.mxu0 0.0
      %3848 = vmatprep.subr.mxu0 0.0
      %3849 = vmatpush1.msra.mxu0 0.0
      %3850 = vmatprep.subr.mxu0 0.0
      %3851 = vmatpush1.msra.mxu0 0.0
      %3852 = vmatprep.subr.mxu0 0.0
      %3853 = vmatpush1.msra.mxu0 0.0
      %3854 = vmatprep.subr.mxu0 0.0
      %3855 = vmatpush1.msra.mxu0 0.0
      %3856 = vmatprep.subr.mxu0 0.0
      %3857 = vmatpush1.msra.mxu0 0.0
      %3858 = vmatprep.subr.mxu0 0.0
      %3859 = vmatpush1.msra.mxu0 0.0
      %3860 = vmatprep.subr.mxu0 0.0
      %3861 = vmatpush1.msra.mxu0 0.0
      %3862 = vmatprep.subr.mxu0 0.0
      %3863 = vmatpush1.msra.mxu0 0.0
      %3864 = vmatprep.subr.mxu0 0.0
      %3865 = vmatpush1.msra.mxu0 0.0
      %3866 = vmatprep.subr.mxu0 0.0
      %3867 = vmatpush1.msra.mxu0 0.0
      %3868 = vmatprep.subr.mxu0 0.0
      %3869 = vmatpush1.msra.mxu0 0.0
      %3870 = vmatprep.subr.mxu0 0.0
      %3871 = vmatpush1.msra.mxu0 0.0
      %3872 = vmatprep.subr.mxu0 0.0
      %3873 = vmatpush1.msra.mxu0 0.0
      %3874 = vmatprep.subr.mxu0 0.0
      %3875 = vmatpush1.msra.mxu0 0.0
      %3876 = vmatprep.subr.mxu0 0.0
      %3877 = vmatpush1.msra.mxu0 0.0
      %3878 = vmatprep.subr.mxu0 0.0
      %3879 = vmatpush1.msra.mxu0 0.0
      %3880 = vmatprep.mubr.f32.mxu0 0.0
      %v3881 = vand.u32 %v3587, 4294901760
      %v3882 = vsub.f32 %v3587, %v3881
      %v3883 = vand.u32 %v3882, 4294901760
      %3884 = vmatmul.mubr.f32.gmra.mrb[0].mxu0 %v3883
      %v3885 = vpop.f32.mrb[0].mxu0
      %v3886 = vadd.f32 %v3812, %v3885
      %v3887 = vpop.f32.mrb[0].mxu0
      %3888 = vdwg.mxu0
      %3889 = vmatprep.subr.mxu0 0.0
      %v3890 = vand.u32 %v3583, 4294901760
      %v3891 = vsub.f32 %v3583, %v3890
      %v3892 = vand.u32 %v3891, 4294901760
      %3893 = vmatpush1.msra.mxu0 %v3892
      %3894 = vmatprep.subr.mxu0 0.0
      %3895 = vmatpush1.msra.mxu0 0.0
      %3896 = vmatprep.subr.mxu0 0.0
      %3897 = vmatpush1.msra.mxu0 0.0
      %3898 = vmatprep.subr.mxu0 0.0
      %3899 = vmatpush1.msra.mxu0 0.0
      %3900 = vmatprep.subr.mxu0 0.0
      %3901 = vmatpush1.msra.mxu0 0.0
      %3902 = vmatprep.subr.mxu0 0.0
      %3903 = vmatpush1.msra.mxu0 0.0
      %3904 = vmatprep.subr.mxu0 0.0
      %3905 = vmatpush1.msra.mxu0 0.0
      %3906 = vmatprep.subr.mxu0 0.0
      %3907 = vmatpush1.msra.mxu0 0.0
      %3908 = vmatprep.subr.mxu0 0.0
      %3909 = vmatpush1.msra.mxu0 0.0
      %3910 = vmatprep.subr.mxu0 0.0
      %3911 = vmatpush1.msra.mxu0 0.0
      %3912 = vmatprep.subr.mxu0 0.0
      %3913 = vmatpush1.msra.mxu0 0.0
      %3914 = vmatprep.subr.mxu0 0.0
      %3915 = vmatpush1.msra.mxu0 0.0
      %3916 = vmatprep.subr.mxu0 0.0
      %3917 = vmatpush1.msra.mxu0 0.0
      %3918 = vmatprep.subr.mxu0 0.0
      %3919 = vmatpush1.msra.mxu0 0.0
      %3920 = vmatprep.subr.mxu0 0.0
      %3921 = vmatpush1.msra.mxu0 0.0
      %3922 = vmatprep.subr.mxu0 0.0
      %3923 = vmatpush1.msra.mxu0 0.0
      %3924 = vmatprep.subr.mxu0 0.0
      %3925 = vmatpush1.msra.mxu0 0.0
      %3926 = vmatprep.subr.mxu0 0.0
      %3927 = vmatpush1.msra.mxu0 0.0
      %3928 = vmatprep.subr.mxu0 0.0
      %3929 = vmatpush1.msra.mxu0 0.0
      %3930 = vmatprep.subr.mxu0 0.0
      %3931 = vmatpush1.msra.mxu0 0.0
      %3932 = vmatprep.subr.mxu0 0.0
      %3933 = vmatpush1.msra.mxu0 0.0
      %3934 = vmatprep.subr.mxu0 0.0
      %3935 = vmatpush1.msra.mxu0 0.0
      %3936 = vmatprep.subr.mxu0 0.0
      %3937 = vmatpush1.msra.mxu0 0.0
      %3938 = vmatprep.subr.mxu0 0.0
      %3939 = vmatpush1.msra.mxu0 0.0
      %3940 = vmatprep.subr.mxu0 0.0
      %3941 = vmatpush1.msra.mxu0 0.0
      %3942 = vmatprep.subr.mxu0 0.0
      %3943 = vmatpush1.msra.mxu0 0.0
      %3944 = vmatprep.subr.mxu0 0.0
      %3945 = vmatpush1.msra.mxu0 0.0
      %3946 = vmatprep.subr.mxu0 0.0
      %3947 = vmatpush1.msra.mxu0 0.0
      %3948 = vmatprep.subr.mxu0 0.0
      %3949 = vmatpush1.msra.mxu0 0.0
      %3950 = vmatprep.subr.mxu0 0.0
      %3951 = vmatpush1.msra.mxu0 0.0
      %3952 = vmatprep.subr.mxu0 0.0
      %3953 = vmatpush1.msra.mxu0 0.0
      %3954 = vmatprep.subr.mxu0 0.0
      %3955 = vmatpush1.msra.mxu0 0.0
      %3956 = vmatprep.mubr.f32.mxu0 0.0
      %v3957 = vand.u32 %v3587, 4294901760
      %3958 = vmatmul.mubr.f32.gmra.mrb[0].mxu0 %v3957
      %v3959 = vpop.f32.mrb[0].mxu0
      %v3960 = vadd.f32 %v3886, %v3959
      %v3961 = vpop.f32.mrb[0].mxu0
      %3962 = vdwg.mxu0
      %3963 = vmatprep.subr.mxu0 0.0
      %v3964 = vand.u32 %v3583, 4294901760
      %3965 = vmatpush1.msra.mxu0 %v3964
      %3966 = vmatprep.subr.mxu0 0.0
      %3967 = vmatpush1.msra.mxu0 0.0
      %3968 = vmatprep.subr.mxu0 0.0
      %3969 = vmatpush1.msra.mxu0 0.0
      %3970 = vmatprep.subr.mxu0 0.0
      %3971 = vmatpush1.msra.mxu0 0.0
      %3972 = vmatprep.subr.mxu0 0.0
      %3973 = vmatpush1.msra.mxu0 0.0
      %3974 = vmatprep.subr.mxu0 0.0
      %3975 = vmatpush1.msra.mxu0 0.0
      %3976 = vmatprep.subr.mxu0 0.0
      %3977 = vmatpush1.msra.mxu0 0.0
      %3978 = vmatprep.subr.mxu0 0.0
      %3979 = vmatpush1.msra.mxu0 0.0
      %3980 = vmatprep.subr.mxu0 0.0
      %3981 = vmatpush1.msra.mxu0 0.0
      %3982 = vmatprep.subr.mxu0 0.0
      %3983 = vmatpush1.msra.mxu0 0.0
      %3984 = vmatprep.subr.mxu0 0.0
      %3985 = vmatpush1.msra.mxu0 0.0
      %3986 = vmatprep.subr.mxu0 0.0
      %3987 = vmatpush1.msra.mxu0 0.0
      %3988 = vmatprep.subr.mxu0 0.0
      %3989 = vmatpush1.msra.mxu0 0.0
      %3990 = vmatprep.subr.mxu0 0.0
      %3991 = vmatpush1.msra.mxu0 0.0
      %3992 = vmatprep.subr.mxu0 0.0
      %3993 = vmatpush1.msra.mxu0 0.0
      %3994 = vmatprep.subr.mxu0 0.0
      %3995 = vmatpush1.msra.mxu0 0.0
      %3996 = vmatprep.subr.mxu0 0.0
      %3997 = vmatpush1.msra.mxu0 0.0
      %3998 = vmatprep.subr.mxu0 0.0
      %3999 = vmatpush1.msra.mxu0 0.0
      %4000 = vmatprep.subr.mxu0 0.0
      %4001 = vmatpush1.msra.mxu0 0.0
      %4002 = vmatprep.subr.mxu0 0.0
      %4003 = vmatpush1.msra.mxu0 0.0
      %4004 = vmatprep.subr.mxu0 0.0
      %4005 = vmatpush1.msra.mxu0 0.0
      %4006 = vmatprep.subr.mxu0 0.0
      %4007 = vmatpush1.msra.mxu0 0.0
      %4008 = vmatprep.subr.mxu0 0.0
      %4009 = vmatpush1.msra.mxu0 0.0
      %4010 = vmatprep.subr.mxu0 0.0
      %4011 = vmatpush1.msra.mxu0 0.0
      %4012 = vmatprep.subr.mxu0 0.0
      %4013 = vmatpush1.msra.mxu0 0.0
      %4014 = vmatprep.subr.mxu0 0.0
      %4015 = vmatpush1.msra.mxu0 0.0
      %4016 = vmatprep.subr.mxu0 0.0
      %4017 = vmatpush1.msra.mxu0 0.0
      %4018 = vmatprep.subr.mxu0 0.0
      %4019 = vmatpush1.msra.mxu0 0.0
      %4020 = vmatprep.subr.mxu0 0.0
      %4021 = vmatpush1.msra.mxu0 0.0
      %4022 = vmatprep.subr.mxu0 0.0
      %4023 = vmatpush1.msra.mxu0 0.0
      %4024 = vmatprep.subr.mxu0 0.0
      %4025 = vmatpush1.msra.mxu0 0.0
      %4026 = vmatprep.subr.mxu0 0.0
      %4027 = vmatpush1.msra.mxu0 0.0
      %4028 = vmatprep.mubr.f32.mxu0 0.0
      %v4029 = vand.u32 %v3587, 4294901760
      %4030 = vmatmul.mubr.f32.gmra.mrb[0].mxu0 %v4029
      %v4031 = vpop.f32.mrb[0].mxu0
      %v4032 = vadd.f32 %v3960, %v4031
      %v4033 = vpop.f32.mrb[0].mxu0
      %4034 = vdwg.mxu0
      %v4036 = vrot.slane %v4032, 3
      %v4038 = vmul.f32 %v4032, %v4036
      %v4039 = vrot.slane %v4032, 1
      %v4041 = vmul.f32 %v4032, %v4039
      %v4043 = vrot.slane %v4041, 1
      %v4045 = vsub.f32 %v4038, %v4043
      %v4046 = vrcp.pop %v4045
      %v4047 = vmul.f32 1.0, %v4046
      %v4048 = vlaneseq
      %v4049 = vshrl.u32 %v4048, 7
      %v4050 = vsub.s32 3, %v4049
      %v4051 = vrot.slane %v4032, %v4050
      %v4052 = vmul.f32 %v3583, %v4051
      %v4053 = vlaneseq
      %v4054 = vshrl.u32 %v4053, 7
      %v4055 = vsub.s32 2, %v4054
      %v4056 = vrot.slane %v4032, %v4055
      %v4057 = vmul.f32 %v3583, %v4056
      %v4059 = vrot.slane %v4057, 4
      %v4061 = vsub.f32 %v4052, %v4059
      %v4062 = vlaneseq
      %v4063 = vshrl.u32 %v4062, 7
      %v4064 = vsub.s32 0, %v4063
      %v4065 = vrot.slane %v4047, %v4064
      %v4066 = vmul.f32 %v4061, %v4065
      %v4067 = vlaneseq
      %v4068 = vshrl.u32 %v4067, 7
      %v4069 = vsub.s32 0, %v4068
      %v4070 = vrot.slane %v4032, %v4069
      %v4071 = vmul.f32 %v3583, %v4070
      %v4072 = vlaneseq
      %v4073 = vshrl.u32 %v4072, 7
      %v4074 = vsub.s32 1, %v4073
      %v4075 = vrot.slane %v4032, %v4074
      %v4076 = vmul.f32 %v3583, %v4075
      %v4078 = vrot.slane %v4076, 4
      %v4080 = vsub.f32 %v4071, %v4078
      %v4081 = vmul.f32 %v4080, %v4065
      %v4083 = vsel %vm2225, %v156, 0
      %4085 = vmatprep.subr.mxu0 0.0
      %v4086 = vand.u32 %v3121, 4294901760
      %4087 = vmatpush1.msra.mxu0 %v4086
      %4088 = vmatprep.subr.mxu0 0.0
      %4089 = vmatpush1.msra.mxu0 0.0
      %4090 = vmatprep.subr.mxu0 0.0
      %4091 = vmatpush1.msra.mxu0 0.0
      %4092 = vmatprep.subr.mxu0 0.0
      %4093 = vmatpush1.msra.mxu0 0.0
      %4094 = vmatprep.subr.mxu0 0.0
      %4095 = vmatpush1.msra.mxu0 0.0
      %4096 = vmatprep.subr.mxu0 0.0
      %4097 = vmatpush1.msra.mxu0 0.0
      %4098 = vmatprep.subr.mxu0 0.0
      %4099 = vmatpush1.msra.mxu0 0.0
      %4100 = vmatprep.subr.mxu0 0.0
      %4101 = vmatpush1.msra.mxu0 0.0
      %4102 = vmatprep.subr.mxu0 0.0
      %4103 = vmatpush1.msra.mxu0 0.0
      %4104 = vmatprep.subr.mxu0 0.0
      %4105 = vmatpush1.msra.mxu0 0.0
      %4106 = vmatprep.subr.mxu0 0.0
      %4107 = vmatpush1.msra.mxu0 0.0
      %4108 = vmatprep.subr.mxu0 0.0
      %4109 = vmatpush1.msra.mxu0 0.0
      %4110 = vmatprep.subr.mxu0 0.0
      %4111 = vmatpush1.msra.mxu0 0.0
      %4112 = vmatprep.subr.mxu0 0.0
      %4113 = vmatpush1.msra.mxu0 0.0
      %4114 = vmatprep.subr.mxu0 0.0
      %4115 = vmatpush1.msra.mxu0 0.0
      %4116 = vmatprep.subr.mxu0 0.0
      %4117 = vmatpush1.msra.mxu0 0.0
      %4118 = vmatprep.subr.mxu0 0.0
      %4119 = vmatpush1.msra.mxu0 0.0
      %4120 = vmatprep.subr.mxu0 0.0
      %4121 = vmatpush1.msra.mxu0 0.0
      %4122 = vmatprep.subr.mxu0 0.0
      %4123 = vmatpush1.msra.mxu0 0.0
      %4124 = vmatprep.subr.mxu0 0.0
      %4125 = vmatpush1.msra.mxu0 0.0
      %4126 = vmatprep.subr.mxu0 0.0
      %4127 = vmatpush1.msra.mxu0 0.0
      %4128 = vmatprep.subr.mxu0 0.0
      %4129 = vmatpush1.msra.mxu0 0.0
      %4130 = vmatprep.subr.mxu0 0.0
      %4131 = vmatpush1.msra.mxu0 0.0
      %4132 = vmatprep.subr.mxu0 0.0
      %4133 = vmatpush1.msra.mxu0 0.0
      %4134 = vmatprep.subr.mxu0 0.0
      %4135 = vmatpush1.msra.mxu0 0.0
      %4136 = vmatprep.subr.mxu0 0.0
      %4137 = vmatpush1.msra.mxu0 0.0
      %4138 = vmatprep.subr.mxu0 0.0
      %4139 = vmatpush1.msra.mxu0 0.0
      %4140 = vmatprep.subr.mxu0 0.0
      %4141 = vmatpush1.msra.mxu0 0.0
      %4142 = vmatprep.subr.mxu0 0.0
      %4143 = vmatpush1.msra.mxu0 0.0
      %4144 = vmatprep.subr.mxu0 0.0
      %4145 = vmatpush1.msra.mxu0 0.0
      %4146 = vmatprep.subr.mxu0 0.0
      %4147 = vmatpush1.msra.mxu0 0.0
      %4148 = vmatprep.subr.mxu0 0.0
      %4149 = vmatpush1.msra.mxu0 0.0
      %4150 = vmatprep.mubr.f32.mxu0 0.0
      %v4151 = vand.u32 %v4083, 4294901760
      %v4152 = vsub.f32 %v4083, %v4151
      %v4153 = vand.u32 %v4152, 4294901760
      %v4154 = vsub.f32 %v4152, %v4153
      %v4155 = vand.u32 %v4154, 4294901760
      %4156 = vmatmul.mubr.f32.gmra.mrb[0].mxu0 %v4155
      %v4157 = vpop.f32.mrb[0].mxu0
      %v4158 = vadd.f32 0.0, %v4157
      %v4159 = vpop.f32.mrb[0].mxu0
      %4160 = vdwg.mxu0
      %4161 = vmatprep.subr.mxu0 0.0
      %v4162 = vand.u32 %v3121, 4294901760
      %v4163 = vsub.f32 %v3121, %v4162
      %v4164 = vand.u32 %v4163, 4294901760
      %v4165 = vsub.f32 %v4163, %v4164
      %v4166 = vand.u32 %v4165, 4294901760
      %4167 = vmatpush1.msra.mxu0 %v4166
      %4168 = vmatprep.subr.mxu0 0.0
      %4169 = vmatpush1.msra.mxu0 0.0
      %4170 = vmatprep.subr.mxu0 0.0
      %4171 = vmatpush1.msra.mxu0 0.0
      %4172 = vmatprep.subr.mxu0 0.0
      %4173 = vmatpush1.msra.mxu0 0.0
      %4174 = vmatprep.subr.mxu0 0.0
      %4175 = vmatpush1.msra.mxu0 0.0
      %4176 = vmatprep.subr.mxu0 0.0
      %4177 = vmatpush1.msra.mxu0 0.0
      %4178 = vmatprep.subr.mxu0 0.0
      %4179 = vmatpush1.msra.mxu0 0.0
      %4180 = vmatprep.subr.mxu0 0.0
      %4181 = vmatpush1.msra.mxu0 0.0
      %4182 = vmatprep.subr.mxu0 0.0
      %4183 = vmatpush1.msra.mxu0 0.0
      %4184 = vmatprep.subr.mxu0 0.0
      %4185 = vmatpush1.msra.mxu0 0.0
      %4186 = vmatprep.subr.mxu0 0.0
      %4187 = vmatpush1.msra.mxu0 0.0
      %4188 = vmatprep.subr.mxu0 0.0
      %4189 = vmatpush1.msra.mxu0 0.0
      %4190 = vmatprep.subr.mxu0 0.0
      %4191 = vmatpush1.msra.mxu0 0.0
      %4192 = vmatprep.subr.mxu0 0.0
      %4193 = vmatpush1.msra.mxu0 0.0
      %4194 = vmatprep.subr.mxu0 0.0
      %4195 = vmatpush1.msra.mxu0 0.0
      %4196 = vmatprep.subr.mxu0 0.0
      %4197 = vmatpush1.msra.mxu0 0.0
      %4198 = vmatprep.subr.mxu0 0.0
      %4199 = vmatpush1.msra.mxu0 0.0
      %4200 = vmatprep.subr.mxu0 0.0
      %4201 = vmatpush1.msra.mxu0 0.0
      %4202 = vmatprep.subr.mxu0 0.0
      %4203 = vmatpush1.msra.mxu0 0.0
      %4204 = vmatprep.subr.mxu0 0.0
      %4205 = vmatpush1.msra.mxu0 0.0
      %4206 = vmatprep.subr.mxu0 0.0
      %4207 = vmatpush1.msra.mxu0 0.0
      %4208 = vmatprep.subr.mxu0 0.0
      %4209 = vmatpush1.msra.mxu0 0.0
      %4210 = vmatprep.subr.mxu0 0.0
      %4211 = vmatpush1.msra.mxu0 0.0
      %4212 = vmatprep.subr.mxu0 0.0
      %4213 = vmatpush1.msra.mxu0 0.0
      %4214 = vmatprep.subr.mxu0 0.0
      %4215 = vmatpush1.msra.mxu0 0.0
      %4216 = vmatprep.subr.mxu0 0.0
      %4217 = vmatpush1.msra.mxu0 0.0
      %4218 = vmatprep.subr.mxu0 0.0
      %4219 = vmatpush1.msra.mxu0 0.0
      %4220 = vmatprep.subr.mxu0 0.0
      %4221 = vmatpush1.msra.mxu0 0.0
      %4222 = vmatprep.subr.mxu0 0.0
      %4223 = vmatpush1.msra.mxu0 0.0
      %4224 = vmatprep.subr.mxu0 0.0
      %4225 = vmatpush1.msra.mxu0 0.0
      %4226 = vmatprep.subr.mxu0 0.0
      %4227 = vmatpush1.msra.mxu0 0.0
      %4228 = vmatprep.subr.mxu0 0.0
      %4229 = vmatpush1.msra.mxu0 0.0
      %4230 = vmatprep.mubr.f32.mxu0 0.0
      %v4231 = vand.u32 %v4083, 4294901760
      %4232 = vmatmul.mubr.f32.gmra.mrb[0].mxu0 %v4231
      %v4233 = vpop.f32.mrb[0].mxu0
      %v4234 = vadd.f32 %v4158, %v4233
      %v4235 = vpop.f32.mrb[0].mxu0
      %4236 = vdwg.mxu0
      %4237 = vmatprep.subr.mxu0 0.0
      %v4238 = vand.u32 %v3121, 4294901760
      %v4239 = vsub.f32 %v3121, %v4238
      %4240 = vmatpush1.msra.mxu0 %v4239
      %4241 = vmatprep.subr.mxu0 0.0
      %4242 = vmatpush1.msra.mxu0 0.0
      %4243 = vmatprep.subr.mxu0 0.0
      %4244 = vmatpush1.msra.mxu0 0.0
      %4245 = vmatprep.subr.mxu0 0.0
      %4246 = vmatpush1.msra.mxu0 0.0
      %4247 = vmatprep.subr.mxu0 0.0
      %4248 = vmatpush1.msra.mxu0 0.0
      %4249 = vmatprep.subr.mxu0 0.0
      %4250 = vmatpush1.msra.mxu0 0.0
      %4251 = vmatprep.subr.mxu0 0.0
      %4252 = vmatpush1.msra.mxu0 0.0
      %4253 = vmatprep.subr.mxu0 0.0
      %4254 = vmatpush1.msra.mxu0 0.0
      %4255 = vmatprep.subr.mxu0 0.0
      %4256 = vmatpush1.msra.mxu0 0.0
      %4257 = vmatprep.subr.mxu0 0.0
      %4258 = vmatpush1.msra.mxu0 0.0
      %4259 = vmatprep.subr.mxu0 0.0
      %4260 = vmatpush1.msra.mxu0 0.0
      %4261 = vmatprep.subr.mxu0 0.0
      %4262 = vmatpush1.msra.mxu0 0.0
      %4263 = vmatprep.subr.mxu0 0.0
      %4264 = vmatpush1.msra.mxu0 0.0
      %4265 = vmatprep.subr.mxu0 0.0
      %4266 = vmatpush1.msra.mxu0 0.0
      %4267 = vmatprep.subr.mxu0 0.0
      %4268 = vmatpush1.msra.mxu0 0.0
      %4269 = vmatprep.subr.mxu0 0.0
      %4270 = vmatpush1.msra.mxu0 0.0
      %4271 = vmatprep.subr.mxu0 0.0
      %4272 = vmatpush1.msra.mxu0 0.0
      %4273 = vmatprep.subr.mxu0 0.0
      %4274 = vmatpush1.msra.mxu0 0.0
      %4275 = vmatprep.subr.mxu0 0.0
      %4276 = vmatpush1.msra.mxu0 0.0
      %4277 = vmatprep.subr.mxu0 0.0
      %4278 = vmatpush1.msra.mxu0 0.0
      %4279 = vmatprep.subr.mxu0 0.0
      %4280 = vmatpush1.msra.mxu0 0.0
      %4281 = vmatprep.subr.mxu0 0.0
      %4282 = vmatpush1.msra.mxu0 0.0
      %4283 = vmatprep.subr.mxu0 0.0
      %4284 = vmatpush1.msra.mxu0 0.0
      %4285 = vmatprep.subr.mxu0 0.0
      %4286 = vmatpush1.msra.mxu0 0.0
      %4287 = vmatprep.subr.mxu0 0.0
      %4288 = vmatpush1.msra.mxu0 0.0
      %4289 = vmatprep.subr.mxu0 0.0
      %4290 = vmatpush1.msra.mxu0 0.0
      %4291 = vmatprep.subr.mxu0 0.0
      %4292 = vmatpush1.msra.mxu0 0.0
      %4293 = vmatprep.subr.mxu0 0.0
      %4294 = vmatpush1.msra.mxu0 0.0
      %4295 = vmatprep.subr.mxu0 0.0
      %4296 = vmatpush1.msra.mxu0 0.0
      %4297 = vmatprep.subr.mxu0 0.0
      %4298 = vmatpush1.msra.mxu0 0.0
      %4299 = vmatprep.subr.mxu0 0.0
      %4300 = vmatpush1.msra.mxu0 0.0
      %4301 = vmatprep.subr.mxu0 0.0
      %4302 = vmatpush1.msra.mxu0 0.0
      %4303 = vmatprep.mubr.f32.mxu0 0.0
      %v4304 = vand.u32 %v4083, 4294901760
      %v4305 = vsub.f32 %v4083, %v4304
      %4306 = vmatmul.mubr.f32.gmra.mrb[0].mxu0 %v4305
      %v4307 = vpop.f32.mrb[0].mxu0
      %v4308 = vadd.f32 %v4234, %v4307
      %v4309 = vpop.f32.mrb[0].mxu0
      %4310 = vdwg.mxu0
      %4311 = vmatprep.subr.mxu0 0.0
      %v4312 = vand.u32 %v3121, 4294901760
      %4313 = vmatpush1.msra.mxu0 %v4312
      %4314 = vmatprep.subr.mxu0 0.0
      %4315 = vmatpush1.msra.mxu0 0.0
      %4316 = vmatprep.subr.mxu0 0.0
      %4317 = vmatpush1.msra.mxu0 0.0
      %4318 = vmatprep.subr.mxu0 0.0
      %4319 = vmatpush1.msra.mxu0 0.0
      %4320 = vmatprep.subr.mxu0 0.0
      %4321 = vmatpush1.msra.mxu0 0.0
      %4322 = vmatprep.subr.mxu0 0.0
      %4323 = vmatpush1.msra.mxu0 0.0
      %4324 = vmatprep.subr.mxu0 0.0
      %4325 = vmatpush1.msra.mxu0 0.0
      %4326 = vmatprep.subr.mxu0 0.0
      %4327 = vmatpush1.msra.mxu0 0.0
      %4328 = vmatprep.subr.mxu0 0.0
      %4329 = vmatpush1.msra.mxu0 0.0
      %4330 = vmatprep.subr.mxu0 0.0
      %4331 = vmatpush1.msra.mxu0 0.0
      %4332 = vmatprep.subr.mxu0 0.0
      %4333 = vmatpush1.msra.mxu0 0.0
      %4334 = vmatprep.subr.mxu0 0.0
      %4335 = vmatpush1.msra.mxu0 0.0
      %4336 = vmatprep.subr.mxu0 0.0
      %4337 = vmatpush1.msra.mxu0 0.0
      %4338 = vmatprep.subr.mxu0 0.0
      %4339 = vmatpush1.msra.mxu0 0.0
      %4340 = vmatprep.subr.mxu0 0.0
      %4341 = vmatpush1.msra.mxu0 0.0
      %4342 = vmatprep.subr.mxu0 0.0
      %4343 = vmatpush1.msra.mxu0 0.0
      %4344 = vmatprep.subr.mxu0 0.0
      %4345 = vmatpush1.msra.mxu0 0.0
      %4346 = vmatprep.subr.mxu0 0.0
      %4347 = vmatpush1.msra.mxu0 0.0
      %4348 = vmatprep.subr.mxu0 0.0
      %4349 = vmatpush1.msra.mxu0 0.0
      %4350 = vmatprep.subr.mxu0 0.0
      %4351 = vmatpush1.msra.mxu0 0.0
      %4352 = vmatprep.subr.mxu0 0.0
      %4353 = vmatpush1.msra.mxu0 0.0
      %4354 = vmatprep.subr.mxu0 0.0
      %4355 = vmatpush1.msra.mxu0 0.0
      %4356 = vmatprep.subr.mxu0 0.0
      %4357 = vmatpush1.msra.mxu0 0.0
      %4358 = vmatprep.subr.mxu0 0.0
      %4359 = vmatpush1.msra.mxu0 0.0
      %4360 = vmatprep.subr.mxu0 0.0
      %4361 = vmatpush1.msra.mxu0 0.0
      %4362 = vmatprep.subr.mxu0 0.0
      %4363 = vmatpush1.msra.mxu0 0.0
      %4364 = vmatprep.subr.mxu0 0.0
      %4365 = vmatpush1.msra.mxu0 0.0
      %4366 = vmatprep.subr.mxu0 0.0
      %4367 = vmatpush1.msra.mxu0 0.0
      %4368 = vmatprep.subr.mxu0 0.0
      %4369 = vmatpush1.msra.mxu0 0.0
      %4370 = vmatprep.subr.mxu0 0.0
      %4371 = vmatpush1.msra.mxu0 0.0
      %4372 = vmatprep.subr.mxu0 0.0
      %4373 = vmatpush1.msra.mxu0 0.0
      %4374 = vmatprep.subr.mxu0 0.0
      %4375 = vmatpush1.msra.mxu0 0.0
      %4376 = vmatprep.mubr.f32.mxu0 0.0
      %v4377 = vand.u32 %v4083, 4294901760
      %v4378 = vsub.f32 %v4083, %v4377
      %v4379 = vand.u32 %v4378, 4294901760
      %4380 = vmatmul.mubr.f32.gmra.mrb[0].mxu0 %v4379
      %v4381 = vpop.f32.mrb[0].mxu0
      %v4382 = vadd.f32 %v4308, %v4381
      %v4383 = vpop.f32.mrb[0].mxu0
      %4384 = vdwg.mxu0
      %4385 = vmatprep.subr.mxu0 0.0
      %v4386 = vand.u32 %v3121, 4294901760
      %v4387 = vsub.f32 %v3121, %v4386
      %v4388 = vand.u32 %v4387, 4294901760
      %4389 = vmatpush1.msra.mxu0 %v4388
      %4390 = vmatprep.subr.mxu0 0.0
      %4391 = vmatpush1.msra.mxu0 0.0
      %4392 = vmatprep.subr.mxu0 0.0
      %4393 = vmatpush1.msra.mxu0 0.0
      %4394 = vmatprep.subr.mxu0 0.0
      %4395 = vmatpush1.msra.mxu0 0.0
      %4396 = vmatprep.subr.mxu0 0.0
      %4397 = vmatpush1.msra.mxu0 0.0
      %4398 = vmatprep.subr.mxu0 0.0
      %4399 = vmatpush1.msra.mxu0 0.0
      %4400 = vmatprep.subr.mxu0 0.0
      %4401 = vmatpush1.msra.mxu0 0.0
      %4402 = vmatprep.subr.mxu0 0.0
      %4403 = vmatpush1.msra.mxu0 0.0
      %4404 = vmatprep.subr.mxu0 0.0
      %4405 = vmatpush1.msra.mxu0 0.0
      %4406 = vmatprep.subr.mxu0 0.0
      %4407 = vmatpush1.msra.mxu0 0.0
      %4408 = vmatprep.subr.mxu0 0.0
      %4409 = vmatpush1.msra.mxu0 0.0
      %4410 = vmatprep.subr.mxu0 0.0
      %4411 = vmatpush1.msra.mxu0 0.0
      %4412 = vmatprep.subr.mxu0 0.0
      %4413 = vmatpush1.msra.mxu0 0.0
      %4414 = vmatprep.subr.mxu0 0.0
      %4415 = vmatpush1.msra.mxu0 0.0
      %4416 = vmatprep.subr.mxu0 0.0
      %4417 = vmatpush1.msra.mxu0 0.0
      %4418 = vmatprep.subr.mxu0 0.0
      %4419 = vmatpush1.msra.mxu0 0.0
      %4420 = vmatprep.subr.mxu0 0.0
      %4421 = vmatpush1.msra.mxu0 0.0
      %4422 = vmatprep.subr.mxu0 0.0
      %4423 = vmatpush1.msra.mxu0 0.0
      %4424 = vmatprep.subr.mxu0 0.0
      %4425 = vmatpush1.msra.mxu0 0.0
      %4426 = vmatprep.subr.mxu0 0.0
      %4427 = vmatpush1.msra.mxu0 0.0
      %4428 = vmatprep.subr.mxu0 0.0
      %4429 = vmatpush1.msra.mxu0 0.0
      %4430 = vmatprep.subr.mxu0 0.0
      %4431 = vmatpush1.msra.mxu0 0.0
      %4432 = vmatprep.subr.mxu0 0.0
      %4433 = vmatpush1.msra.mxu0 0.0
      %4434 = vmatprep.subr.mxu0 0.0
      %4435 = vmatpush1.msra.mxu0 0.0
      %4436 = vmatprep.subr.mxu0 0.0
      %4437 = vmatpush1.msra.mxu0 0.0
      %4438 = vmatprep.subr.mxu0 0.0
      %4439 = vmatpush1.msra.mxu0 0.0
      %4440 = vmatprep.subr.mxu0 0.0
      %4441 = vmatpush1.msra.mxu0 0.0
      %4442 = vmatprep.subr.mxu0 0.0
      %4443 = vmatpush1.msra.mxu0 0.0
      %4444 = vmatprep.subr.mxu0 0.0
      %4445 = vmatpush1.msra.mxu0 0.0
      %4446 = vmatprep.subr.mxu0 0.0
      %4447 = vmatpush1.msra.mxu0 0.0
      %4448 = vmatprep.subr.mxu0 0.0
      %4449 = vmatpush1.msra.mxu0 0.0
      %4450 = vmatprep.subr.mxu0 0.0
      %4451 = vmatpush1.msra.mxu0 0.0
      %4452 = vmatprep.mubr.f32.mxu0 0.0
      %v4453 = vand.u32 %v4083, 4294901760
      %4454 = vmatmul.mubr.f32.gmra.mrb[0].mxu0 %v4453
      %v4455 = vpop.f32.mrb[0].mxu0
      %v4456 = vadd.f32 %v4382, %v4455
      %v4457 = vpop.f32.mrb[0].mxu0
      %4458 = vdwg.mxu0
      %4459 = vmatprep.subr.mxu0 0.0
      %v4460 = vand.u32 %v3121, 4294901760
      %4461 = vmatpush1.msra.mxu0 %v4460
      %4462 = vmatprep.subr.mxu0 0.0
      %4463 = vmatpush1.msra.mxu0 0.0
      %4464 = vmatprep.subr.mxu0 0.0
      %4465 = vmatpush1.msra.mxu0 0.0
      %4466 = vmatprep.subr.mxu0 0.0
      %4467 = vmatpush1.msra.mxu0 0.0
      %4468 = vmatprep.subr.mxu0 0.0
      %4469 = vmatpush1.msra.mxu0 0.0
      %4470 = vmatprep.subr.mxu0 0.0
      %4471 = vmatpush1.msra.mxu0 0.0
      %4472 = vmatprep.subr.mxu0 0.0
      %4473 = vmatpush1.msra.mxu0 0.0
      %4474 = vmatprep.subr.mxu0 0.0
      %4475 = vmatpush1.msra.mxu0 0.0
      %4476 = vmatprep.subr.mxu0 0.0
      %4477 = vmatpush1.msra.mxu0 0.0
      %4478 = vmatprep.subr.mxu0 0.0
      %4479 = vmatpush1.msra.mxu0 0.0
      %4480 = vmatprep.subr.mxu0 0.0
      %4481 = vmatpush1.msra.mxu0 0.0
      %4482 = vmatprep.subr.mxu0 0.0
      %4483 = vmatpush1.msra.mxu0 0.0
      %4484 = vmatprep.subr.mxu0 0.0
      %4485 = vmatpush1.msra.mxu0 0.0
      %4486 = vmatprep.subr.mxu0 0.0
      %4487 = vmatpush1.msra.mxu0 0.0
      %4488 = vmatprep.subr.mxu0 0.0
      %4489 = vmatpush1.msra.mxu0 0.0
      %4490 = vmatprep.subr.mxu0 0.0
      %4491 = vmatpush1.msra.mxu0 0.0
      %4492 = vmatprep.subr.mxu0 0.0
      %4493 = vmatpush1.msra.mxu0 0.0
      %4494 = vmatprep.subr.mxu0 0.0
      %4495 = vmatpush1.msra.mxu0 0.0
      %4496 = vmatprep.subr.mxu0 0.0
      %4497 = vmatpush1.msra.mxu0 0.0
      %4498 = vmatprep.subr.mxu0 0.0
      %4499 = vmatpush1.msra.mxu0 0.0
      %4500 = vmatprep.subr.mxu0 0.0
      %4501 = vmatpush1.msra.mxu0 0.0
      %4502 = vmatprep.subr.mxu0 0.0
      %4503 = vmatpush1.msra.mxu0 0.0
      %4504 = vmatprep.subr.mxu0 0.0
      %4505 = vmatpush1.msra.mxu0 0.0
      %4506 = vmatprep.subr.mxu0 0.0
      %4507 = vmatpush1.msra.mxu0 0.0
      %4508 = vmatprep.subr.mxu0 0.0
      %4509 = vmatpush1.msra.mxu0 0.0
      %4510 = vmatprep.subr.mxu0 0.0
      %4511 = vmatpush1.msra.mxu0 0.0
      %4512 = vmatprep.subr.mxu0 0.0
      %4513 = vmatpush1.msra.mxu0 0.0
      %4514 = vmatprep.subr.mxu0 0.0
      %4515 = vmatpush1.msra.mxu0 0.0
      %4516 = vmatprep.subr.mxu0 0.0
      %4517 = vmatpush1.msra.mxu0 0.0
      %4518 = vmatprep.subr.mxu0 0.0
      %4519 = vmatpush1.msra.mxu0 0.0
      %4520 = vmatprep.subr.mxu0 0.0
      %4521 = vmatpush1.msra.mxu0 0.0
      %4522 = vmatprep.subr.mxu0 0.0
      %4523 = vmatpush1.msra.mxu0 0.0
      %4524 = vmatprep.mubr.f32.mxu0 0.0
      %v4525 = vand.u32 %v4083, 4294901760
      %4526 = vmatmul.mubr.f32.gmra.mrb[0].mxu0 %v4525
      %v4527 = vpop.f32.mrb[0].mxu0
      %v4528 = vadd.f32 %v4456, %v4527
      %v4529 = vpop.f32.mrb[0].mxu0
      %4530 = vdwg.mxu0
      %v4531 = vsub.f32 %v1714, %v4528
      %v4532 = vlaneseq
      %v4533 = vshrl.u32 %v4532, 7
      %v4534 = vsub.s32 0, %v4533
      %v4535 = vrot.slane %v4531, %v4534
      %v4536 = vmul.f32 %v4066, %v4535
      %v4537 = vadd.f32 %v3121, %v4536
      %v4538 = vlaneseq
      %v4539 = vshrl.u32 %v4538, 7
      %v4540 = vsub.s32 1, %v4539
      %v4541 = vrot.slane %v4531, %v4540
      %v4542 = vmul.f32 %v4081, %v4541
      %v4544 = vrot.slane %v4542, 4
      %v4546 = vadd.f32 %v4537, %v4544
      %v4547 = vlaneseq
      %v4548 = vshrl.u32 %v4547, 7
      %v4549 = vsub.s32 0, %v4548
      %v4550 = vrot.slane %v4066, %v4549
      %v4551 = vmul.f32 %v4550, %v3583
      %v4552 = vsub.f32 %v2216, %v4551
      %v4553 = vlaneseq
      %v4554 = vshrl.u32 %v4553, 7
      %v4555 = vsub.s32 4, %v4554
      %v4556 = vrot.slane %v4081, %v4555
      %v4557 = vmul.f32 %v4556, %v3583
      %v4559 = vrot.slane %v4557, 4
      %v4561 = vsub.f32 %v4552, %v4559
      %v4562 = vlaneseq
      %v4563 = vshrl.u32 %v4562, 7
      %v4564 = vsub.s32 1, %v4563
      %v4565 = vrot.slane %v4066, %v4564
      %v4566 = vmul.f32 %v4565, %v3583
      %v4568 = vrot.slane %v4566, 4
      %v4570 = vsub.f32 %v2216, %v4568
      %v4571 = vlaneseq
      %v4572 = vshrl.u32 %v4571, 7
      %v4573 = vsub.s32 5, %v4572
      %v4574 = vrot.slane %v4081, %v4573
      %v4575 = vmul.f32 %v4574, %v3583
      %v4576 = vsub.f32 %v4570, %v4575
      %v4577 = vlaneseq
      %v4578 = vshrl.u32 %v4577, 7
      %v4579 = vsub.s32 2, %v4578
      %v4580 = vrot.slane %v4066, %v4579
      %v4581 = vmul.f32 %v4580, %v3583
      %v4582 = vsub.f32 %v2222, %v4581
      %v4583 = vlaneseq
      %v4584 = vshrl.u32 %v4583, 7
      %v4585 = vsub.s32 6, %v4584
      %v4586 = vrot.slane %v4081, %v4585
      %v4587 = vmul.f32 %v4586, %v3583
      %v4589 = vrot.slane %v4587, 4
      %v4591 = vsub.f32 %v4582, %v4589
      %v4592 = vlaneseq
      %v4593 = vshrl.u32 %v4592, 7
      %v4594 = vsub.s32 3, %v4593
      %v4595 = vrot.slane %v4066, %v4594
      %v4596 = vmul.f32 %v4595, %v3583
      %v4598 = vrot.slane %v4596, 4
      %v4600 = vsub.f32 %v2222, %v4598
      %v4601 = vlaneseq
      %v4602 = vshrl.u32 %v4601, 7
      %v4603 = vsub.s32 7, %v4602
      %v4604 = vrot.slane %v4081, %v4603
      %v4605 = vmul.f32 %v4604, %v3583
      %v4606 = vsub.f32 %v4600, %v4605
      %vm4607 = vcmask 1043456
      %v4608 = vsel %vm4607, %v4561, %v4576
      %v4609 = vsel %vm4607, %v4591, %v4606
      %v4611 = vrot.slane %v4531, 5
      %v4613 = vmul.f32 %v4032, %v4611
      %v4614 = vmul.f32 %v4613, %v4611
      %v4615 = vadd.f32 %v4032, %v4039
      %v4616 = vrot.slane %v4531, 7
      %v4618 = vmul.f32 %v4615, %v4616
      %v4619 = vmul.f32 %v4618, %v4531
      %v4621 = vrot.slane %v4619, 6
      %v4623 = vsub.f32 %v4614, %v4621
      %v4624 = vrot.slane %v4531, 1
      %v4626 = vmul.f32 %v4032, %v4624
      %v4627 = vmul.f32 %v4626, %v4624
      %v4629 = vrot.slane %v4627, 5
      %v4631 = vadd.f32 %v4623, %v4629
      %v4633 = vrot.slane %v4047, 5
      %v4635 = vmul.f32 %v4631, %v4633
      %v4636 = vlog2.pop %v4045
      %v4637 = vmul.f32 %v4636, 0.6931472
      %s4638 = smul.u32 %s1702, 32
      %s4639 = scalar_lea.vmem [#allocation19], %s4638
      %4640 = vst [vmem:[%s4639] sm:$0xf] %v4546
      %4641 = vst [vmem:[%s4639 + $0x4] sm:$0x3] %v4528
      %4642 = vst [vmem:[%s4639 + $0x8] sm:$0xff] %v4608
      %4643 = vst [vmem:[%s4639 + $0x10] sm:$0xff] %v4609
      %4644 = vst [vmem:[%s4639 + $0x18] sm:$0xf] %v4032
      %s4645 = smul.u32 0, 6
      %s4646 = sadd.s32 %s4645, %s1702
      %p4647 = scmp.lt.s32.totalorder %s4646, 6
      %s4648 = scalar_select %p4647, 1, 0
      %v4649 = vstv %s4648
      %vm4650 = vcmp.eq.s32.totalorder %v4649, 1
      %v4651 = vsel %vm4650, %v4635, 0.0
      %v4653 = vrot.slane %v4651, 3
      %v4655 = vadd.f32 %v1710, %v4653
      %v4656 = vsel %vm4650, %v4637, 0.0
      %v4657 = vadd.f32 %v1711, %v4656
      %v4658 = vsel %vm4607, %v4546, 0.0
    $region90: #{tpu_custom_call.1} parent=1 // loop_footer
      %s1704 = sadd.s32 %s1702, 1
    $region91: #{tpu_custom_call.1} parent=1 // loop_footer_branch
      %1701 = sbr.rel target = $region87
    $region92: #{tpu_custom_call.1} parent=1 // loop_exit
      _
    %4659 = vst [vmem:[#allocation2] sm:$0xff] %v1707
    %4660 = vst [vmem:[#allocation3] sm:$0xff] %v1708
    %4661 = vst [vmem:[#allocation3 + $0x8] sm:$0xff] %v1709
    %4662 = vst [vmem:[#allocation20] sm:$0x1] %v1710
    %4663 = vst [vmem:[#allocation20 + $0x1] sm:$0x1] %v1711
    // Predicated region
    $region93: #{tpu_custom_call.1} parent=1 // pred_check
      _
    $region94: #{tpu_custom_call.1} parent=1 // pred_check_branch
      %4665 = sbr.rel (0) target = $region96
    $region95: #{tpu_custom_call.1} parent=1 // pred_region
      %s4667 = ssub.s32 3072, 3072
      %4668 = vsyncadd [#allocation6], %s4667
      %s4669 = sshll.u32 [#allocation19], 4
      %s4670 = int_to_ptr.vmem [resolvable:$true] %s4669
      %4675 = dma.vmem_to_hbm [thread:$0]  %s4670, 3072, %s11, [#allocation6], 128, 128, 8
    $region96: #{tpu_custom_call.1} parent=1 // pred_fallthru
      _
    // Predicated region
    $region97: #{tpu_custom_call.1} parent=1 // pred_check
      _
    $region98: #{tpu_custom_call.1} parent=1 // pred_check_branch
      %4677 = sbr.rel (0) target = $region100
    $region99: #{tpu_custom_call.1} parent=1 // pred_region
      %s4679 = ssub.s32 128, 128
      %4680 = vsyncadd [#allocation21], %s4679
      %s4682 = sshll.u32 [#allocation20], 4
      %s4683 = int_to_ptr.vmem [resolvable:$true] %s4682
      %4685 = dma.vmem_to_hbm [thread:$0]  %s4683, 128, %s12, [#allocation21]
    $region100: #{tpu_custom_call.1} parent=1 // pred_fallthru
      _
    // Predicated region
    $region101: #{tpu_custom_call.1} parent=1 // pred_check
      _
    $region102: #{tpu_custom_call.1} parent=1 // pred_check_branch
      %4687 = sbr.rel (0) target = $region104
    $region103: #{tpu_custom_call.1} parent=1 // pred_region
      %4688 = dma.done [#allocation6], 3072
    $region104: #{tpu_custom_call.1} parent=1 // pred_fallthru
      _
    // Predicated region
    $region105: #{tpu_custom_call.1} parent=1 // pred_check
      _
    $region106: #{tpu_custom_call.1} parent=1 // pred_check_branch
      %4690 = sbr.rel (0) target = $region108
    $region107: #{tpu_custom_call.1} parent=1 // pred_region
      %4691 = dma.done [#allocation21], 128
    $region108: #{tpu_custom_call.1} parent=1 // pred_fallthru
      _
    %4692 = vsyncpa [#allocation5], 1
    %4693 = vsyncpa [#allocation8], 1
    %4694 = vsyncpa [#allocation11], 1
    %4695 = vsyncpa [#allocation14], 1
    %4696 = vsyncpa [#allocation17], 1
    %4697 = vsyncpa [#allocation6], 1
    %4698 = vsyncpa [#allocation21], 1

</llo_original>
